<compile_context>
chip_gen: v5e
topology: v5e:2x2
jax: 0.10.0
libtpu: 0.0.40
codegen_flags: <defaults>
</compile_context>

<pallas_src>
import functools

import numpy as np
import jax
import jax.numpy as jnp
from jax import lax
from jax.experimental import pallas as pl
from jax.experimental.pallas import tpu as pltpu


def _round_up(x, m):
    return (x + m - 1) // m * m


def _gather_kernel(a0_ref, win0_ref, win1_ref, meta_ref, out1_ref, out3_ref, *,
                   lmax, c_rows):
    """One grid step = one tile of R bags.

    win0/win1 : two consecutive (WB,128) blocks of the index stream, auto-pipelined by
                Pallas via the scalar-prefetched per-tile block index; together they
                always cover this tile's data (WB >= worst-case span - 1).
    meta      : (R,4) int32 [window-relative bag start, count, table base, 0].
    out1/out3 : (R, Lmax) padded lookup indices (+base) / 0-1 validity mask.
    """
    del a0_ref  # only consumed by the index_maps
    R = out1_ref.shape[0]
    WB = win0_ref.shape[0]
    LW = c_rows * 128

    meta = meta_ref[...]                         # (R, 4)
    rel = meta[:, 0:1]                           # (R, 1) bag start, window-relative
    cnt = meta[:, 1:2]                           # (R, 1) bag length
    base = meta[:, 2:3]                          # (R, 1) per-table base offset

    w_r = jnp.right_shift(rel, 7)                # rel // 128 : covering-row index
    l_r = jnp.bitwise_and(rel, 127)              # rel % 128  : lane within that row

    lane_local = lax.broadcasted_iota(jnp.int32, (R, LW), 1)    # hoisted (item 9)
    slot_iota = lax.broadcasted_iota(jnp.int32, (R, lmax), 1)

    w0 = win0_ref[...]                           # (WB, 128)
    w1 = win1_ref[...]                           # (WB, 128)

    def wrow(k):                                 # row k of the combined 2*WB-row window
        return w0[k:k + 1, :] if k < WB else w1[k - WB:k - WB + 1, :]

    # Stage A -- per-bag local window (its c_rows covering 128-lane rows), built with a
    # single static scan over the shared window rows. The per-slot work below never
    # rescans the window (items 2/3): per-bag cost is independent of the tile width R.
    local = jnp.zeros((R, LW), jnp.int32)
    for s in range(2 * WB - c_rows + 1):
        if c_rows == 1:
            chunk = wrow(s)
        else:
            chunk = jnp.concatenate([wrow(s + t) for t in range(c_rows)], axis=1)
        local = jnp.where(w_r == s, chunk, local)

    # Stage B -- statically unrolled slot loop (item 8); exactly one cross-lane reduce
    # per slot (item 1), over the small fixed-size per-bag local window.
    vals = jnp.zeros((R, lmax), jnp.int32)
    for j in range(lmax):
        sel = lane_local == (l_r + j)                                    # (R, LW)
        col = jnp.sum(jnp.where(sel, local, 0), axis=1, keepdims=True)   # (R, 1)
        vals = jnp.where(slot_iota == j, col, vals)

    valid = slot_iota < cnt
    out1_ref[...] = jnp.where(valid, vals, 0) + base     # pad slots hold the base
    out3_ref[...] = valid.astype(jnp.int32)
    # TODO(synk): out3 could be emitted as int8 / packed bitmask if the downstream
    # fused gather accepts it (halves the mask writeback); kept int32 for fidelity.


def dlrm_preproc(indices, offsets, table_len, *, batch_size, max_per_bag,
                 bags_per_tile=128):
    """indices: (N,) int (or a pre-padded (rows,128) int stream), offsets: (T*B+1,) int,
    table_len: (T,) int.  Returns (out1 [T*B,Lmax], out2 [T*B], out3 [T*B,Lmax], out4 [T])
    as int32 in the standard DLRM padded-gather form."""
    T = int(table_len.shape[0])
    B = int(batch_size)
    TB = T * B
    Lmax = int(max_per_bag)
    assert Lmax >= 1
    assert int(offsets.shape[0]) == TB + 1
    R = int(bags_per_tile)
    assert R >= 8 and R % 8 == 0

    offsets = offsets.astype(jnp.int32)
    table_len = table_len.astype(jnp.int32)

    # ---- trivial outputs & per-bag metadata: cheap XLA elementwise ops (hoisted) ----
    counts = offsets[1:TB + 1] - offsets[:TB]                           # (TB,) == out2
    base_tbl = jnp.concatenate(
        [jnp.zeros((1,), jnp.int32), jnp.cumsum(table_len)[:-1]])       # (T,)  == out4
    base_bag = jnp.repeat(base_tbl, B)                                  # (TB,)

    # ---- static tiling geometry ----
    TBp = _round_up(TB, R)
    nt = TBp // R
    C = (Lmax + 254) // 128                    # covering rows in a bag's local window
    WD = (127 + (R - 1) * Lmax) // 128 + C     # worst-case window rows per tile
    WB = _round_up(max(WD - 1, 1), 8)          # rows per auto-pipelined window block

    # ---- index stream as a lane-packed 2-D view ----
    # TODO(synk): callers can pass a pre-padded (rows,128) int32 stream to skip this
    #             one extra full-stream copy (review item 12).
    if getattr(indices, "ndim", 1) == 2:
        assert indices.shape[1] == 128
        idx2d = indices.astype(jnp.int32)
        n_upper = int(idx2d.shape[0]) * 128
    else:
        idx2d = None
        n_upper = int(indices.shape[0])
    rows_needed = max((n_upper + 127) // 128, 1)
    NBp = _round_up(rows_needed, WB) + 2 * WB
    if idx2d is None:
        idx2d = jnp.zeros((NBp * 128,), jnp.int32).at[:n_upper].set(
            indices.astype(jnp.int32)).reshape(NBp, 128)
    elif idx2d.shape[0] < NBp:
        idx2d = jnp.pad(idx2d, ((0, NBp - idx2d.shape[0]), (0, 0)))

    # ---- per-tile window block index (scalar prefetch drives the window BlockSpecs) --
    tile_start = offsets[jnp.arange(nt, dtype=jnp.int32) * R]           # (nt,)
    a0b = ((tile_start // 128) // WB).astype(jnp.int32)                 # block units

    # ---- per-bag meta: [start rel. to window origin, count, base, 0] ----
    win_origin = a0b[jnp.arange(TB, dtype=jnp.int32) // R] * (WB * 128)
    rel_real = offsets[:TB] - win_origin                                # >= 0

    def padcol(x):
        return jnp.zeros((TBp,), jnp.int32).at[:TB].set(x.astype(jnp.int32))

    meta = jnp.stack([padcol(rel_real), padcol(counts), padcol(base_bag),
                      jnp.zeros((TBp,), jnp.int32)], axis=1)            # (TBp, 4)

    kernel = functools.partial(_gather_kernel, lmax=Lmax, c_rows=C)
    win_spec0 = pl.BlockSpec((WB, 128), lambda i, a0: (a0[i], 0))
    win_spec1 = pl.BlockSpec((WB, 128), lambda i, a0: (a0[i] + 1, 0))
    meta_spec = pl.BlockSpec((R, 4), lambda i, a0: (i, 0))
    out_spec = pl.BlockSpec((R, Lmax), lambda i, a0: (i, 0))

    out1_p, out3_p = pl.pallas_call(
        kernel,
        grid_spec=pltpu.PrefetchScalarGridSpec(
            num_scalar_prefetch=1,
            grid=(nt,),
            in_specs=[win_spec0, win_spec1, meta_spec],
            out_specs=(out_spec, out_spec),
        ),
        out_shape=(
            jax.ShapeDtypeStruct((TBp, Lmax), jnp.int32),
            jax.ShapeDtypeStruct((TBp, Lmax), jnp.int32),
        ),
        compiler_params=pltpu.CompilerParams(
            dimension_semantics=("parallel",),     # megacore sharding on v7x
        ),
    )(a0b, idx2d, idx2d, meta)

    return out1_p[:TB], counts, out3_p[:TB], base_tbl


def _ref_preproc(indices, offsets, table_len, batch_size, max_per_bag):
    T = table_len.shape[0]
    TB = T * batch_size
    base = np.concatenate([[0], np.cumsum(table_len)[:-1]]).astype(np.int32)
    o1 = np.zeros((TB, max_per_bag), np.int32)
    o2 = np.zeros((TB,), np.int32)
    o3 = np.zeros((TB, max_per_bag), np.int32)
    for r in range(TB):
        t = r // batch_size
        s, e = int(offsets[r]), int(offsets[r + 1])
        o2[r] = e - s
        for j in range(max_per_bag):
            if j < e - s:
                o1[r, j] = indices[s + j] + base[t]
                o3[r, j] = 1
            else:
                o1[r, j] = base[t]
    return o1, o2, o3, base


if __name__ == "__main__":
    def run_case(key, table_len_list, B, Lmax, counts_np=None):
        table_len_np = np.asarray(table_len_list, np.int64)
        T = len(table_len_list)
        TB = T * B
        if counts_np is None:
            key, kc = jax.random.split(key)
            counts_np = np.asarray(
                jax.random.randint(kc, (TB,), 0, Lmax + 1, dtype=jnp.int32))
        offsets_np = np.zeros((TB + 1,), np.int32)
        offsets_np[1:] = np.cumsum(counts_np)
        idx_parts = []
        for t in range(T):
            n_t = int(offsets_np[(t + 1) * B] - offsets_np[t * B])
            key, ki = jax.random.split(key)
            if n_t:
                idx_parts.append(np.asarray(jax.random.randint(
                    ki, (n_t,), 0, int(table_len_np[t]), dtype=jnp.int32)))
        indices_np = (np.concatenate(idx_parts).astype(np.int32)
                      if idx_parts else np.zeros((0,), np.int32))

        out = dlrm_preproc(jnp.asarray(indices_np), jnp.asarray(offsets_np),
                           jnp.asarray(table_len_np.astype(np.int32)),
                           batch_size=B, max_per_bag=Lmax)
        out = jax.block_until_ready(out)

        r1, r2, r3, r4 = _ref_preproc(indices_np, offsets_np, table_len_np, B, Lmax)
        np.testing.assert_array_equal(np.asarray(out[0]), r1)
        np.testing.assert_array_equal(np.asarray(out[1]), r2)
        np.testing.assert_array_equal(np.asarray(out[2]), r3)
        np.testing.assert_array_equal(np.asarray(out[3]), r4)

    key = jax.random.PRNGKey(0)
    key, k1, k2 = jax.random.split(key, 3)

    # Case 1: tiny DLRM sparse batch (T=3 tables, B=4, Lmax=4), cyclic bag sizes 1..4.
    counts1 = np.array([(r % 4) + 1 for r in range(12)], np.int32)
    run_case(k1, [10, 20, 30], 4, 4, counts_np=counts1)

    # Case 2: two grid tiles (T*B = 192 > 128 bags/tile), non-power-of-two Lmax,
    # random bag sizes including empty bags.
    run_case(k2, [50, 1000], 96, 6)

    print("KERNEL_OK")
</pallas_src>

<mosaic_0001>
module attributes {stable_mosaic.version = 11 : i64} {
  func.func @_gather_kernel(%arg0: i32, %arg1: memref<1xi32, #tpu.memory_space<smem>>, %arg2: memref<8x128xi32, #tpu.memory_space<vmem>>, %arg3: memref<8x128xi32, #tpu.memory_space<vmem>>, %arg4: memref<128x4xi32, #tpu.memory_space<vmem>>, %arg5: memref<128x4xi32, #tpu.memory_space<vmem>>, %arg6: memref<128x4xi32, #tpu.memory_space<vmem>>) attributes {dimension_semantics = [#tpu.dimension_semantics<parallel>], iteration_bounds = array<i64: 1>, scalar_prefetch = 1 : i64, scratch_operands = 0 : i64, tpu.core_type = #tpu.core_type<tc>, window_params = [{transform_indices = @transform_0, window_bounds = array<i64: 8, 128>}, {transform_indices = @transform_1, window_bounds = array<i64: 8, 128>}, {transform_indices = @transform_2, window_bounds = array<i64: 128, 4>}, {transform_indices = @transform_3, window_bounds = array<i64: 128, 4>}, {transform_indices = @transform_4, window_bounds = array<i64: 128, 4>}]} {
    %c0 = arith.constant 0 : index
    %c0_0 = arith.constant 0 : index
    %0 = vector.load %arg4[%c0, %c0_0] : memref<128x4xi32, #tpu.memory_space<vmem>>, vector<128x4xi32>
    %1 = vector.extract_strided_slice %0 {offsets = [0, 0], sizes = [128, 1], strides = [1, 1]} : vector<128x4xi32> to vector<128x1xi32>
    %2 = vector.extract_strided_slice %0 {offsets = [0, 1], sizes = [128, 1], strides = [1, 1]} : vector<128x4xi32> to vector<128x1xi32>
    %3 = vector.extract_strided_slice %0 {offsets = [0, 2], sizes = [128, 1], strides = [1, 1]} : vector<128x4xi32> to vector<128x1xi32>
    %c7_i32 = arith.constant 7 : i32
    %4 = vector.broadcast %c7_i32 : i32 to vector<128x1xi32>
    %5 = arith.shrsi %1, %4 : vector<128x1xi32>
    %c127_i32 = arith.constant 127 : i32
    %6 = vector.broadcast %c127_i32 : i32 to vector<128x1xi32>
    %7 = arith.andi %1, %6 : vector<128x1xi32>
    %8 = tpu.iota {dimensions = array<i32: 1>} : vector<128x256xi32>
    %9 = tpu.iota {dimensions = array<i32: 1>} : vector<128x4xi32>
    %c0_1 = arith.constant 0 : index
    %c0_2 = arith.constant 0 : index
    %10 = vector.load %arg2[%c0_1, %c0_2] : memref<8x128xi32, #tpu.memory_space<vmem>>, vector<8x128xi32>
    %c0_3 = arith.constant 0 : index
    %c0_4 = arith.constant 0 : index
    %11 = vector.load %arg3[%c0_3, %c0_4] : memref<8x128xi32, #tpu.memory_space<vmem>>, vector<8x128xi32>
    %c0_i32 = arith.constant 0 : i32
    %12 = vector.broadcast %c0_i32 : i32 to vector<128x256xi32>
    %13 = vector.extract_strided_slice %10 {offsets = [0, 0], sizes = [1, 128], strides = [1, 1]} : vector<8x128xi32> to vector<1x128xi32>
    %14 = vector.extract_strided_slice %10 {offsets = [1, 0], sizes = [1, 128], strides = [1, 1]} : vector<8x128xi32> to vector<1x128xi32>
    %15 = tpu.concatenate %13, %14 in 1 : vector<1x128xi32>, vector<1x128xi32> -> vector<1x256xi32>
    %c0_i32_5 = arith.constant 0 : i32
    %16 = vector.broadcast %c0_i32_5 : i32 to vector<128x1xi32>
    %17 = arith.cmpi eq, %5, %16 : vector<128x1xi32>
    %18 = vector.shape_cast %17 : vector<128x1xi1> to vector<128x1xi1>
    %19 = vector.broadcast %18 : vector<128x1xi1> to vector<128x256xi1>
    %20 = vector.shape_cast %15 : vector<1x256xi32> to vector<1x256xi32>
    %21 = vector.broadcast %20 : vector<1x256xi32> to vector<128x256xi32>
    %22 = arith.select %19, %21, %12 : vector<128x256xi1>, vector<128x256xi32>
    %23 = vector.extract_strided_slice %10 {offsets = [1, 0], sizes = [1, 128], strides = [1, 1]} : vector<8x128xi32> to vector<1x128xi32>
    %24 = vector.extract_strided_slice %10 {offsets = [2, 0], sizes = [1, 128], strides = [1, 1]} : vector<8x128xi32> to vector<1x128xi32>
    %25 = tpu.concatenate %23, %24 in 1 : vector<1x128xi32>, vector<1x128xi32> -> vector<1x256xi32>
    %c1_i32 = arith.constant 1 : i32
    %26 = vector.broadcast %c1_i32 : i32 to vector<128x1xi32>
    %27 = arith.cmpi eq, %5, %26 : vector<128x1xi32>
    %28 = vector.shape_cast %27 : vector<128x1xi1> to vector<128x1xi1>
    %29 = vector.broadcast %28 : vector<128x1xi1> to vector<128x256xi1>
    %30 = vector.shape_cast %25 : vector<1x256xi32> to vector<1x256xi32>
    %31 = vector.broadcast %30 : vector<1x256xi32> to vector<128x256xi32>
    %32 = arith.select %29, %31, %22 : vector<128x256xi1>, vector<128x256xi32>
    %33 = vector.extract_strided_slice %10 {offsets = [2, 0], sizes = [1, 128], strides = [1, 1]} : vector<8x128xi32> to vector<1x128xi32>
    %34 = vector.extract_strided_slice %10 {offsets = [3, 0], sizes = [1, 128], strides = [1, 1]} : vector<8x128xi32> to vector<1x128xi32>
    %35 = tpu.concatenate %33, %34 in 1 : vector<1x128xi32>, vector<1x128xi32> -> vector<1x256xi32>
    %c2_i32 = arith.constant 2 : i32
    %36 = vector.broadcast %c2_i32 : i32 to vector<128x1xi32>
    %37 = arith.cmpi eq, %5, %36 : vector<128x1xi32>
    %38 = vector.shape_cast %37 : vector<128x1xi1> to vector<128x1xi1>
    %39 = vector.broadcast %38 : vector<128x1xi1> to vector<128x256xi1>
    %40 = vector.shape_cast %35 : vector<1x256xi32> to vector<1x256xi32>
    %41 = vector.broadcast %40 : vector<1x256xi32> to vector<128x256xi32>
    %42 = arith.select %39, %41, %32 : vector<128x256xi1>, vector<128x256xi32>
    %43 = vector.extract_strided_slice %10 {offsets = [3, 0], sizes = [1, 128], strides = [1, 1]} : vector<8x128xi32> to vector<1x128xi32>
    %44 = vector.extract_strided_slice %10 {offsets = [4, 0], sizes = [1, 128], strides = [1, 1]} : vector<8x128xi32> to vector<1x128xi32>
    %45 = tpu.concatenate %43, %44 in 1 : vector<1x128xi32>, vector<1x128xi32> -> vector<1x256xi32>
    %c3_i32 = arith.constant 3 : i32
    %46 = vector.broadcast %c3_i32 : i32 to vector<128x1xi32>
    %47 = arith.cmpi eq, %5, %46 : vector<128x1xi32>
    %48 = vector.shape_cast %47 : vector<128x1xi1> to vector<128x1xi1>
    %49 = vector.broadcast %48 : vector<128x1xi1> to vector<128x256xi1>
    %50 = vector.shape_cast %45 : vector<1x256xi32> to vector<1x256xi32>
    %51 = vector.broadcast %50 : vector<1x256xi32> to vector<128x256xi32>
    %52 = arith.select %49, %51, %42 : vector<128x256xi1>, vector<128x256xi32>
    %53 = vector.extract_strided_slice %10 {offsets = [4, 0], sizes = [1, 128], strides = [1, 1]} : vector<8x128xi32> to vector<1x128xi32>
    %54 = vector.extract_strided_slice %10 {offsets = [5, 0], sizes = [1, 128], strides = [1, 1]} : vector<8x128xi32> to vector<1x128xi32>
    %55 = tpu.concatenate %53, %54 in 1 : vector<1x128xi32>, vector<1x128xi32> -> vector<1x256xi32>
    %c4_i32 = arith.constant 4 : i32
    %56 = vector.broadcast %c4_i32 : i32 to vector<128x1xi32>
    %57 = arith.cmpi eq, %5, %56 : vector<128x1xi32>
    %58 = vector.shape_cast %57 : vector<128x1xi1> to vector<128x1xi1>
    %59 = vector.broadcast %58 : vector<128x1xi1> to vector<128x256xi1>
    %60 = vector.shape_cast %55 : vector<1x256xi32> to vector<1x256xi32>
    %61 = vector.broadcast %60 : vector<1x256xi32> to vector<128x256xi32>
    %62 = arith.select %59, %61, %52 : vector<128x256xi1>, vector<128x256xi32>
    %63 = vector.extract_strided_slice %10 {offsets = [5, 0], sizes = [1, 128], strides = [1, 1]} : vector<8x128xi32> to vector<1x128xi32>
    %64 = vector.extract_strided_slice %10 {offsets = [6, 0], sizes = [1, 128], strides = [1, 1]} : vector<8x128xi32> to vector<1x128xi32>
    %65 = tpu.concatenate %63, %64 in 1 : vector<1x128xi32>, vector<1x128xi32> -> vector<1x256xi32>
    %c5_i32 = arith.constant 5 : i32
    %66 = vector.broadcast %c5_i32 : i32 to vector<128x1xi32>
    %67 = arith.cmpi eq, %5, %66 : vector<128x1xi32>
    %68 = vector.shape_cast %67 : vector<128x1xi1> to vector<128x1xi1>
    %69 = vector.broadcast %68 : vector<128x1xi1> to vector<128x256xi1>
    %70 = vector.shape_cast %65 : vector<1x256xi32> to vector<1x256xi32>
    %71 = vector.broadcast %70 : vector<1x256xi32> to vector<128x256xi32>
    %72 = arith.select %69, %71, %62 : vector<128x256xi1>, vector<128x256xi32>
    %73 = vector.extract_strided_slice %10 {offsets = [6, 0], sizes = [1, 128], strides = [1, 1]} : vector<8x128xi32> to vector<1x128xi32>
    %74 = vector.extract_strided_slice %10 {offsets = [7, 0], sizes = [1, 128], strides = [1, 1]} : vector<8x128xi32> to vector<1x128xi32>
    %75 = tpu.concatenate %73, %74 in 1 : vector<1x128xi32>, vector<1x128xi32> -> vector<1x256xi32>
    %c6_i32 = arith.constant 6 : i32
    %76 = vector.broadcast %c6_i32 : i32 to vector<128x1xi32>
    %77 = arith.cmpi eq, %5, %76 : vector<128x1xi32>
    %78 = vector.shape_cast %77 : vector<128x1xi1> to vector<128x1xi1>
    %79 = vector.broadcast %78 : vector<128x1xi1> to vector<128x256xi1>
    %80 = vector.shape_cast %75 : vector<1x256xi32> to vector<1x256xi32>
    %81 = vector.broadcast %80 : vector<1x256xi32> to vector<128x256xi32>
    %82 = arith.select %79, %81, %72 : vector<128x256xi1>, vector<128x256xi32>
    %83 = vector.extract_strided_slice %10 {offsets = [7, 0], sizes = [1, 128], strides = [1, 1]} : vector<8x128xi32> to vector<1x128xi32>
    %84 = vector.extract_strided_slice %11 {offsets = [0, 0], sizes = [1, 128], strides = [1, 1]} : vector<8x128xi32> to vector<1x128xi32>
    %85 = tpu.concatenate %83, %84 in 1 : vector<1x128xi32>, vector<1x128xi32> -> vector<1x256xi32>
    %c7_i32_6 = arith.constant 7 : i32
    %86 = vector.broadcast %c7_i32_6 : i32 to vector<128x1xi32>
    %87 = arith.cmpi eq, %5, %86 : vector<128x1xi32>
    %88 = vector.shape_cast %87 : vector<128x1xi1> to vector<128x1xi1>
    %89 = vector.broadcast %88 : vector<128x1xi1> to vector<128x256xi1>
    %90 = vector.shape_cast %85 : vector<1x256xi32> to vector<1x256xi32>
    %91 = vector.broadcast %90 : vector<1x256xi32> to vector<128x256xi32>
    %92 = arith.select %89, %91, %82 : vector<128x256xi1>, vector<128x256xi32>
    %93 = vector.extract_strided_slice %11 {offsets = [0, 0], sizes = [1, 128], strides = [1, 1]} : vector<8x128xi32> to vector<1x128xi32>
    %94 = vector.extract_strided_slice %11 {offsets = [1, 0], sizes = [1, 128], strides = [1, 1]} : vector<8x128xi32> to vector<1x128xi32>
    %95 = tpu.concatenate %93, %94 in 1 : vector<1x128xi32>, vector<1x128xi32> -> vector<1x256xi32>
    %c8_i32 = arith.constant 8 : i32
    %96 = vector.broadcast %c8_i32 : i32 to vector<128x1xi32>
    %97 = arith.cmpi eq, %5, %96 : vector<128x1xi32>
    %98 = vector.shape_cast %97 : vector<128x1xi1> to vector<128x1xi1>
    %99 = vector.broadcast %98 : vector<128x1xi1> to vector<128x256xi1>
    %100 = vector.shape_cast %95 : vector<1x256xi32> to vector<1x256xi32>
    %101 = vector.broadcast %100 : vector<1x256xi32> to vector<128x256xi32>
    %102 = arith.select %99, %101, %92 : vector<128x256xi1>, vector<128x256xi32>
    %103 = vector.extract_strided_slice %11 {offsets = [1, 0], sizes = [1, 128], strides = [1, 1]} : vector<8x128xi32> to vector<1x128xi32>
    %104 = vector.extract_strided_slice %11 {offsets = [2, 0], sizes = [1, 128], strides = [1, 1]} : vector<8x128xi32> to vector<1x128xi32>
    %105 = tpu.concatenate %103, %104 in 1 : vector<1x128xi32>, vector<1x128xi32> -> vector<1x256xi32>
    %c9_i32 = arith.constant 9 : i32
    %106 = vector.broadcast %c9_i32 : i32 to vector<128x1xi32>
    %107 = arith.cmpi eq, %5, %106 : vector<128x1xi32>
    %108 = vector.shape_cast %107 : vector<128x1xi1> to vector<128x1xi1>
    %109 = vector.broadcast %108 : vector<128x1xi1> to vector<128x256xi1>
    %110 = vector.shape_cast %105 : vector<1x256xi32> to vector<1x256xi32>
    %111 = vector.broadcast %110 : vector<1x256xi32> to vector<128x256xi32>
    %112 = arith.select %109, %111, %102 : vector<128x256xi1>, vector<128x256xi32>
    %113 = vector.extract_strided_slice %11 {offsets = [2, 0], sizes = [1, 128], strides = [1, 1]} : vector<8x128xi32> to vector<1x128xi32>
    %114 = vector.extract_strided_slice %11 {offsets = [3, 0], sizes = [1, 128], strides = [1, 1]} : vector<8x128xi32> to vector<1x128xi32>
    %115 = tpu.concatenate %113, %114 in 1 : vector<1x128xi32>, vector<1x128xi32> -> vector<1x256xi32>
    %c10_i32 = arith.constant 10 : i32
    %116 = vector.broadcast %c10_i32 : i32 to vector<128x1xi32>
    %117 = arith.cmpi eq, %5, %116 : vector<128x1xi32>
    %118 = vector.shape_cast %117 : vector<128x1xi1> to vector<128x1xi1>
    %119 = vector.broadcast %118 : vector<128x1xi1> to vector<128x256xi1>
    %120 = vector.shape_cast %115 : vector<1x256xi32> to vector<1x256xi32>
    %121 = vector.broadcast %120 : vector<1x256xi32> to vector<128x256xi32>
    %122 = arith.select %119, %121, %112 : vector<128x256xi1>, vector<128x256xi32>
    %123 = vector.extract_strided_slice %11 {offsets = [3, 0], sizes = [1, 128], strides = [1, 1]} : vector<8x128xi32> to vector<1x128xi32>
    %124 = vector.extract_strided_slice %11 {offsets = [4, 0], sizes = [1, 128], strides = [1, 1]} : vector<8x128xi32> to vector<1x128xi32>
    %125 = tpu.concatenate %123, %124 in 1 : vector<1x128xi32>, vector<1x128xi32> -> vector<1x256xi32>
    %c11_i32 = arith.constant 11 : i32
    %126 = vector.broadcast %c11_i32 : i32 to vector<128x1xi32>
    %127 = arith.cmpi eq, %5, %126 : vector<128x1xi32>
    %128 = vector.shape_cast %127 : vector<128x1xi1> to vector<128x1xi1>
    %129 = vector.broadcast %128 : vector<128x1xi1> to vector<128x256xi1>
    %130 = vector.shape_cast %125 : vector<1x256xi32> to vector<1x256xi32>
    %131 = vector.broadcast %130 : vector<1x256xi32> to vector<128x256xi32>
    %132 = arith.select %129, %131, %122 : vector<128x256xi1>, vector<128x256xi32>
    %133 = vector.extract_strided_slice %11 {offsets = [4, 0], sizes = [1, 128], strides = [1, 1]} : vector<8x128xi32> to vector<1x128xi32>
    %134 = vector.extract_strided_slice %11 {offsets = [5, 0], sizes = [1, 128], strides = [1, 1]} : vector<8x128xi32> to vector<1x128xi32>
    %135 = tpu.concatenate %133, %134 in 1 : vector<1x128xi32>, vector<1x128xi32> -> vector<1x256xi32>
    %c12_i32 = arith.constant 12 : i32
    %136 = vector.broadcast %c12_i32 : i32 to vector<128x1xi32>
    %137 = arith.cmpi eq, %5, %136 : vector<128x1xi32>
    %138 = vector.shape_cast %137 : vector<128x1xi1> to vector<128x1xi1>
    %139 = vector.broadcast %138 : vector<128x1xi1> to vector<128x256xi1>
    %140 = vector.shape_cast %135 : vector<1x256xi32> to vector<1x256xi32>
    %141 = vector.broadcast %140 : vector<1x256xi32> to vector<128x256xi32>
    %142 = arith.select %139, %141, %132 : vector<128x256xi1>, vector<128x256xi32>
    %143 = vector.extract_strided_slice %11 {offsets = [5, 0], sizes = [1, 128], strides = [1, 1]} : vector<8x128xi32> to vector<1x128xi32>
    %144 = vector.extract_strided_slice %11 {offsets = [6, 0], sizes = [1, 128], strides = [1, 1]} : vector<8x128xi32> to vector<1x128xi32>
    %145 = tpu.concatenate %143, %144 in 1 : vector<1x128xi32>, vector<1x128xi32> -> vector<1x256xi32>
    %c13_i32 = arith.constant 13 : i32
    %146 = vector.broadcast %c13_i32 : i32 to vector<128x1xi32>
    %147 = arith.cmpi eq, %5, %146 : vector<128x1xi32>
    %148 = vector.shape_cast %147 : vector<128x1xi1> to vector<128x1xi1>
    %149 = vector.broadcast %148 : vector<128x1xi1> to vector<128x256xi1>
    %150 = vector.shape_cast %145 : vector<1x256xi32> to vector<1x256xi32>
    %151 = vector.broadcast %150 : vector<1x256xi32> to vector<128x256xi32>
    %152 = arith.select %149, %151, %142 : vector<128x256xi1>, vector<128x256xi32>
    %153 = vector.extract_strided_slice %11 {offsets = [6, 0], sizes = [1, 128], strides = [1, 1]} : vector<8x128xi32> to vector<1x128xi32>
    %154 = vector.extract_strided_slice %11 {offsets = [7, 0], sizes = [1, 128], strides = [1, 1]} : vector<8x128xi32> to vector<1x128xi32>
    %155 = tpu.concatenate %153, %154 in 1 : vector<1x128xi32>, vector<1x128xi32> -> vector<1x256xi32>
    %c14_i32 = arith.constant 14 : i32
    %156 = vector.broadcast %c14_i32 : i32 to vector<128x1xi32>
    %157 = arith.cmpi eq, %5, %156 : vector<128x1xi32>
    %158 = vector.shape_cast %157 : vector<128x1xi1> to vector<128x1xi1>
    %159 = vector.broadcast %158 : vector<128x1xi1> to vector<128x256xi1>
    %160 = vector.shape_cast %155 : vector<1x256xi32> to vector<1x256xi32>
    %161 = vector.broadcast %160 : vector<1x256xi32> to vector<128x256xi32>
    %162 = arith.select %159, %161, %152 : vector<128x256xi1>, vector<128x256xi32>
    %c0_i32_7 = arith.constant 0 : i32
    %163 = vector.broadcast %c0_i32_7 : i32 to vector<128x4xi32>
    %c0_i32_8 = arith.constant 0 : i32
    %164 = vector.broadcast %c0_i32_8 : i32 to vector<128x1xi32>
    %165 = arith.addi %7, %164 : vector<128x1xi32>
    %166 = vector.broadcast %165 : vector<128x1xi32> to vector<128x256xi32>
    %167 = arith.cmpi eq, %8, %166 : vector<128x256xi32>
    %c0_i32_9 = arith.constant 0 : i32
    %168 = vector.broadcast %c0_i32_9 : i32 to vector<128x256xi32>
    %169 = arith.select %167, %162, %168 : vector<128x256xi1>, vector<128x256xi32>
    %cst = arith.constant dense<0> : vector<128xi32>
    %170 = vector.multi_reduction <add>, %169, %cst [1] : vector<128x256xi32> to vector<128xi32>
    %171 = vector.shape_cast %170 : vector<128xi32> to vector<128x1xi32>
    %c0_i32_10 = arith.constant 0 : i32
    %172 = vector.broadcast %c0_i32_10 : i32 to vector<128x4xi32>
    %173 = arith.cmpi eq, %9, %172 : vector<128x4xi32>
    %174 = vector.shape_cast %171 : vector<128x1xi32> to vector<128x1xi32>
    %175 = vector.broadcast %174 : vector<128x1xi32> to vector<128x4xi32>
    %176 = arith.select %173, %175, %163 : vector<128x4xi1>, vector<128x4xi32>
    %c1_i32_11 = arith.constant 1 : i32
    %177 = vector.broadcast %c1_i32_11 : i32 to vector<128x1xi32>
    %178 = arith.addi %7, %177 : vector<128x1xi32>
    %179 = vector.broadcast %178 : vector<128x1xi32> to vector<128x256xi32>
    %180 = arith.cmpi eq, %8, %179 : vector<128x256xi32>
    %c0_i32_12 = arith.constant 0 : i32
    %181 = vector.broadcast %c0_i32_12 : i32 to vector<128x256xi32>
    %182 = arith.select %180, %162, %181 : vector<128x256xi1>, vector<128x256xi32>
    %cst_13 = arith.constant dense<0> : vector<128xi32>
    %183 = vector.multi_reduction <add>, %182, %cst_13 [1] : vector<128x256xi32> to vector<128xi32>
    %184 = vector.shape_cast %183 : vector<128xi32> to vector<128x1xi32>
    %c1_i32_14 = arith.constant 1 : i32
    %185 = vector.broadcast %c1_i32_14 : i32 to vector<128x4xi32>
    %186 = arith.cmpi eq, %9, %185 : vector<128x4xi32>
    %187 = vector.shape_cast %184 : vector<128x1xi32> to vector<128x1xi32>
    %188 = vector.broadcast %187 : vector<128x1xi32> to vector<128x4xi32>
    %189 = arith.select %186, %188, %176 : vector<128x4xi1>, vector<128x4xi32>
    %c2_i32_15 = arith.constant 2 : i32
    %190 = vector.broadcast %c2_i32_15 : i32 to vector<128x1xi32>
    %191 = arith.addi %7, %190 : vector<128x1xi32>
    %192 = vector.broadcast %191 : vector<128x1xi32> to vector<128x256xi32>
    %193 = arith.cmpi eq, %8, %192 : vector<128x256xi32>
    %c0_i32_16 = arith.constant 0 : i32
    %194 = vector.broadcast %c0_i32_16 : i32 to vector<128x256xi32>
    %195 = arith.select %193, %162, %194 : vector<128x256xi1>, vector<128x256xi32>
    %cst_17 = arith.constant dense<0> : vector<128xi32>
    %196 = vector.multi_reduction <add>, %195, %cst_17 [1] : vector<128x256xi32> to vector<128xi32>
    %197 = vector.shape_cast %196 : vector<128xi32> to vector<128x1xi32>
    %c2_i32_18 = arith.constant 2 : i32
    %198 = vector.broadcast %c2_i32_18 : i32 to vector<128x4xi32>
    %199 = arith.cmpi eq, %9, %198 : vector<128x4xi32>
    %200 = vector.shape_cast %197 : vector<128x1xi32> to vector<128x1xi32>
    %201 = vector.broadcast %200 : vector<128x1xi32> to vector<128x4xi32>
    %202 = arith.select %199, %201, %189 : vector<128x4xi1>, vector<128x4xi32>
    %c3_i32_19 = arith.constant 3 : i32
    %203 = vector.broadcast %c3_i32_19 : i32 to vector<128x1xi32>
    %204 = arith.addi %7, %203 : vector<128x1xi32>
    %205 = vector.broadcast %204 : vector<128x1xi32> to vector<128x256xi32>
    %206 = arith.cmpi eq, %8, %205 : vector<128x256xi32>
    %c0_i32_20 = arith.constant 0 : i32
    %207 = vector.broadcast %c0_i32_20 : i32 to vector<128x256xi32>
    %208 = arith.select %206, %162, %207 : vector<128x256xi1>, vector<128x256xi32>
    %cst_21 = arith.constant dense<0> : vector<128xi32>
    %209 = vector.multi_reduction <add>, %208, %cst_21 [1] : vector<128x256xi32> to vector<128xi32>
    %210 = vector.shape_cast %209 : vector<128xi32> to vector<128x1xi32>
    %c3_i32_22 = arith.constant 3 : i32
    %211 = vector.broadcast %c3_i32_22 : i32 to vector<128x4xi32>
    %212 = arith.cmpi eq, %9, %211 : vector<128x4xi32>
    %213 = vector.shape_cast %210 : vector<128x1xi32> to vector<128x1xi32>
    %214 = vector.broadcast %213 : vector<128x1xi32> to vector<128x4xi32>
    %215 = arith.select %212, %214, %202 : vector<128x4xi1>, vector<128x4xi32>
    %216 = vector.broadcast %2 : vector<128x1xi32> to vector<128x4xi32>
    %217 = arith.cmpi slt, %9, %216 : vector<128x4xi32>
    %c0_i32_23 = arith.constant 0 : i32
    %218 = vector.broadcast %c0_i32_23 : i32 to vector<128x4xi32>
    %219 = arith.select %217, %215, %218 : vector<128x4xi1>, vector<128x4xi32>
    %220 = vector.broadcast %3 : vector<128x1xi32> to vector<128x4xi32>
    %221 = arith.addi %219, %220 : vector<128x4xi32>
    %c0_24 = arith.constant 0 : index
    %c0_25 = arith.constant 0 : index
    %222 = vector.load %arg5[%c0_24, %c0_25] : memref<128x4xi32, #tpu.memory_space<vmem>>, vector<128x4xi32>
    tpu.vector_store %arg5[%c0_24, %c0_25], %221 {strides = array<i32>} : memref<128x4xi32, #tpu.memory_space<vmem>>, vector<128x4xi32>,
    %223 = arith.extui %217 : vector<128x4xi1> to vector<128x4xi32>
    %c0_26 = arith.constant 0 : index
    %c0_27 = arith.constant 0 : index
    %224 = vector.load %arg6[%c0_26, %c0_27] : memref<128x4xi32, #tpu.memory_space<vmem>>, vector<128x4xi32>
    tpu.vector_store %arg6[%c0_26, %c0_27], %223 {strides = array<i32>} : memref<128x4xi32, #tpu.memory_space<vmem>>, vector<128x4xi32>,
    return
  }
  func.func @transform_0(%arg0: i32, %arg1: memref<1xi32, #tpu.memory_space<smem>>) -> (i32, i32) {
    %0 = arith.index_cast %arg0 : i32 to index
    %1 = memref.load %arg1[%0] : memref<1xi32, #tpu.memory_space<smem>>
    %c0_i32 = arith.constant 0 : i32
    %c0_i32_0 = arith.constant 0 : i32
    return %1, %c0_i32 : i32, i32
  }
  func.func @transform_1(%arg0: i32, %arg1: memref<1xi32, #tpu.memory_space<smem>>) -> (i32, i32) {
    %0 = arith.index_cast %arg0 : i32 to index
    %1 = memref.load %arg1[%0] : memref<1xi32, #tpu.memory_space<smem>>
    %c1_i32 = arith.constant 1 : i32
    %2 = arith.addi %1, %c1_i32 : i32
    %c0_i32 = arith.constant 0 : i32
    %c0_i32_0 = arith.constant 0 : i32
    return %2, %c0_i32 : i32, i32
  }
  func.func @transform_2(%arg0: i32, %arg1: memref<1xi32, #tpu.memory_space<smem>>) -> (i32, i32) {
    %c0_i32 = arith.constant 0 : i32
    %c0_i32_0 = arith.constant 0 : i32
    return %arg0, %c0_i32 : i32, i32
  }
  func.func @transform_3(%arg0: i32, %arg1: memref<1xi32, #tpu.memory_space<smem>>) -> (i32, i32) {
    %c0_i32 = arith.constant 0 : i32
    %c0_i32_0 = arith.constant 0 : i32
    return %arg0, %c0_i32 : i32, i32
  }
  func.func @transform_4(%arg0: i32, %arg1: memref<1xi32, #tpu.memory_space<smem>>) -> (i32, i32) {
    %c0_i32 = arith.constant 0 : i32
    %c0_i32_0 = arith.constant 0 : i32
    return %arg0, %c0_i32 : i32, i32
  }
}

</mosaic_0001>

<llo_original>
// kernel: tpu_custom_call.1
$region0: #{tpu_custom_call.1}
  #allocation0 [shape = 'u32[]', space=smem, size = 0x4, offset = 0x4, fixed_abs, tag = 'smem constant byte address 0x4 - core index']
  #allocation1 [shape = 'u32[72,128]{1,0:T(1,128)}', space=vmem, size = 0x9000, scoped, tag = 'internal scratch']
  #allocation2 [shape = 's32[1]{0}', space=sflag, size = 0x4, scoped, tag = 'scoped memory for tpu_custom_call.1']
  #allocation3 [shape = 's32[1]{0:T(128)S(6)}', space=smem, size = 0x200, scoped, tag = 'prefetched SMEM operand 0']
  %s0 = inlined_call_operand.<no memory space> [shape: s32[1], index: 0, kind: input, shape index: {}]
  %s1 = inlined_call_operand.vmem [shape: s32[24,128], index: 1, kind: input, shape index: {}]
  %s2 = inlined_call_operand.vmem [shape: s32[24,128], index: 2, kind: input, shape index: {}]
  %s3 = inlined_call_operand.vmem [shape: s32[128,4], index: 3, kind: input, shape index: {}]
  %s4 = inlined_call_operand.vmem [shape: s32[128,4], index: 4, kind: output, shape index: {0}]
  %s5 = inlined_call_operand.vmem [shape: s32[128,4], index: 5, kind: output, shape index: {1}]
  %6 = xla_tuple %s4, %s5
  %s7 = sld [smem:[#allocation0]]
  $region30: #{tpu_custom_call.1} parent=0
    _
  %s9 = ssub.s32 1, %s7
  %s10 = scalar_select 0, %s9, %s7
  %11 = sst [smem:[#allocation3]] %s0
  // Predicated region
  $region2: #{tpu_custom_call.1} parent=0 // pred_check
    _
  $region3: #{tpu_custom_call.1} parent=0 // pred_check_branch
    %13 = sbr.rel (0) target = $region5
  $region4: #{tpu_custom_call.1} parent=0 // pred_region
    %s14 = sld [smem:[#allocation3]]
    %p15 = scmp.lt.s32.totalorder %s14, 2
    %s16 = scalar_select %p15, %s14, 2
    %s17 = smul.addr %s16, 8
    %s18 = scalar_lea.vmem %s1, %s17
    %s19 = sld [smem:[#allocation3]]
  $region5: #{tpu_custom_call.1} parent=0 // pred_fallthru
    _
  // Predicated region
  $region6: #{tpu_custom_call.1} parent=0 // pred_check
    _
  $region7: #{tpu_custom_call.1} parent=0 // pred_check_branch
    %21 = sbr.rel (0) target = $region9
  $region8: #{tpu_custom_call.1} parent=0 // pred_region
    %s22 = sld [smem:[#allocation3]]
    %s23 = sadd.s32 %s22, 1
    %p24 = scmp.lt.s32.totalorder %s23, 2
    %s25 = scalar_select %p24, %s23, 2
    %s26 = smul.addr %s25, 8
    %s27 = scalar_lea.vmem %s2, %s26
    %s28 = sld [smem:[#allocation3]]
    %s29 = sadd.s32 %s28, 1
  $region9: #{tpu_custom_call.1} parent=0 // pred_fallthru
    _
  // Predicated region
  $region10: #{tpu_custom_call.1} parent=0 // pred_check
    _
  $region11: #{tpu_custom_call.1} parent=0 // pred_check_branch
    %31 = sbr.rel (0) target = $region13
  $region12: #{tpu_custom_call.1} parent=0 // pred_region
    _
  $region13: #{tpu_custom_call.1} parent=0 // pred_fallthru
    _
  %s32 = sld [smem:[#allocation3]]
  %p33 = scmp.lt.s32.totalorder %s32, 2
  %s34 = scalar_select %p33, %s32, 2
  %s35 = smul.addr %s34, 8
  %s36 = scalar_lea.vmem %s1, %s35
  %s37 = sld [smem:[#allocation3]]
  %s38 = sadd.s32 %s37, 1
  %p39 = scmp.lt.s32.totalorder %s38, 2
  %s40 = scalar_select %p39, %s38, 2
  %s41 = smul.addr %s40, 8
  %s42 = scalar_lea.vmem %s2, %s41
  %s43 = sld [smem:[#allocation3]]
  %p44 = scmp.lt.s32.totalorder %s43, 2
  %s45 = scalar_select %p44, %s43, 2
  %s46 = smul.addr %s45, 8
  %s47 = scalar_lea.vmem %s1, %s46
  %s48 = sld [smem:[#allocation3]]
  %s49 = sld [smem:[#allocation3]]
  %s50 = sadd.s32 %s49, 1
  %p51 = scmp.lt.s32.totalorder %s50, 2
  %s52 = scalar_select %p51, %s50, 2
  %s53 = smul.addr %s52, 8
  %s54 = scalar_lea.vmem %s2, %s53
  %s55 = sld [smem:[#allocation3]]
  %s56 = sadd.s32 %s55, 1
  %v57 = vld [vmem:[%s3] sm:$0xff]
  %v58 = vld [vmem:[%s3 + $0x8] sm:$0xff]
  %v59 = vld [vmem:[%s3 + $0x10] sm:$0xff]
  %v60 = vld [vmem:[%s3 + $0x18] sm:$0xff]
  %v61 = vld [vmem:[%s3 + $0x20] sm:$0xff]
  %v62 = vld [vmem:[%s3 + $0x28] sm:$0xff]
  %v63 = vld [vmem:[%s3 + $0x30] sm:$0xff]
  %v64 = vld [vmem:[%s3 + $0x38] sm:$0xff]
  %v65 = vld [vmem:[%s3 + $0x40] sm:$0xff]
  %v66 = vld [vmem:[%s3 + $0x48] sm:$0xff]
  %v67 = vld [vmem:[%s3 + $0x50] sm:$0xff]
  %v68 = vld [vmem:[%s3 + $0x58] sm:$0xff]
  %v69 = vld [vmem:[%s3 + $0x60] sm:$0xff]
  %v70 = vld [vmem:[%s3 + $0x68] sm:$0xff]
  %v71 = vld [vmem:[%s3 + $0x70] sm:$0xff]
  %v72 = vld [vmem:[%s3 + $0x78] sm:$0xff]
  %v73 = vshra.s32 %v57, 7
  %v74 = vshra.s32 %v58, 7
  %v75 = vshra.s32 %v59, 7
  %v76 = vshra.s32 %v60, 7
  %v77 = vshra.s32 %v61, 7
  %v78 = vshra.s32 %v62, 7
  %v79 = vshra.s32 %v63, 7
  %v80 = vshra.s32 %v64, 7
  %v81 = vshra.s32 %v65, 7
  %v82 = vshra.s32 %v66, 7
  %v83 = vshra.s32 %v67, 7
  %v84 = vshra.s32 %v68, 7
  %v85 = vshra.s32 %v69, 7
  %v86 = vshra.s32 %v70, 7
  %v87 = vshra.s32 %v71, 7
  %v88 = vshra.s32 %v72, 7
  %v89 = vand.u32 %v57, 127
  %v90 = vand.u32 %v58, 127
  %v91 = vand.u32 %v59, 127
  %v92 = vand.u32 %v60, 127
  %v93 = vand.u32 %v61, 127
  %v94 = vand.u32 %v62, 127
  %v95 = vand.u32 %v63, 127
  %v96 = vand.u32 %v64, 127
  %v97 = vand.u32 %v65, 127
  %v98 = vand.u32 %v66, 127
  %v99 = vand.u32 %v67, 127
  %v100 = vand.u32 %v68, 127
  %v101 = vand.u32 %v69, 127
  %v102 = vand.u32 %v70, 127
  %v103 = vand.u32 %v71, 127
  %v104 = vand.u32 %v72, 127
  %v105 = vlaneseq
  %v106 = vand.u32 %v105, 127
  %v107 = vadd.s32 %v106, 128
  %v108 = vld [vmem:[%s47] sm:$0xff]
  %v109 = vld [vmem:[%s54] sm:$0xff]
  %v110 = vrot.slane %v108, 1
  %vm111 = vcmp.eq.s32.totalorder %v73, 0
  %vm112 = vcmp.eq.s32.totalorder %v74, 0
  %vm113 = vcmp.eq.s32.totalorder %v75, 0
  %vm114 = vcmp.eq.s32.totalorder %v76, 0
  %vm115 = vcmp.eq.s32.totalorder %v77, 0
  %vm116 = vcmp.eq.s32.totalorder %v78, 0
  %vm117 = vcmp.eq.s32.totalorder %v79, 0
  %vm118 = vcmp.eq.s32.totalorder %v80, 0
  %vm119 = vcmp.eq.s32.totalorder %v81, 0
  %vm120 = vcmp.eq.s32.totalorder %v82, 0
  %vm121 = vcmp.eq.s32.totalorder %v83, 0
  %vm122 = vcmp.eq.s32.totalorder %v84, 0
  %vm123 = vcmp.eq.s32.totalorder %v85, 0
  %vm124 = vcmp.eq.s32.totalorder %v86, 0
  %vm125 = vcmp.eq.s32.totalorder %v87, 0
  %vm126 = vcmp.eq.s32.totalorder %v88, 0
  %v127 = vsel %vm111, 1, 0
  %v128 = vsel %vm112, 1, 0
  %v129 = vsel %vm113, 1, 0
  %v130 = vsel %vm114, 1, 0
  %v131 = vsel %vm115, 1, 0
  %v132 = vsel %vm116, 1, 0
  %v133 = vsel %vm117, 1, 0
  %v134 = vsel %vm118, 1, 0
  %v135 = vsel %vm119, 1, 0
  %v136 = vsel %vm120, 1, 0
  %v137 = vsel %vm121, 1, 0
  %v138 = vsel %vm122, 1, 0
  %v139 = vsel %vm123, 1, 0
  %v140 = vsel %vm124, 1, 0
  %v141 = vsel %vm125, 1, 0
  %v142 = vsel %vm126, 1, 0
  %143 = vset.pattern.permute.xlu0 0
  %144 = vperm.xlu0 %143, %v127
  %v145 = vpop.permute.xlu0 %144
  %146 = vset.pattern.permute.xlu0 0
  %147 = vperm.xlu0 %146, %v128
  %v148 = vpop.permute.xlu0 %147
  %149 = vset.pattern.permute.xlu0 0
  %150 = vperm.xlu0 %149, %v129
  %v151 = vpop.permute.xlu0 %150
  %152 = vset.pattern.permute.xlu0 0
  %153 = vperm.xlu0 %152, %v130
  %v154 = vpop.permute.xlu0 %153
  %155 = vset.pattern.permute.xlu0 0
  %156 = vperm.xlu0 %155, %v131
  %v157 = vpop.permute.xlu0 %156
  %158 = vset.pattern.permute.xlu0 0
  %159 = vperm.xlu0 %158, %v132
  %v160 = vpop.permute.xlu0 %159
  %161 = vset.pattern.permute.xlu0 0
  %162 = vperm.xlu0 %161, %v133
  %v163 = vpop.permute.xlu0 %162
  %164 = vset.pattern.permute.xlu0 0
  %165 = vperm.xlu0 %164, %v134
  %v166 = vpop.permute.xlu0 %165
  %167 = vset.pattern.permute.xlu0 0
  %168 = vperm.xlu0 %167, %v135
  %v169 = vpop.permute.xlu0 %168
  %170 = vset.pattern.permute.xlu0 0
  %171 = vperm.xlu0 %170, %v136
  %v172 = vpop.permute.xlu0 %171
  %173 = vset.pattern.permute.xlu0 0
  %174 = vperm.xlu0 %173, %v137
  %v175 = vpop.permute.xlu0 %174
  %176 = vset.pattern.permute.xlu0 0
  %177 = vperm.xlu0 %176, %v138
  %v178 = vpop.permute.xlu0 %177
  %179 = vset.pattern.permute.xlu0 0
  %180 = vperm.xlu0 %179, %v139
  %v181 = vpop.permute.xlu0 %180
  %182 = vset.pattern.permute.xlu0 0
  %183 = vperm.xlu0 %182, %v140
  %v184 = vpop.permute.xlu0 %183
  %185 = vset.pattern.permute.xlu0 0
  %186 = vperm.xlu0 %185, %v141
  %v187 = vpop.permute.xlu0 %186
  %188 = vset.pattern.permute.xlu0 0
  %189 = vperm.xlu0 %188, %v142
  %v190 = vpop.permute.xlu0 %189
  %vm191 = vcmp.eq.s32.totalorder %v145, 1
  %vm192 = vcmp.eq.s32.totalorder %v148, 1
  %vm193 = vcmp.eq.s32.totalorder %v151, 1
  %vm194 = vcmp.eq.s32.totalorder %v154, 1
  %vm195 = vcmp.eq.s32.totalorder %v157, 1
  %vm196 = vcmp.eq.s32.totalorder %v160, 1
  %vm197 = vcmp.eq.s32.totalorder %v163, 1
  %vm198 = vcmp.eq.s32.totalorder %v166, 1
  %vm199 = vcmp.eq.s32.totalorder %v169, 1
  %vm200 = vcmp.eq.s32.totalorder %v172, 1
  %vm201 = vcmp.eq.s32.totalorder %v175, 1
  %vm202 = vcmp.eq.s32.totalorder %v178, 1
  %vm203 = vcmp.eq.s32.totalorder %v181, 1
  %vm204 = vcmp.eq.s32.totalorder %v184, 1
  %vm205 = vcmp.eq.s32.totalorder %v187, 1
  %vm206 = vcmp.eq.s32.totalorder %v190, 1
  %v207 = vperm.slane %v108, 0
  %v208 = vperm.slane %v110, 0
  %v209 = vsel %vm191, %v207, 0
  %v210 = vsel %vm191, %v208, 0
  %v211 = vsel %vm192, %v207, 0
  %v212 = vsel %vm192, %v208, 0
  %v213 = vsel %vm193, %v207, 0
  %v214 = vsel %vm193, %v208, 0
  %v215 = vsel %vm194, %v207, 0
  %v216 = vsel %vm194, %v208, 0
  %v217 = vsel %vm195, %v207, 0
  %v218 = vsel %vm195, %v208, 0
  %v219 = vsel %vm196, %v207, 0
  %v220 = vsel %vm196, %v208, 0
  %v221 = vsel %vm197, %v207, 0
  %v222 = vsel %vm197, %v208, 0
  %v223 = vsel %vm198, %v207, 0
  %v224 = vsel %vm198, %v208, 0
  %v225 = vsel %vm199, %v207, 0
  %v226 = vsel %vm199, %v208, 0
  %v227 = vsel %vm200, %v207, 0
  %v228 = vsel %vm200, %v208, 0
  %v229 = vsel %vm201, %v207, 0
  %v230 = vsel %vm201, %v208, 0
  %v231 = vsel %vm202, %v207, 0
  %v232 = vsel %vm202, %v208, 0
  %v233 = vsel %vm203, %v207, 0
  %v234 = vsel %vm203, %v208, 0
  %v235 = vsel %vm204, %v207, 0
  %v236 = vsel %vm204, %v208, 0
  %v237 = vsel %vm205, %v207, 0
  %v238 = vsel %vm205, %v208, 0
  %v239 = vsel %vm206, %v207, 0
  %v240 = vsel %vm206, %v208, 0
  %vm241 = vcmp.eq.s32.totalorder %v73, 1
  %vm242 = vcmp.eq.s32.totalorder %v74, 1
  %vm243 = vcmp.eq.s32.totalorder %v75, 1
  %vm244 = vcmp.eq.s32.totalorder %v76, 1
  %vm245 = vcmp.eq.s32.totalorder %v77, 1
  %vm246 = vcmp.eq.s32.totalorder %v78, 1
  %vm247 = vcmp.eq.s32.totalorder %v79, 1
  %vm248 = vcmp.eq.s32.totalorder %v80, 1
  %vm249 = vcmp.eq.s32.totalorder %v81, 1
  %vm250 = vcmp.eq.s32.totalorder %v82, 1
  %vm251 = vcmp.eq.s32.totalorder %v83, 1
  %vm252 = vcmp.eq.s32.totalorder %v84, 1
  %vm253 = vcmp.eq.s32.totalorder %v85, 1
  %vm254 = vcmp.eq.s32.totalorder %v86, 1
  %vm255 = vcmp.eq.s32.totalorder %v87, 1
  %vm256 = vcmp.eq.s32.totalorder %v88, 1
  %v257 = vsel %vm241, 1, 0
  %v258 = vsel %vm242, 1, 0
  %v259 = vsel %vm243, 1, 0
  %v260 = vsel %vm244, 1, 0
  %v261 = vsel %vm245, 1, 0
  %v262 = vsel %vm246, 1, 0
  %v263 = vsel %vm247, 1, 0
  %v264 = vsel %vm248, 1, 0
  %v265 = vsel %vm249, 1, 0
  %v266 = vsel %vm250, 1, 0
  %v267 = vsel %vm251, 1, 0
  %v268 = vsel %vm252, 1, 0
  %v269 = vsel %vm253, 1, 0
  %v270 = vsel %vm254, 1, 0
  %v271 = vsel %vm255, 1, 0
  %v272 = vsel %vm256, 1, 0
  %273 = vset.pattern.permute.xlu0 0
  %274 = vperm.xlu0 %273, %v257
  %v275 = vpop.permute.xlu0 %274
  %276 = vset.pattern.permute.xlu0 0
  %277 = vperm.xlu0 %276, %v258
  %v278 = vpop.permute.xlu0 %277
  %279 = vset.pattern.permute.xlu0 0
  %280 = vperm.xlu0 %279, %v259
  %v281 = vpop.permute.xlu0 %280
  %282 = vset.pattern.permute.xlu0 0
  %283 = vperm.xlu0 %282, %v260
  %v284 = vpop.permute.xlu0 %283
  %285 = vset.pattern.permute.xlu0 0
  %286 = vperm.xlu0 %285, %v261
  %v287 = vpop.permute.xlu0 %286
  %288 = vset.pattern.permute.xlu0 0
  %289 = vperm.xlu0 %288, %v262
  %v290 = vpop.permute.xlu0 %289
  %291 = vset.pattern.permute.xlu0 0
  %292 = vperm.xlu0 %291, %v263
  %v293 = vpop.permute.xlu0 %292
  %294 = vset.pattern.permute.xlu0 0
  %295 = vperm.xlu0 %294, %v264
  %v296 = vpop.permute.xlu0 %295
  %297 = vset.pattern.permute.xlu0 0
  %298 = vperm.xlu0 %297, %v265
  %v299 = vpop.permute.xlu0 %298
  %300 = vset.pattern.permute.xlu0 0
  %301 = vperm.xlu0 %300, %v266
  %v302 = vpop.permute.xlu0 %301
  %303 = vset.pattern.permute.xlu0 0
  %304 = vperm.xlu0 %303, %v267
  %v305 = vpop.permute.xlu0 %304
  %306 = vset.pattern.permute.xlu0 0
  %307 = vperm.xlu0 %306, %v268
  %v308 = vpop.permute.xlu0 %307
  %309 = vset.pattern.permute.xlu0 0
  %310 = vperm.xlu0 %309, %v269
  %v311 = vpop.permute.xlu0 %310
  %312 = vset.pattern.permute.xlu0 0
  %313 = vperm.xlu0 %312, %v270
  %v314 = vpop.permute.xlu0 %313
  %315 = vset.pattern.permute.xlu0 0
  %316 = vperm.xlu0 %315, %v271
  %v317 = vpop.permute.xlu0 %316
  %318 = vset.pattern.permute.xlu0 0
  %319 = vperm.xlu0 %318, %v272
  %v320 = vpop.permute.xlu0 %319
  %vm321 = vcmp.eq.s32.totalorder %v275, 1
  %vm322 = vcmp.eq.s32.totalorder %v278, 1
  %vm323 = vcmp.eq.s32.totalorder %v281, 1
  %vm324 = vcmp.eq.s32.totalorder %v284, 1
  %vm325 = vcmp.eq.s32.totalorder %v287, 1
  %vm326 = vcmp.eq.s32.totalorder %v290, 1
  %vm327 = vcmp.eq.s32.totalorder %v293, 1
  %vm328 = vcmp.eq.s32.totalorder %v296, 1
  %vm329 = vcmp.eq.s32.totalorder %v299, 1
  %vm330 = vcmp.eq.s32.totalorder %v302, 1
  %vm331 = vcmp.eq.s32.totalorder %v305, 1
  %vm332 = vcmp.eq.s32.totalorder %v308, 1
  %vm333 = vcmp.eq.s32.totalorder %v311, 1
  %vm334 = vcmp.eq.s32.totalorder %v314, 1
  %vm335 = vcmp.eq.s32.totalorder %v317, 1
  %vm336 = vcmp.eq.s32.totalorder %v320, 1
  %v337 = vperm.slane %v108, 1
  %v338 = vperm.slane %v110, 1
  %v339 = vsel %vm321, %v337, %v209
  %v340 = vsel %vm321, %v338, %v210
  %v341 = vsel %vm322, %v337, %v211
  %v342 = vsel %vm322, %v338, %v212
  %v343 = vsel %vm323, %v337, %v213
  %v344 = vsel %vm323, %v338, %v214
  %v345 = vsel %vm324, %v337, %v215
  %v346 = vsel %vm324, %v338, %v216
  %v347 = vsel %vm325, %v337, %v217
  %v348 = vsel %vm325, %v338, %v218
  %v349 = vsel %vm326, %v337, %v219
  %v350 = vsel %vm326, %v338, %v220
  %v351 = vsel %vm327, %v337, %v221
  %v352 = vsel %vm327, %v338, %v222
  %v353 = vsel %vm328, %v337, %v223
  %v354 = vsel %vm328, %v338, %v224
  %v355 = vsel %vm329, %v337, %v225
  %v356 = vsel %vm329, %v338, %v226
  %v357 = vsel %vm330, %v337, %v227
  %v358 = vsel %vm330, %v338, %v228
  %v359 = vsel %vm331, %v337, %v229
  %v360 = vsel %vm331, %v338, %v230
  %v361 = vsel %vm332, %v337, %v231
  %v362 = vsel %vm332, %v338, %v232
  %v363 = vsel %vm333, %v337, %v233
  %v364 = vsel %vm333, %v338, %v234
  %v365 = vsel %vm334, %v337, %v235
  %v366 = vsel %vm334, %v338, %v236
  %v367 = vsel %vm335, %v337, %v237
  %v368 = vsel %vm335, %v338, %v238
  %v369 = vsel %vm336, %v337, %v239
  %v370 = vsel %vm336, %v338, %v240
  %vm371 = vcmp.eq.s32.totalorder %v73, 2
  %vm372 = vcmp.eq.s32.totalorder %v74, 2
  %vm373 = vcmp.eq.s32.totalorder %v75, 2
  %vm374 = vcmp.eq.s32.totalorder %v76, 2
  %vm375 = vcmp.eq.s32.totalorder %v77, 2
  %vm376 = vcmp.eq.s32.totalorder %v78, 2
  %vm377 = vcmp.eq.s32.totalorder %v79, 2
  %vm378 = vcmp.eq.s32.totalorder %v80, 2
  %vm379 = vcmp.eq.s32.totalorder %v81, 2
  %vm380 = vcmp.eq.s32.totalorder %v82, 2
  %vm381 = vcmp.eq.s32.totalorder %v83, 2
  %vm382 = vcmp.eq.s32.totalorder %v84, 2
  %vm383 = vcmp.eq.s32.totalorder %v85, 2
  %vm384 = vcmp.eq.s32.totalorder %v86, 2
  %vm385 = vcmp.eq.s32.totalorder %v87, 2
  %vm386 = vcmp.eq.s32.totalorder %v88, 2
  %v387 = vsel %vm371, 1, 0
  %v388 = vsel %vm372, 1, 0
  %v389 = vsel %vm373, 1, 0
  %v390 = vsel %vm374, 1, 0
  %v391 = vsel %vm375, 1, 0
  %v392 = vsel %vm376, 1, 0
  %v393 = vsel %vm377, 1, 0
  %v394 = vsel %vm378, 1, 0
  %v395 = vsel %vm379, 1, 0
  %v396 = vsel %vm380, 1, 0
  %v397 = vsel %vm381, 1, 0
  %v398 = vsel %vm382, 1, 0
  %v399 = vsel %vm383, 1, 0
  %v400 = vsel %vm384, 1, 0
  %v401 = vsel %vm385, 1, 0
  %v402 = vsel %vm386, 1, 0
  %403 = vset.pattern.permute.xlu0 0
  %404 = vperm.xlu0 %403, %v387
  %v405 = vpop.permute.xlu0 %404
  %406 = vset.pattern.permute.xlu0 0
  %407 = vperm.xlu0 %406, %v388
  %v408 = vpop.permute.xlu0 %407
  %409 = vset.pattern.permute.xlu0 0
  %410 = vperm.xlu0 %409, %v389
  %v411 = vpop.permute.xlu0 %410
  %412 = vset.pattern.permute.xlu0 0
  %413 = vperm.xlu0 %412, %v390
  %v414 = vpop.permute.xlu0 %413
  %415 = vset.pattern.permute.xlu0 0
  %416 = vperm.xlu0 %415, %v391
  %v417 = vpop.permute.xlu0 %416
  %418 = vset.pattern.permute.xlu0 0
  %419 = vperm.xlu0 %418, %v392
  %v420 = vpop.permute.xlu0 %419
  %421 = vset.pattern.permute.xlu0 0
  %422 = vperm.xlu0 %421, %v393
  %v423 = vpop.permute.xlu0 %422
  %424 = vset.pattern.permute.xlu0 0
  %425 = vperm.xlu0 %424, %v394
  %v426 = vpop.permute.xlu0 %425
  %427 = vset.pattern.permute.xlu0 0
  %428 = vperm.xlu0 %427, %v395
  %v429 = vpop.permute.xlu0 %428
  %430 = vset.pattern.permute.xlu0 0
  %431 = vperm.xlu0 %430, %v396
  %v432 = vpop.permute.xlu0 %431
  %433 = vset.pattern.permute.xlu0 0
  %434 = vperm.xlu0 %433, %v397
  %v435 = vpop.permute.xlu0 %434
  %436 = vset.pattern.permute.xlu0 0
  %437 = vperm.xlu0 %436, %v398
  %v438 = vpop.permute.xlu0 %437
  %439 = vset.pattern.permute.xlu0 0
  %440 = vperm.xlu0 %439, %v399
  %v441 = vpop.permute.xlu0 %440
  %442 = vset.pattern.permute.xlu0 0
  %443 = vperm.xlu0 %442, %v400
  %v444 = vpop.permute.xlu0 %443
  %445 = vset.pattern.permute.xlu0 0
  %446 = vperm.xlu0 %445, %v401
  %v447 = vpop.permute.xlu0 %446
  %448 = vset.pattern.permute.xlu0 0
  %449 = vperm.xlu0 %448, %v402
  %v450 = vpop.permute.xlu0 %449
  %vm451 = vcmp.eq.s32.totalorder %v405, 1
  %vm452 = vcmp.eq.s32.totalorder %v408, 1
  %vm453 = vcmp.eq.s32.totalorder %v411, 1
  %vm454 = vcmp.eq.s32.totalorder %v414, 1
  %vm455 = vcmp.eq.s32.totalorder %v417, 1
  %vm456 = vcmp.eq.s32.totalorder %v420, 1
  %vm457 = vcmp.eq.s32.totalorder %v423, 1
  %vm458 = vcmp.eq.s32.totalorder %v426, 1
  %vm459 = vcmp.eq.s32.totalorder %v429, 1
  %vm460 = vcmp.eq.s32.totalorder %v432, 1
  %vm461 = vcmp.eq.s32.totalorder %v435, 1
  %vm462 = vcmp.eq.s32.totalorder %v438, 1
  %vm463 = vcmp.eq.s32.totalorder %v441, 1
  %vm464 = vcmp.eq.s32.totalorder %v444, 1
  %vm465 = vcmp.eq.s32.totalorder %v447, 1
  %vm466 = vcmp.eq.s32.totalorder %v450, 1
  %v467 = vperm.slane %v108, 2
  %v468 = vperm.slane %v110, 2
  %v469 = vsel %vm451, %v467, %v339
  %v470 = vsel %vm451, %v468, %v340
  %v471 = vsel %vm452, %v467, %v341
  %v472 = vsel %vm452, %v468, %v342
  %v473 = vsel %vm453, %v467, %v343
  %v474 = vsel %vm453, %v468, %v344
  %v475 = vsel %vm454, %v467, %v345
  %v476 = vsel %vm454, %v468, %v346
  %v477 = vsel %vm455, %v467, %v347
  %v478 = vsel %vm455, %v468, %v348
  %v479 = vsel %vm456, %v467, %v349
  %v480 = vsel %vm456, %v468, %v350
  %v481 = vsel %vm457, %v467, %v351
  %v482 = vsel %vm457, %v468, %v352
  %v483 = vsel %vm458, %v467, %v353
  %v484 = vsel %vm458, %v468, %v354
  %v485 = vsel %vm459, %v467, %v355
  %v486 = vsel %vm459, %v468, %v356
  %v487 = vsel %vm460, %v467, %v357
  %v488 = vsel %vm460, %v468, %v358
  %v489 = vsel %vm461, %v467, %v359
  %v490 = vsel %vm461, %v468, %v360
  %v491 = vsel %vm462, %v467, %v361
  %v492 = vsel %vm462, %v468, %v362
  %v493 = vsel %vm463, %v467, %v363
  %v494 = vsel %vm463, %v468, %v364
  %v495 = vsel %vm464, %v467, %v365
  %v496 = vsel %vm464, %v468, %v366
  %v497 = vsel %vm465, %v467, %v367
  %v498 = vsel %vm465, %v468, %v368
  %v499 = vsel %vm466, %v467, %v369
  %v500 = vsel %vm466, %v468, %v370
  %vm501 = vcmp.eq.s32.totalorder %v73, 3
  %vm502 = vcmp.eq.s32.totalorder %v74, 3
  %vm503 = vcmp.eq.s32.totalorder %v75, 3
  %vm504 = vcmp.eq.s32.totalorder %v76, 3
  %vm505 = vcmp.eq.s32.totalorder %v77, 3
  %vm506 = vcmp.eq.s32.totalorder %v78, 3
  %vm507 = vcmp.eq.s32.totalorder %v79, 3
  %vm508 = vcmp.eq.s32.totalorder %v80, 3
  %vm509 = vcmp.eq.s32.totalorder %v81, 3
  %vm510 = vcmp.eq.s32.totalorder %v82, 3
  %vm511 = vcmp.eq.s32.totalorder %v83, 3
  %vm512 = vcmp.eq.s32.totalorder %v84, 3
  %vm513 = vcmp.eq.s32.totalorder %v85, 3
  %vm514 = vcmp.eq.s32.totalorder %v86, 3
  %vm515 = vcmp.eq.s32.totalorder %v87, 3
  %vm516 = vcmp.eq.s32.totalorder %v88, 3
  %v517 = vsel %vm501, 1, 0
  %v518 = vsel %vm502, 1, 0
  %v519 = vsel %vm503, 1, 0
  %v520 = vsel %vm504, 1, 0
  %v521 = vsel %vm505, 1, 0
  %v522 = vsel %vm506, 1, 0
  %v523 = vsel %vm507, 1, 0
  %v524 = vsel %vm508, 1, 0
  %v525 = vsel %vm509, 1, 0
  %v526 = vsel %vm510, 1, 0
  %v527 = vsel %vm511, 1, 0
  %v528 = vsel %vm512, 1, 0
  %v529 = vsel %vm513, 1, 0
  %v530 = vsel %vm514, 1, 0
  %v531 = vsel %vm515, 1, 0
  %v532 = vsel %vm516, 1, 0
  %533 = vset.pattern.permute.xlu0 0
  %534 = vperm.xlu0 %533, %v517
  %v535 = vpop.permute.xlu0 %534
  %536 = vset.pattern.permute.xlu0 0
  %537 = vperm.xlu0 %536, %v518
  %v538 = vpop.permute.xlu0 %537
  %539 = vset.pattern.permute.xlu0 0
  %540 = vperm.xlu0 %539, %v519
  %v541 = vpop.permute.xlu0 %540
  %542 = vset.pattern.permute.xlu0 0
  %543 = vperm.xlu0 %542, %v520
  %v544 = vpop.permute.xlu0 %543
  %545 = vset.pattern.permute.xlu0 0
  %546 = vperm.xlu0 %545, %v521
  %v547 = vpop.permute.xlu0 %546
  %548 = vset.pattern.permute.xlu0 0
  %549 = vperm.xlu0 %548, %v522
  %v550 = vpop.permute.xlu0 %549
  %551 = vset.pattern.permute.xlu0 0
  %552 = vperm.xlu0 %551, %v523
  %v553 = vpop.permute.xlu0 %552
  %554 = vset.pattern.permute.xlu0 0
  %555 = vperm.xlu0 %554, %v524
  %v556 = vpop.permute.xlu0 %555
  %557 = vset.pattern.permute.xlu0 0
  %558 = vperm.xlu0 %557, %v525
  %v559 = vpop.permute.xlu0 %558
  %560 = vset.pattern.permute.xlu0 0
  %561 = vperm.xlu0 %560, %v526
  %v562 = vpop.permute.xlu0 %561
  %563 = vset.pattern.permute.xlu0 0
  %564 = vperm.xlu0 %563, %v527
  %v565 = vpop.permute.xlu0 %564
  %566 = vset.pattern.permute.xlu0 0
  %567 = vperm.xlu0 %566, %v528
  %v568 = vpop.permute.xlu0 %567
  %569 = vset.pattern.permute.xlu0 0
  %570 = vperm.xlu0 %569, %v529
  %v571 = vpop.permute.xlu0 %570
  %572 = vset.pattern.permute.xlu0 0
  %573 = vperm.xlu0 %572, %v530
  %v574 = vpop.permute.xlu0 %573
  %575 = vset.pattern.permute.xlu0 0
  %576 = vperm.xlu0 %575, %v531
  %v577 = vpop.permute.xlu0 %576
  %578 = vset.pattern.permute.xlu0 0
  %579 = vperm.xlu0 %578, %v532
  %v580 = vpop.permute.xlu0 %579
  %vm581 = vcmp.eq.s32.totalorder %v535, 1
  %vm582 = vcmp.eq.s32.totalorder %v538, 1
  %vm583 = vcmp.eq.s32.totalorder %v541, 1
  %vm584 = vcmp.eq.s32.totalorder %v544, 1
  %vm585 = vcmp.eq.s32.totalorder %v547, 1
  %vm586 = vcmp.eq.s32.totalorder %v550, 1
  %vm587 = vcmp.eq.s32.totalorder %v553, 1
  %vm588 = vcmp.eq.s32.totalorder %v556, 1
  %vm589 = vcmp.eq.s32.totalorder %v559, 1
  %vm590 = vcmp.eq.s32.totalorder %v562, 1
  %vm591 = vcmp.eq.s32.totalorder %v565, 1
  %vm592 = vcmp.eq.s32.totalorder %v568, 1
  %vm593 = vcmp.eq.s32.totalorder %v571, 1
  %vm594 = vcmp.eq.s32.totalorder %v574, 1
  %vm595 = vcmp.eq.s32.totalorder %v577, 1
  %vm596 = vcmp.eq.s32.totalorder %v580, 1
  %v597 = vperm.slane %v108, 3
  %v598 = vperm.slane %v110, 3
  %v599 = vsel %vm581, %v597, %v469
  %v600 = vsel %vm581, %v598, %v470
  %v601 = vsel %vm582, %v597, %v471
  %v602 = vsel %vm582, %v598, %v472
  %v603 = vsel %vm583, %v597, %v473
  %v604 = vsel %vm583, %v598, %v474
  %v605 = vsel %vm584, %v597, %v475
  %v606 = vsel %vm584, %v598, %v476
  %v607 = vsel %vm585, %v597, %v477
  %v608 = vsel %vm585, %v598, %v478
  %v609 = vsel %vm586, %v597, %v479
  %v610 = vsel %vm586, %v598, %v480
  %v611 = vsel %vm587, %v597, %v481
  %v612 = vsel %vm587, %v598, %v482
  %v613 = vsel %vm588, %v597, %v483
  %v614 = vsel %vm588, %v598, %v484
  %v615 = vsel %vm589, %v597, %v485
  %v616 = vsel %vm589, %v598, %v486
  %v617 = vsel %vm590, %v597, %v487
  %v618 = vsel %vm590, %v598, %v488
  %v619 = vsel %vm591, %v597, %v489
  %v620 = vsel %vm591, %v598, %v490
  %v621 = vsel %vm592, %v597, %v491
  %v622 = vsel %vm592, %v598, %v492
  %v623 = vsel %vm593, %v597, %v493
  %v624 = vsel %vm593, %v598, %v494
  %v625 = vsel %vm594, %v597, %v495
  %v626 = vsel %vm594, %v598, %v496
  %v627 = vsel %vm595, %v597, %v497
  %v628 = vsel %vm595, %v598, %v498
  %v629 = vsel %vm596, %v597, %v499
  %v630 = vsel %vm596, %v598, %v500
  %vm631 = vcmp.eq.s32.totalorder %v73, 4
  %vm632 = vcmp.eq.s32.totalorder %v74, 4
  %vm633 = vcmp.eq.s32.totalorder %v75, 4
  %vm634 = vcmp.eq.s32.totalorder %v76, 4
  %vm635 = vcmp.eq.s32.totalorder %v77, 4
  %vm636 = vcmp.eq.s32.totalorder %v78, 4
  %vm637 = vcmp.eq.s32.totalorder %v79, 4
  %vm638 = vcmp.eq.s32.totalorder %v80, 4
  %vm639 = vcmp.eq.s32.totalorder %v81, 4
  %vm640 = vcmp.eq.s32.totalorder %v82, 4
  %vm641 = vcmp.eq.s32.totalorder %v83, 4
  %vm642 = vcmp.eq.s32.totalorder %v84, 4
  %vm643 = vcmp.eq.s32.totalorder %v85, 4
  %vm644 = vcmp.eq.s32.totalorder %v86, 4
  %vm645 = vcmp.eq.s32.totalorder %v87, 4
  %vm646 = vcmp.eq.s32.totalorder %v88, 4
  %v647 = vsel %vm631, 1, 0
  %v648 = vsel %vm632, 1, 0
  %v649 = vsel %vm633, 1, 0
  %v650 = vsel %vm634, 1, 0
  %v651 = vsel %vm635, 1, 0
  %v652 = vsel %vm636, 1, 0
  %v653 = vsel %vm637, 1, 0
  %v654 = vsel %vm638, 1, 0
  %v655 = vsel %vm639, 1, 0
  %v656 = vsel %vm640, 1, 0
  %v657 = vsel %vm641, 1, 0
  %v658 = vsel %vm642, 1, 0
  %v659 = vsel %vm643, 1, 0
  %v660 = vsel %vm644, 1, 0
  %v661 = vsel %vm645, 1, 0
  %v662 = vsel %vm646, 1, 0
  %663 = vset.pattern.permute.xlu0 0
  %664 = vperm.xlu0 %663, %v647
  %v665 = vpop.permute.xlu0 %664
  %666 = vset.pattern.permute.xlu0 0
  %667 = vperm.xlu0 %666, %v648
  %v668 = vpop.permute.xlu0 %667
  %669 = vset.pattern.permute.xlu0 0
  %670 = vperm.xlu0 %669, %v649
  %v671 = vpop.permute.xlu0 %670
  %672 = vset.pattern.permute.xlu0 0
  %673 = vperm.xlu0 %672, %v650
  %v674 = vpop.permute.xlu0 %673
  %675 = vset.pattern.permute.xlu0 0
  %676 = vperm.xlu0 %675, %v651
  %v677 = vpop.permute.xlu0 %676
  %678 = vset.pattern.permute.xlu0 0
  %679 = vperm.xlu0 %678, %v652
  %v680 = vpop.permute.xlu0 %679
  %681 = vset.pattern.permute.xlu0 0
  %682 = vperm.xlu0 %681, %v653
  %v683 = vpop.permute.xlu0 %682
  %684 = vset.pattern.permute.xlu0 0
  %685 = vperm.xlu0 %684, %v654
  %v686 = vpop.permute.xlu0 %685
  %687 = vset.pattern.permute.xlu0 0
  %688 = vperm.xlu0 %687, %v655
  %v689 = vpop.permute.xlu0 %688
  %690 = vset.pattern.permute.xlu0 0
  %691 = vperm.xlu0 %690, %v656
  %v692 = vpop.permute.xlu0 %691
  %693 = vset.pattern.permute.xlu0 0
  %694 = vperm.xlu0 %693, %v657
  %v695 = vpop.permute.xlu0 %694
  %696 = vset.pattern.permute.xlu0 0
  %697 = vperm.xlu0 %696, %v658
  %v698 = vpop.permute.xlu0 %697
  %699 = vset.pattern.permute.xlu0 0
  %700 = vperm.xlu0 %699, %v659
  %v701 = vpop.permute.xlu0 %700
  %702 = vset.pattern.permute.xlu0 0
  %703 = vperm.xlu0 %702, %v660
  %v704 = vpop.permute.xlu0 %703
  %705 = vset.pattern.permute.xlu0 0
  %706 = vperm.xlu0 %705, %v661
  %v707 = vpop.permute.xlu0 %706
  %708 = vset.pattern.permute.xlu0 0
  %709 = vperm.xlu0 %708, %v662
  %v710 = vpop.permute.xlu0 %709
  %vm711 = vcmp.eq.s32.totalorder %v665, 1
  %vm712 = vcmp.eq.s32.totalorder %v668, 1
  %vm713 = vcmp.eq.s32.totalorder %v671, 1
  %vm714 = vcmp.eq.s32.totalorder %v674, 1
  %vm715 = vcmp.eq.s32.totalorder %v677, 1
  %vm716 = vcmp.eq.s32.totalorder %v680, 1
  %vm717 = vcmp.eq.s32.totalorder %v683, 1
  %vm718 = vcmp.eq.s32.totalorder %v686, 1
  %vm719 = vcmp.eq.s32.totalorder %v689, 1
  %vm720 = vcmp.eq.s32.totalorder %v692, 1
  %vm721 = vcmp.eq.s32.totalorder %v695, 1
  %vm722 = vcmp.eq.s32.totalorder %v698, 1
  %vm723 = vcmp.eq.s32.totalorder %v701, 1
  %vm724 = vcmp.eq.s32.totalorder %v704, 1
  %vm725 = vcmp.eq.s32.totalorder %v707, 1
  %vm726 = vcmp.eq.s32.totalorder %v710, 1
  %v727 = vperm.slane %v108, 4
  %v728 = vperm.slane %v110, 4
  %v729 = vsel %vm711, %v727, %v599
  %v730 = vsel %vm711, %v728, %v600
  %v731 = vsel %vm712, %v727, %v601
  %v732 = vsel %vm712, %v728, %v602
  %v733 = vsel %vm713, %v727, %v603
  %v734 = vsel %vm713, %v728, %v604
  %v735 = vsel %vm714, %v727, %v605
  %v736 = vsel %vm714, %v728, %v606
  %v737 = vsel %vm715, %v727, %v607
  %v738 = vsel %vm715, %v728, %v608
  %v739 = vsel %vm716, %v727, %v609
  %v740 = vsel %vm716, %v728, %v610
  %v741 = vsel %vm717, %v727, %v611
  %v742 = vsel %vm717, %v728, %v612
  %v743 = vsel %vm718, %v727, %v613
  %v744 = vsel %vm718, %v728, %v614
  %v745 = vsel %vm719, %v727, %v615
  %v746 = vsel %vm719, %v728, %v616
  %v747 = vsel %vm720, %v727, %v617
  %v748 = vsel %vm720, %v728, %v618
  %v749 = vsel %vm721, %v727, %v619
  %v750 = vsel %vm721, %v728, %v620
  %v751 = vsel %vm722, %v727, %v621
  %v752 = vsel %vm722, %v728, %v622
  %v753 = vsel %vm723, %v727, %v623
  %v754 = vsel %vm723, %v728, %v624
  %v755 = vsel %vm724, %v727, %v625
  %v756 = vsel %vm724, %v728, %v626
  %v757 = vsel %vm725, %v727, %v627
  %v758 = vsel %vm725, %v728, %v628
  %v759 = vsel %vm726, %v727, %v629
  %v760 = vsel %vm726, %v728, %v630
  %vm761 = vcmp.eq.s32.totalorder %v73, 5
  %vm762 = vcmp.eq.s32.totalorder %v74, 5
  %vm763 = vcmp.eq.s32.totalorder %v75, 5
  %vm764 = vcmp.eq.s32.totalorder %v76, 5
  %vm765 = vcmp.eq.s32.totalorder %v77, 5
  %vm766 = vcmp.eq.s32.totalorder %v78, 5
  %vm767 = vcmp.eq.s32.totalorder %v79, 5
  %vm768 = vcmp.eq.s32.totalorder %v80, 5
  %vm769 = vcmp.eq.s32.totalorder %v81, 5
  %vm770 = vcmp.eq.s32.totalorder %v82, 5
  %vm771 = vcmp.eq.s32.totalorder %v83, 5
  %vm772 = vcmp.eq.s32.totalorder %v84, 5
  %vm773 = vcmp.eq.s32.totalorder %v85, 5
  %vm774 = vcmp.eq.s32.totalorder %v86, 5
  %vm775 = vcmp.eq.s32.totalorder %v87, 5
  %vm776 = vcmp.eq.s32.totalorder %v88, 5
  %v777 = vsel %vm761, 1, 0
  %v778 = vsel %vm762, 1, 0
  %v779 = vsel %vm763, 1, 0
  %v780 = vsel %vm764, 1, 0
  %v781 = vsel %vm765, 1, 0
  %v782 = vsel %vm766, 1, 0
  %v783 = vsel %vm767, 1, 0
  %v784 = vsel %vm768, 1, 0
  %v785 = vsel %vm769, 1, 0
  %v786 = vsel %vm770, 1, 0
  %v787 = vsel %vm771, 1, 0
  %v788 = vsel %vm772, 1, 0
  %v789 = vsel %vm773, 1, 0
  %v790 = vsel %vm774, 1, 0
  %v791 = vsel %vm775, 1, 0
  %v792 = vsel %vm776, 1, 0
  %793 = vset.pattern.permute.xlu0 0
  %794 = vperm.xlu0 %793, %v777
  %v795 = vpop.permute.xlu0 %794
  %796 = vset.pattern.permute.xlu0 0
  %797 = vperm.xlu0 %796, %v778
  %v798 = vpop.permute.xlu0 %797
  %799 = vset.pattern.permute.xlu0 0
  %800 = vperm.xlu0 %799, %v779
  %v801 = vpop.permute.xlu0 %800
  %802 = vset.pattern.permute.xlu0 0
  %803 = vperm.xlu0 %802, %v780
  %v804 = vpop.permute.xlu0 %803
  %805 = vset.pattern.permute.xlu0 0
  %806 = vperm.xlu0 %805, %v781
  %v807 = vpop.permute.xlu0 %806
  %808 = vset.pattern.permute.xlu0 0
  %809 = vperm.xlu0 %808, %v782
  %v810 = vpop.permute.xlu0 %809
  %811 = vset.pattern.permute.xlu0 0
  %812 = vperm.xlu0 %811, %v783
  %v813 = vpop.permute.xlu0 %812
  %814 = vset.pattern.permute.xlu0 0
  %815 = vperm.xlu0 %814, %v784
  %v816 = vpop.permute.xlu0 %815
  %817 = vset.pattern.permute.xlu0 0
  %818 = vperm.xlu0 %817, %v785
  %v819 = vpop.permute.xlu0 %818
  %820 = vset.pattern.permute.xlu0 0
  %821 = vperm.xlu0 %820, %v786
  %v822 = vpop.permute.xlu0 %821
  %823 = vset.pattern.permute.xlu0 0
  %824 = vperm.xlu0 %823, %v787
  %v825 = vpop.permute.xlu0 %824
  %826 = vset.pattern.permute.xlu0 0
  %827 = vperm.xlu0 %826, %v788
  %v828 = vpop.permute.xlu0 %827
  %829 = vset.pattern.permute.xlu0 0
  %830 = vperm.xlu0 %829, %v789
  %v831 = vpop.permute.xlu0 %830
  %832 = vset.pattern.permute.xlu0 0
  %833 = vperm.xlu0 %832, %v790
  %v834 = vpop.permute.xlu0 %833
  %835 = vset.pattern.permute.xlu0 0
  %836 = vperm.xlu0 %835, %v791
  %v837 = vpop.permute.xlu0 %836
  %838 = vset.pattern.permute.xlu0 0
  %839 = vperm.xlu0 %838, %v792
  %v840 = vpop.permute.xlu0 %839
  %vm841 = vcmp.eq.s32.totalorder %v795, 1
  %vm842 = vcmp.eq.s32.totalorder %v798, 1
  %vm843 = vcmp.eq.s32.totalorder %v801, 1
  %vm844 = vcmp.eq.s32.totalorder %v804, 1
  %vm845 = vcmp.eq.s32.totalorder %v807, 1
  %vm846 = vcmp.eq.s32.totalorder %v810, 1
  %vm847 = vcmp.eq.s32.totalorder %v813, 1
  %vm848 = vcmp.eq.s32.totalorder %v816, 1
  %vm849 = vcmp.eq.s32.totalorder %v819, 1
  %vm850 = vcmp.eq.s32.totalorder %v822, 1
  %vm851 = vcmp.eq.s32.totalorder %v825, 1
  %vm852 = vcmp.eq.s32.totalorder %v828, 1
  %vm853 = vcmp.eq.s32.totalorder %v831, 1
  %vm854 = vcmp.eq.s32.totalorder %v834, 1
  %vm855 = vcmp.eq.s32.totalorder %v837, 1
  %vm856 = vcmp.eq.s32.totalorder %v840, 1
  %v857 = vperm.slane %v108, 5
  %v858 = vperm.slane %v110, 5
  %v859 = vsel %vm841, %v857, %v729
  %v860 = vsel %vm841, %v858, %v730
  %v861 = vsel %vm842, %v857, %v731
  %v862 = vsel %vm842, %v858, %v732
  %v863 = vsel %vm843, %v857, %v733
  %v864 = vsel %vm843, %v858, %v734
  %v865 = vsel %vm844, %v857, %v735
  %v866 = vsel %vm844, %v858, %v736
  %v867 = vsel %vm845, %v857, %v737
  %v868 = vsel %vm845, %v858, %v738
  %v869 = vsel %vm846, %v857, %v739
  %v870 = vsel %vm846, %v858, %v740
  %v871 = vsel %vm847, %v857, %v741
  %v872 = vsel %vm847, %v858, %v742
  %v873 = vsel %vm848, %v857, %v743
  %v874 = vsel %vm848, %v858, %v744
  %v875 = vsel %vm849, %v857, %v745
  %v876 = vsel %vm849, %v858, %v746
  %v877 = vsel %vm850, %v857, %v747
  %v878 = vsel %vm850, %v858, %v748
  %v879 = vsel %vm851, %v857, %v749
  %v880 = vsel %vm851, %v858, %v750
  %v881 = vsel %vm852, %v857, %v751
  %v882 = vsel %vm852, %v858, %v752
  %v883 = vsel %vm853, %v857, %v753
  %v884 = vsel %vm853, %v858, %v754
  %v885 = vsel %vm854, %v857, %v755
  %v886 = vsel %vm854, %v858, %v756
  %v887 = vsel %vm855, %v857, %v757
  %v888 = vsel %vm855, %v858, %v758
  %v889 = vsel %vm856, %v857, %v759
  %v890 = vsel %vm856, %v858, %v760
  %vm891 = vcmp.eq.s32.totalorder %v73, 6
  %vm892 = vcmp.eq.s32.totalorder %v74, 6
  %vm893 = vcmp.eq.s32.totalorder %v75, 6
  %vm894 = vcmp.eq.s32.totalorder %v76, 6
  %vm895 = vcmp.eq.s32.totalorder %v77, 6
  %vm896 = vcmp.eq.s32.totalorder %v78, 6
  %vm897 = vcmp.eq.s32.totalorder %v79, 6
  %vm898 = vcmp.eq.s32.totalorder %v80, 6
  %vm899 = vcmp.eq.s32.totalorder %v81, 6
  %vm900 = vcmp.eq.s32.totalorder %v82, 6
  %vm901 = vcmp.eq.s32.totalorder %v83, 6
  %vm902 = vcmp.eq.s32.totalorder %v84, 6
  %vm903 = vcmp.eq.s32.totalorder %v85, 6
  %vm904 = vcmp.eq.s32.totalorder %v86, 6
  %vm905 = vcmp.eq.s32.totalorder %v87, 6
  %vm906 = vcmp.eq.s32.totalorder %v88, 6
  %v907 = vsel %vm891, 1, 0
  %v908 = vsel %vm892, 1, 0
  %v909 = vsel %vm893, 1, 0
  %v910 = vsel %vm894, 1, 0
  %v911 = vsel %vm895, 1, 0
  %v912 = vsel %vm896, 1, 0
  %v913 = vsel %vm897, 1, 0
  %v914 = vsel %vm898, 1, 0
  %v915 = vsel %vm899, 1, 0
  %v916 = vsel %vm900, 1, 0
  %v917 = vsel %vm901, 1, 0
  %v918 = vsel %vm902, 1, 0
  %v919 = vsel %vm903, 1, 0
  %v920 = vsel %vm904, 1, 0
  %v921 = vsel %vm905, 1, 0
  %v922 = vsel %vm906, 1, 0
  %923 = vset.pattern.permute.xlu0 0
  %924 = vperm.xlu0 %923, %v907
  %v925 = vpop.permute.xlu0 %924
  %926 = vset.pattern.permute.xlu0 0
  %927 = vperm.xlu0 %926, %v908
  %v928 = vpop.permute.xlu0 %927
  %929 = vset.pattern.permute.xlu0 0
  %930 = vperm.xlu0 %929, %v909
  %v931 = vpop.permute.xlu0 %930
  %932 = vset.pattern.permute.xlu0 0
  %933 = vperm.xlu0 %932, %v910
  %v934 = vpop.permute.xlu0 %933
  %935 = vset.pattern.permute.xlu0 0
  %936 = vperm.xlu0 %935, %v911
  %v937 = vpop.permute.xlu0 %936
  %938 = vset.pattern.permute.xlu0 0
  %939 = vperm.xlu0 %938, %v912
  %v940 = vpop.permute.xlu0 %939
  %941 = vset.pattern.permute.xlu0 0
  %942 = vperm.xlu0 %941, %v913
  %v943 = vpop.permute.xlu0 %942
  %944 = vset.pattern.permute.xlu0 0
  %945 = vperm.xlu0 %944, %v914
  %v946 = vpop.permute.xlu0 %945
  %947 = vset.pattern.permute.xlu0 0
  %948 = vperm.xlu0 %947, %v915
  %v949 = vpop.permute.xlu0 %948
  %950 = vset.pattern.permute.xlu0 0
  %951 = vperm.xlu0 %950, %v916
  %v952 = vpop.permute.xlu0 %951
  %953 = vset.pattern.permute.xlu0 0
  %954 = vperm.xlu0 %953, %v917
  %v955 = vpop.permute.xlu0 %954
  %956 = vset.pattern.permute.xlu0 0
  %957 = vperm.xlu0 %956, %v918
  %v958 = vpop.permute.xlu0 %957
  %959 = vset.pattern.permute.xlu0 0
  %960 = vperm.xlu0 %959, %v919
  %v961 = vpop.permute.xlu0 %960
  %962 = vset.pattern.permute.xlu0 0
  %963 = vperm.xlu0 %962, %v920
  %v964 = vpop.permute.xlu0 %963
  %965 = vset.pattern.permute.xlu0 0
  %966 = vperm.xlu0 %965, %v921
  %v967 = vpop.permute.xlu0 %966
  %968 = vset.pattern.permute.xlu0 0
  %969 = vperm.xlu0 %968, %v922
  %v970 = vpop.permute.xlu0 %969
  %vm971 = vcmp.eq.s32.totalorder %v925, 1
  %vm972 = vcmp.eq.s32.totalorder %v928, 1
  %vm973 = vcmp.eq.s32.totalorder %v931, 1
  %vm974 = vcmp.eq.s32.totalorder %v934, 1
  %vm975 = vcmp.eq.s32.totalorder %v937, 1
  %vm976 = vcmp.eq.s32.totalorder %v940, 1
  %vm977 = vcmp.eq.s32.totalorder %v943, 1
  %vm978 = vcmp.eq.s32.totalorder %v946, 1
  %vm979 = vcmp.eq.s32.totalorder %v949, 1
  %vm980 = vcmp.eq.s32.totalorder %v952, 1
  %vm981 = vcmp.eq.s32.totalorder %v955, 1
  %vm982 = vcmp.eq.s32.totalorder %v958, 1
  %vm983 = vcmp.eq.s32.totalorder %v961, 1
  %vm984 = vcmp.eq.s32.totalorder %v964, 1
  %vm985 = vcmp.eq.s32.totalorder %v967, 1
  %vm986 = vcmp.eq.s32.totalorder %v970, 1
  %v987 = vperm.slane %v108, 6
  %v988 = vperm.slane %v110, 6
  %v989 = vsel %vm971, %v987, %v859
  %v990 = vsel %vm971, %v988, %v860
  %v991 = vsel %vm972, %v987, %v861
  %v992 = vsel %vm972, %v988, %v862
  %v993 = vsel %vm973, %v987, %v863
  %v994 = vsel %vm973, %v988, %v864
  %v995 = vsel %vm974, %v987, %v865
  %v996 = vsel %vm974, %v988, %v866
  %v997 = vsel %vm975, %v987, %v867
  %v998 = vsel %vm975, %v988, %v868
  %v999 = vsel %vm976, %v987, %v869
  %v1000 = vsel %vm976, %v988, %v870
  %v1001 = vsel %vm977, %v987, %v871
  %v1002 = vsel %vm977, %v988, %v872
  %v1003 = vsel %vm978, %v987, %v873
  %v1004 = vsel %vm978, %v988, %v874
  %v1005 = vsel %vm979, %v987, %v875
  %v1006 = vsel %vm979, %v988, %v876
  %v1007 = vsel %vm980, %v987, %v877
  %v1008 = vsel %vm980, %v988, %v878
  %v1009 = vsel %vm981, %v987, %v879
  %v1010 = vsel %vm981, %v988, %v880
  %v1011 = vsel %vm982, %v987, %v881
  %v1012 = vsel %vm982, %v988, %v882
  %v1013 = vsel %vm983, %v987, %v883
  %v1014 = vsel %vm983, %v988, %v884
  %v1015 = vsel %vm984, %v987, %v885
  %v1016 = vsel %vm984, %v988, %v886
  %v1017 = vsel %vm985, %v987, %v887
  %v1018 = vsel %vm985, %v988, %v888
  %v1019 = vsel %vm986, %v987, %v889
  %v1020 = vsel %vm986, %v988, %v890
  %v1021 = vrot.slane %v109, 1
  %vm1022 = vcmp.eq.s32.totalorder %v73, 7
  %vm1023 = vcmp.eq.s32.totalorder %v74, 7
  %vm1024 = vcmp.eq.s32.totalorder %v75, 7
  %vm1025 = vcmp.eq.s32.totalorder %v76, 7
  %vm1026 = vcmp.eq.s32.totalorder %v77, 7
  %vm1027 = vcmp.eq.s32.totalorder %v78, 7
  %vm1028 = vcmp.eq.s32.totalorder %v79, 7
  %vm1029 = vcmp.eq.s32.totalorder %v80, 7
  %vm1030 = vcmp.eq.s32.totalorder %v81, 7
  %vm1031 = vcmp.eq.s32.totalorder %v82, 7
  %vm1032 = vcmp.eq.s32.totalorder %v83, 7
  %vm1033 = vcmp.eq.s32.totalorder %v84, 7
  %vm1034 = vcmp.eq.s32.totalorder %v85, 7
  %vm1035 = vcmp.eq.s32.totalorder %v86, 7
  %vm1036 = vcmp.eq.s32.totalorder %v87, 7
  %vm1037 = vcmp.eq.s32.totalorder %v88, 7
  %v1038 = vsel %vm1022, 1, 0
  %v1039 = vsel %vm1023, 1, 0
  %v1040 = vsel %vm1024, 1, 0
  %v1041 = vsel %vm1025, 1, 0
  %v1042 = vsel %vm1026, 1, 0
  %v1043 = vsel %vm1027, 1, 0
  %v1044 = vsel %vm1028, 1, 0
  %v1045 = vsel %vm1029, 1, 0
  %v1046 = vsel %vm1030, 1, 0
  %v1047 = vsel %vm1031, 1, 0
  %v1048 = vsel %vm1032, 1, 0
  %v1049 = vsel %vm1033, 1, 0
  %v1050 = vsel %vm1034, 1, 0
  %v1051 = vsel %vm1035, 1, 0
  %v1052 = vsel %vm1036, 1, 0
  %v1053 = vsel %vm1037, 1, 0
  %1054 = vset.pattern.permute.xlu0 0
  %1055 = vperm.xlu0 %1054, %v1038
  %v1056 = vpop.permute.xlu0 %1055
  %1057 = vset.pattern.permute.xlu0 0
  %1058 = vperm.xlu0 %1057, %v1039
  %v1059 = vpop.permute.xlu0 %1058
  %1060 = vset.pattern.permute.xlu0 0
  %1061 = vperm.xlu0 %1060, %v1040
  %v1062 = vpop.permute.xlu0 %1061
  %1063 = vset.pattern.permute.xlu0 0
  %1064 = vperm.xlu0 %1063, %v1041
  %v1065 = vpop.permute.xlu0 %1064
  %1066 = vset.pattern.permute.xlu0 0
  %1067 = vperm.xlu0 %1066, %v1042
  %v1068 = vpop.permute.xlu0 %1067
  %1069 = vset.pattern.permute.xlu0 0
  %1070 = vperm.xlu0 %1069, %v1043
  %v1071 = vpop.permute.xlu0 %1070
  %1072 = vset.pattern.permute.xlu0 0
  %1073 = vperm.xlu0 %1072, %v1044
  %v1074 = vpop.permute.xlu0 %1073
  %1075 = vset.pattern.permute.xlu0 0
  %1076 = vperm.xlu0 %1075, %v1045
  %v1077 = vpop.permute.xlu0 %1076
  %1078 = vset.pattern.permute.xlu0 0
  %1079 = vperm.xlu0 %1078, %v1046
  %v1080 = vpop.permute.xlu0 %1079
  %1081 = vset.pattern.permute.xlu0 0
  %1082 = vperm.xlu0 %1081, %v1047
  %v1083 = vpop.permute.xlu0 %1082
  %1084 = vset.pattern.permute.xlu0 0
  %1085 = vperm.xlu0 %1084, %v1048
  %v1086 = vpop.permute.xlu0 %1085
  %1087 = vset.pattern.permute.xlu0 0
  %1088 = vperm.xlu0 %1087, %v1049
  %v1089 = vpop.permute.xlu0 %1088
  %1090 = vset.pattern.permute.xlu0 0
  %1091 = vperm.xlu0 %1090, %v1050
  %v1092 = vpop.permute.xlu0 %1091
  %1093 = vset.pattern.permute.xlu0 0
  %1094 = vperm.xlu0 %1093, %v1051
  %v1095 = vpop.permute.xlu0 %1094
  %1096 = vset.pattern.permute.xlu0 0
  %1097 = vperm.xlu0 %1096, %v1052
  %v1098 = vpop.permute.xlu0 %1097
  %1099 = vset.pattern.permute.xlu0 0
  %1100 = vperm.xlu0 %1099, %v1053
  %v1101 = vpop.permute.xlu0 %1100
  %vm1102 = vcmp.eq.s32.totalorder %v1056, 1
  %vm1103 = vcmp.eq.s32.totalorder %v1059, 1
  %vm1104 = vcmp.eq.s32.totalorder %v1062, 1
  %vm1105 = vcmp.eq.s32.totalorder %v1065, 1
  %vm1106 = vcmp.eq.s32.totalorder %v1068, 1
  %vm1107 = vcmp.eq.s32.totalorder %v1071, 1
  %vm1108 = vcmp.eq.s32.totalorder %v1074, 1
  %vm1109 = vcmp.eq.s32.totalorder %v1077, 1
  %vm1110 = vcmp.eq.s32.totalorder %v1080, 1
  %vm1111 = vcmp.eq.s32.totalorder %v1083, 1
  %vm1112 = vcmp.eq.s32.totalorder %v1086, 1
  %vm1113 = vcmp.eq.s32.totalorder %v1089, 1
  %vm1114 = vcmp.eq.s32.totalorder %v1092, 1
  %vm1115 = vcmp.eq.s32.totalorder %v1095, 1
  %vm1116 = vcmp.eq.s32.totalorder %v1098, 1
  %vm1117 = vcmp.eq.s32.totalorder %v1101, 1
  %v1118 = vperm.slane %v108, 7
  %v1119 = vperm.slane %v1021, 7
  %v1120 = vsel %vm1102, %v1118, %v989
  %v1121 = vsel %vm1102, %v1119, %v990
  %v1122 = vsel %vm1103, %v1118, %v991
  %v1123 = vsel %vm1103, %v1119, %v992
  %v1124 = vsel %vm1104, %v1118, %v993
  %v1125 = vsel %vm1104, %v1119, %v994
  %v1126 = vsel %vm1105, %v1118, %v995
  %v1127 = vsel %vm1105, %v1119, %v996
  %v1128 = vsel %vm1106, %v1118, %v997
  %v1129 = vsel %vm1106, %v1119, %v998
  %v1130 = vsel %vm1107, %v1118, %v999
  %v1131 = vsel %vm1107, %v1119, %v1000
  %v1132 = vsel %vm1108, %v1118, %v1001
  %v1133 = vsel %vm1108, %v1119, %v1002
  %v1134 = vsel %vm1109, %v1118, %v1003
  %v1135 = vsel %vm1109, %v1119, %v1004
  %v1136 = vsel %vm1110, %v1118, %v1005
  %v1137 = vsel %vm1110, %v1119, %v1006
  %v1138 = vsel %vm1111, %v1118, %v1007
  %v1139 = vsel %vm1111, %v1119, %v1008
  %v1140 = vsel %vm1112, %v1118, %v1009
  %v1141 = vsel %vm1112, %v1119, %v1010
  %v1142 = vsel %vm1113, %v1118, %v1011
  %v1143 = vsel %vm1113, %v1119, %v1012
  %v1144 = vsel %vm1114, %v1118, %v1013
  %v1145 = vsel %vm1114, %v1119, %v1014
  %v1146 = vsel %vm1115, %v1118, %v1015
  %v1147 = vsel %vm1115, %v1119, %v1016
  %v1148 = vsel %vm1116, %v1118, %v1017
  %v1149 = vsel %vm1116, %v1119, %v1018
  %v1150 = vsel %vm1117, %v1118, %v1019
  %v1151 = vsel %vm1117, %v1119, %v1020
  %vm1152 = vcmp.eq.s32.totalorder %v73, 8
  %vm1153 = vcmp.eq.s32.totalorder %v74, 8
  %vm1154 = vcmp.eq.s32.totalorder %v75, 8
  %vm1155 = vcmp.eq.s32.totalorder %v76, 8
  %vm1156 = vcmp.eq.s32.totalorder %v77, 8
  %vm1157 = vcmp.eq.s32.totalorder %v78, 8
  %vm1158 = vcmp.eq.s32.totalorder %v79, 8
  %vm1159 = vcmp.eq.s32.totalorder %v80, 8
  %vm1160 = vcmp.eq.s32.totalorder %v81, 8
  %vm1161 = vcmp.eq.s32.totalorder %v82, 8
  %vm1162 = vcmp.eq.s32.totalorder %v83, 8
  %vm1163 = vcmp.eq.s32.totalorder %v84, 8
  %vm1164 = vcmp.eq.s32.totalorder %v85, 8
  %vm1165 = vcmp.eq.s32.totalorder %v86, 8
  %vm1166 = vcmp.eq.s32.totalorder %v87, 8
  %vm1167 = vcmp.eq.s32.totalorder %v88, 8
  %v1168 = vsel %vm1152, 1, 0
  %v1169 = vsel %vm1153, 1, 0
  %v1170 = vsel %vm1154, 1, 0
  %v1171 = vsel %vm1155, 1, 0
  %v1172 = vsel %vm1156, 1, 0
  %v1173 = vsel %vm1157, 1, 0
  %v1174 = vsel %vm1158, 1, 0
  %v1175 = vsel %vm1159, 1, 0
  %v1176 = vsel %vm1160, 1, 0
  %v1177 = vsel %vm1161, 1, 0
  %v1178 = vsel %vm1162, 1, 0
  %v1179 = vsel %vm1163, 1, 0
  %v1180 = vsel %vm1164, 1, 0
  %v1181 = vsel %vm1165, 1, 0
  %v1182 = vsel %vm1166, 1, 0
  %v1183 = vsel %vm1167, 1, 0
  %1184 = vset.pattern.permute.xlu0 0
  %1185 = vperm.xlu0 %1184, %v1168
  %v1186 = vpop.permute.xlu0 %1185
  %1187 = vset.pattern.permute.xlu0 0
  %1188 = vperm.xlu0 %1187, %v1169
  %v1189 = vpop.permute.xlu0 %1188
  %1190 = vset.pattern.permute.xlu0 0
  %1191 = vperm.xlu0 %1190, %v1170
  %v1192 = vpop.permute.xlu0 %1191
  %1193 = vset.pattern.permute.xlu0 0
  %1194 = vperm.xlu0 %1193, %v1171
  %v1195 = vpop.permute.xlu0 %1194
  %1196 = vset.pattern.permute.xlu0 0
  %1197 = vperm.xlu0 %1196, %v1172
  %v1198 = vpop.permute.xlu0 %1197
  %1199 = vset.pattern.permute.xlu0 0
  %1200 = vperm.xlu0 %1199, %v1173
  %v1201 = vpop.permute.xlu0 %1200
  %1202 = vset.pattern.permute.xlu0 0
  %1203 = vperm.xlu0 %1202, %v1174
  %v1204 = vpop.permute.xlu0 %1203
  %1205 = vset.pattern.permute.xlu0 0
  %1206 = vperm.xlu0 %1205, %v1175
  %v1207 = vpop.permute.xlu0 %1206
  %1208 = vset.pattern.permute.xlu0 0
  %1209 = vperm.xlu0 %1208, %v1176
  %v1210 = vpop.permute.xlu0 %1209
  %1211 = vset.pattern.permute.xlu0 0
  %1212 = vperm.xlu0 %1211, %v1177
  %v1213 = vpop.permute.xlu0 %1212
  %1214 = vset.pattern.permute.xlu0 0
  %1215 = vperm.xlu0 %1214, %v1178
  %v1216 = vpop.permute.xlu0 %1215
  %1217 = vset.pattern.permute.xlu0 0
  %1218 = vperm.xlu0 %1217, %v1179
  %v1219 = vpop.permute.xlu0 %1218
  %1220 = vset.pattern.permute.xlu0 0
  %1221 = vperm.xlu0 %1220, %v1180
  %v1222 = vpop.permute.xlu0 %1221
  %1223 = vset.pattern.permute.xlu0 0
  %1224 = vperm.xlu0 %1223, %v1181
  %v1225 = vpop.permute.xlu0 %1224
  %1226 = vset.pattern.permute.xlu0 0
  %1227 = vperm.xlu0 %1226, %v1182
  %v1228 = vpop.permute.xlu0 %1227
  %1229 = vset.pattern.permute.xlu0 0
  %1230 = vperm.xlu0 %1229, %v1183
  %v1231 = vpop.permute.xlu0 %1230
  %vm1232 = vcmp.eq.s32.totalorder %v1186, 1
  %vm1233 = vcmp.eq.s32.totalorder %v1189, 1
  %vm1234 = vcmp.eq.s32.totalorder %v1192, 1
  %vm1235 = vcmp.eq.s32.totalorder %v1195, 1
  %vm1236 = vcmp.eq.s32.totalorder %v1198, 1
  %vm1237 = vcmp.eq.s32.totalorder %v1201, 1
  %vm1238 = vcmp.eq.s32.totalorder %v1204, 1
  %vm1239 = vcmp.eq.s32.totalorder %v1207, 1
  %vm1240 = vcmp.eq.s32.totalorder %v1210, 1
  %vm1241 = vcmp.eq.s32.totalorder %v1213, 1
  %vm1242 = vcmp.eq.s32.totalorder %v1216, 1
  %vm1243 = vcmp.eq.s32.totalorder %v1219, 1
  %vm1244 = vcmp.eq.s32.totalorder %v1222, 1
  %vm1245 = vcmp.eq.s32.totalorder %v1225, 1
  %vm1246 = vcmp.eq.s32.totalorder %v1228, 1
  %vm1247 = vcmp.eq.s32.totalorder %v1231, 1
  %v1248 = vperm.slane %v109, 0
  %v1249 = vperm.slane %v1021, 0
  %v1250 = vsel %vm1232, %v1248, %v1120
  %v1251 = vsel %vm1232, %v1249, %v1121
  %v1252 = vsel %vm1233, %v1248, %v1122
  %v1253 = vsel %vm1233, %v1249, %v1123
  %v1254 = vsel %vm1234, %v1248, %v1124
  %v1255 = vsel %vm1234, %v1249, %v1125
  %v1256 = vsel %vm1235, %v1248, %v1126
  %v1257 = vsel %vm1235, %v1249, %v1127
  %v1258 = vsel %vm1236, %v1248, %v1128
  %v1259 = vsel %vm1236, %v1249, %v1129
  %v1260 = vsel %vm1237, %v1248, %v1130
  %v1261 = vsel %vm1237, %v1249, %v1131
  %v1262 = vsel %vm1238, %v1248, %v1132
  %v1263 = vsel %vm1238, %v1249, %v1133
  %v1264 = vsel %vm1239, %v1248, %v1134
  %v1265 = vsel %vm1239, %v1249, %v1135
  %v1266 = vsel %vm1240, %v1248, %v1136
  %v1267 = vsel %vm1240, %v1249, %v1137
  %v1268 = vsel %vm1241, %v1248, %v1138
  %v1269 = vsel %vm1241, %v1249, %v1139
  %v1270 = vsel %vm1242, %v1248, %v1140
  %v1271 = vsel %vm1242, %v1249, %v1141
  %v1272 = vsel %vm1243, %v1248, %v1142
  %v1273 = vsel %vm1243, %v1249, %v1143
  %v1274 = vsel %vm1244, %v1248, %v1144
  %v1275 = vsel %vm1244, %v1249, %v1145
  %v1276 = vsel %vm1245, %v1248, %v1146
  %v1277 = vsel %vm1245, %v1249, %v1147
  %v1278 = vsel %vm1246, %v1248, %v1148
  %v1279 = vsel %vm1246, %v1249, %v1149
  %v1280 = vsel %vm1247, %v1248, %v1150
  %v1281 = vsel %vm1247, %v1249, %v1151
  %vm1282 = vcmp.eq.s32.totalorder %v73, 9
  %vm1283 = vcmp.eq.s32.totalorder %v74, 9
  %vm1284 = vcmp.eq.s32.totalorder %v75, 9
  %vm1285 = vcmp.eq.s32.totalorder %v76, 9
  %vm1286 = vcmp.eq.s32.totalorder %v77, 9
  %vm1287 = vcmp.eq.s32.totalorder %v78, 9
  %vm1288 = vcmp.eq.s32.totalorder %v79, 9
  %vm1289 = vcmp.eq.s32.totalorder %v80, 9
  %vm1290 = vcmp.eq.s32.totalorder %v81, 9
  %vm1291 = vcmp.eq.s32.totalorder %v82, 9
  %vm1292 = vcmp.eq.s32.totalorder %v83, 9
  %vm1293 = vcmp.eq.s32.totalorder %v84, 9
  %vm1294 = vcmp.eq.s32.totalorder %v85, 9
  %vm1295 = vcmp.eq.s32.totalorder %v86, 9
  %vm1296 = vcmp.eq.s32.totalorder %v87, 9
  %vm1297 = vcmp.eq.s32.totalorder %v88, 9
  %v1298 = vsel %vm1282, 1, 0
  %v1299 = vsel %vm1283, 1, 0
  %v1300 = vsel %vm1284, 1, 0
  %v1301 = vsel %vm1285, 1, 0
  %v1302 = vsel %vm1286, 1, 0
  %v1303 = vsel %vm1287, 1, 0
  %v1304 = vsel %vm1288, 1, 0
  %v1305 = vsel %vm1289, 1, 0
  %v1306 = vsel %vm1290, 1, 0
  %v1307 = vsel %vm1291, 1, 0
  %v1308 = vsel %vm1292, 1, 0
  %v1309 = vsel %vm1293, 1, 0
  %v1310 = vsel %vm1294, 1, 0
  %v1311 = vsel %vm1295, 1, 0
  %v1312 = vsel %vm1296, 1, 0
  %v1313 = vsel %vm1297, 1, 0
  %1314 = vset.pattern.permute.xlu0 0
  %1315 = vperm.xlu0 %1314, %v1298
  %v1316 = vpop.permute.xlu0 %1315
  %1317 = vset.pattern.permute.xlu0 0
  %1318 = vperm.xlu0 %1317, %v1299
  %v1319 = vpop.permute.xlu0 %1318
  %1320 = vset.pattern.permute.xlu0 0
  %1321 = vperm.xlu0 %1320, %v1300
  %v1322 = vpop.permute.xlu0 %1321
  %1323 = vset.pattern.permute.xlu0 0
  %1324 = vperm.xlu0 %1323, %v1301
  %v1325 = vpop.permute.xlu0 %1324
  %1326 = vset.pattern.permute.xlu0 0
  %1327 = vperm.xlu0 %1326, %v1302
  %v1328 = vpop.permute.xlu0 %1327
  %1329 = vset.pattern.permute.xlu0 0
  %1330 = vperm.xlu0 %1329, %v1303
  %v1331 = vpop.permute.xlu0 %1330
  %1332 = vset.pattern.permute.xlu0 0
  %1333 = vperm.xlu0 %1332, %v1304
  %v1334 = vpop.permute.xlu0 %1333
  %1335 = vset.pattern.permute.xlu0 0
  %1336 = vperm.xlu0 %1335, %v1305
  %v1337 = vpop.permute.xlu0 %1336
  %1338 = vset.pattern.permute.xlu0 0
  %1339 = vperm.xlu0 %1338, %v1306
  %v1340 = vpop.permute.xlu0 %1339
  %1341 = vset.pattern.permute.xlu0 0
  %1342 = vperm.xlu0 %1341, %v1307
  %v1343 = vpop.permute.xlu0 %1342
  %1344 = vset.pattern.permute.xlu0 0
  %1345 = vperm.xlu0 %1344, %v1308
  %v1346 = vpop.permute.xlu0 %1345
  %1347 = vset.pattern.permute.xlu0 0
  %1348 = vperm.xlu0 %1347, %v1309
  %v1349 = vpop.permute.xlu0 %1348
  %1350 = vset.pattern.permute.xlu0 0
  %1351 = vperm.xlu0 %1350, %v1310
  %v1352 = vpop.permute.xlu0 %1351
  %1353 = vset.pattern.permute.xlu0 0
  %1354 = vperm.xlu0 %1353, %v1311
  %v1355 = vpop.permute.xlu0 %1354
  %1356 = vset.pattern.permute.xlu0 0
  %1357 = vperm.xlu0 %1356, %v1312
  %v1358 = vpop.permute.xlu0 %1357
  %1359 = vset.pattern.permute.xlu0 0
  %1360 = vperm.xlu0 %1359, %v1313
  %v1361 = vpop.permute.xlu0 %1360
  %vm1362 = vcmp.eq.s32.totalorder %v1316, 1
  %vm1363 = vcmp.eq.s32.totalorder %v1319, 1
  %vm1364 = vcmp.eq.s32.totalorder %v1322, 1
  %vm1365 = vcmp.eq.s32.totalorder %v1325, 1
  %vm1366 = vcmp.eq.s32.totalorder %v1328, 1
  %vm1367 = vcmp.eq.s32.totalorder %v1331, 1
  %vm1368 = vcmp.eq.s32.totalorder %v1334, 1
  %vm1369 = vcmp.eq.s32.totalorder %v1337, 1
  %vm1370 = vcmp.eq.s32.totalorder %v1340, 1
  %vm1371 = vcmp.eq.s32.totalorder %v1343, 1
  %vm1372 = vcmp.eq.s32.totalorder %v1346, 1
  %vm1373 = vcmp.eq.s32.totalorder %v1349, 1
  %vm1374 = vcmp.eq.s32.totalorder %v1352, 1
  %vm1375 = vcmp.eq.s32.totalorder %v1355, 1
  %vm1376 = vcmp.eq.s32.totalorder %v1358, 1
  %vm1377 = vcmp.eq.s32.totalorder %v1361, 1
  %v1378 = vperm.slane %v109, 1
  %v1379 = vperm.slane %v1021, 1
  %v1380 = vsel %vm1362, %v1378, %v1250
  %v1381 = vsel %vm1362, %v1379, %v1251
  %v1382 = vsel %vm1363, %v1378, %v1252
  %v1383 = vsel %vm1363, %v1379, %v1253
  %v1384 = vsel %vm1364, %v1378, %v1254
  %v1385 = vsel %vm1364, %v1379, %v1255
  %v1386 = vsel %vm1365, %v1378, %v1256
  %v1387 = vsel %vm1365, %v1379, %v1257
  %v1388 = vsel %vm1366, %v1378, %v1258
  %v1389 = vsel %vm1366, %v1379, %v1259
  %v1390 = vsel %vm1367, %v1378, %v1260
  %v1391 = vsel %vm1367, %v1379, %v1261
  %v1392 = vsel %vm1368, %v1378, %v1262
  %v1393 = vsel %vm1368, %v1379, %v1263
  %v1394 = vsel %vm1369, %v1378, %v1264
  %v1395 = vsel %vm1369, %v1379, %v1265
  %v1396 = vsel %vm1370, %v1378, %v1266
  %v1397 = vsel %vm1370, %v1379, %v1267
  %v1398 = vsel %vm1371, %v1378, %v1268
  %v1399 = vsel %vm1371, %v1379, %v1269
  %v1400 = vsel %vm1372, %v1378, %v1270
  %v1401 = vsel %vm1372, %v1379, %v1271
  %v1402 = vsel %vm1373, %v1378, %v1272
  %v1403 = vsel %vm1373, %v1379, %v1273
  %v1404 = vsel %vm1374, %v1378, %v1274
  %v1405 = vsel %vm1374, %v1379, %v1275
  %v1406 = vsel %vm1375, %v1378, %v1276
  %v1407 = vsel %vm1375, %v1379, %v1277
  %v1408 = vsel %vm1376, %v1378, %v1278
  %v1409 = vsel %vm1376, %v1379, %v1279
  %v1410 = vsel %vm1377, %v1378, %v1280
  %v1411 = vsel %vm1377, %v1379, %v1281
  %vm1412 = vcmp.eq.s32.totalorder %v73, 10
  %vm1413 = vcmp.eq.s32.totalorder %v74, 10
  %vm1414 = vcmp.eq.s32.totalorder %v75, 10
  %vm1415 = vcmp.eq.s32.totalorder %v76, 10
  %vm1416 = vcmp.eq.s32.totalorder %v77, 10
  %vm1417 = vcmp.eq.s32.totalorder %v78, 10
  %vm1418 = vcmp.eq.s32.totalorder %v79, 10
  %vm1419 = vcmp.eq.s32.totalorder %v80, 10
  %vm1420 = vcmp.eq.s32.totalorder %v81, 10
  %vm1421 = vcmp.eq.s32.totalorder %v82, 10
  %vm1422 = vcmp.eq.s32.totalorder %v83, 10
  %vm1423 = vcmp.eq.s32.totalorder %v84, 10
  %vm1424 = vcmp.eq.s32.totalorder %v85, 10
  %vm1425 = vcmp.eq.s32.totalorder %v86, 10
  %vm1426 = vcmp.eq.s32.totalorder %v87, 10
  %vm1427 = vcmp.eq.s32.totalorder %v88, 10
  %v1428 = vsel %vm1412, 1, 0
  %v1429 = vsel %vm1413, 1, 0
  %v1430 = vsel %vm1414, 1, 0
  %v1431 = vsel %vm1415, 1, 0
  %v1432 = vsel %vm1416, 1, 0
  %v1433 = vsel %vm1417, 1, 0
  %v1434 = vsel %vm1418, 1, 0
  %v1435 = vsel %vm1419, 1, 0
  %v1436 = vsel %vm1420, 1, 0
  %v1437 = vsel %vm1421, 1, 0
  %v1438 = vsel %vm1422, 1, 0
  %v1439 = vsel %vm1423, 1, 0
  %v1440 = vsel %vm1424, 1, 0
  %v1441 = vsel %vm1425, 1, 0
  %v1442 = vsel %vm1426, 1, 0
  %v1443 = vsel %vm1427, 1, 0
  %1444 = vset.pattern.permute.xlu0 0
  %1445 = vperm.xlu0 %1444, %v1428
  %v1446 = vpop.permute.xlu0 %1445
  %1447 = vset.pattern.permute.xlu0 0
  %1448 = vperm.xlu0 %1447, %v1429
  %v1449 = vpop.permute.xlu0 %1448
  %1450 = vset.pattern.permute.xlu0 0
  %1451 = vperm.xlu0 %1450, %v1430
  %v1452 = vpop.permute.xlu0 %1451
  %1453 = vset.pattern.permute.xlu0 0
  %1454 = vperm.xlu0 %1453, %v1431
  %v1455 = vpop.permute.xlu0 %1454
  %1456 = vset.pattern.permute.xlu0 0
  %1457 = vperm.xlu0 %1456, %v1432
  %v1458 = vpop.permute.xlu0 %1457
  %1459 = vset.pattern.permute.xlu0 0
  %1460 = vperm.xlu0 %1459, %v1433
  %v1461 = vpop.permute.xlu0 %1460
  %1462 = vset.pattern.permute.xlu0 0
  %1463 = vperm.xlu0 %1462, %v1434
  %v1464 = vpop.permute.xlu0 %1463
  %1465 = vset.pattern.permute.xlu0 0
  %1466 = vperm.xlu0 %1465, %v1435
  %v1467 = vpop.permute.xlu0 %1466
  %1468 = vset.pattern.permute.xlu0 0
  %1469 = vperm.xlu0 %1468, %v1436
  %v1470 = vpop.permute.xlu0 %1469
  %1471 = vset.pattern.permute.xlu0 0
  %1472 = vperm.xlu0 %1471, %v1437
  %v1473 = vpop.permute.xlu0 %1472
  %1474 = vset.pattern.permute.xlu0 0
  %1475 = vperm.xlu0 %1474, %v1438
  %v1476 = vpop.permute.xlu0 %1475
  %1477 = vset.pattern.permute.xlu0 0
  %1478 = vperm.xlu0 %1477, %v1439
  %v1479 = vpop.permute.xlu0 %1478
  %1480 = vset.pattern.permute.xlu0 0
  %1481 = vperm.xlu0 %1480, %v1440
  %v1482 = vpop.permute.xlu0 %1481
  %1483 = vset.pattern.permute.xlu0 0
  %1484 = vperm.xlu0 %1483, %v1441
  %v1485 = vpop.permute.xlu0 %1484
  %1486 = vset.pattern.permute.xlu0 0
  %1487 = vperm.xlu0 %1486, %v1442
  %v1488 = vpop.permute.xlu0 %1487
  %1489 = vset.pattern.permute.xlu0 0
  %1490 = vperm.xlu0 %1489, %v1443
  %v1491 = vpop.permute.xlu0 %1490
  %vm1492 = vcmp.eq.s32.totalorder %v1446, 1
  %vm1493 = vcmp.eq.s32.totalorder %v1449, 1
  %vm1494 = vcmp.eq.s32.totalorder %v1452, 1
  %vm1495 = vcmp.eq.s32.totalorder %v1455, 1
  %vm1496 = vcmp.eq.s32.totalorder %v1458, 1
  %vm1497 = vcmp.eq.s32.totalorder %v1461, 1
  %vm1498 = vcmp.eq.s32.totalorder %v1464, 1
  %vm1499 = vcmp.eq.s32.totalorder %v1467, 1
  %vm1500 = vcmp.eq.s32.totalorder %v1470, 1
  %vm1501 = vcmp.eq.s32.totalorder %v1473, 1
  %vm1502 = vcmp.eq.s32.totalorder %v1476, 1
  %vm1503 = vcmp.eq.s32.totalorder %v1479, 1
  %vm1504 = vcmp.eq.s32.totalorder %v1482, 1
  %vm1505 = vcmp.eq.s32.totalorder %v1485, 1
  %vm1506 = vcmp.eq.s32.totalorder %v1488, 1
  %vm1507 = vcmp.eq.s32.totalorder %v1491, 1
  %v1508 = vperm.slane %v109, 2
  %v1509 = vperm.slane %v1021, 2
  %v1510 = vsel %vm1492, %v1508, %v1380
  %v1511 = vsel %vm1492, %v1509, %v1381
  %v1512 = vsel %vm1493, %v1508, %v1382
  %v1513 = vsel %vm1493, %v1509, %v1383
  %v1514 = vsel %vm1494, %v1508, %v1384
  %v1515 = vsel %vm1494, %v1509, %v1385
  %v1516 = vsel %vm1495, %v1508, %v1386
  %v1517 = vsel %vm1495, %v1509, %v1387
  %v1518 = vsel %vm1496, %v1508, %v1388
  %v1519 = vsel %vm1496, %v1509, %v1389
  %v1520 = vsel %vm1497, %v1508, %v1390
  %v1521 = vsel %vm1497, %v1509, %v1391
  %v1522 = vsel %vm1498, %v1508, %v1392
  %v1523 = vsel %vm1498, %v1509, %v1393
  %v1524 = vsel %vm1499, %v1508, %v1394
  %v1525 = vsel %vm1499, %v1509, %v1395
  %v1526 = vsel %vm1500, %v1508, %v1396
  %v1527 = vsel %vm1500, %v1509, %v1397
  %v1528 = vsel %vm1501, %v1508, %v1398
  %v1529 = vsel %vm1501, %v1509, %v1399
  %v1530 = vsel %vm1502, %v1508, %v1400
  %v1531 = vsel %vm1502, %v1509, %v1401
  %v1532 = vsel %vm1503, %v1508, %v1402
  %v1533 = vsel %vm1503, %v1509, %v1403
  %v1534 = vsel %vm1504, %v1508, %v1404
  %v1535 = vsel %vm1504, %v1509, %v1405
  %v1536 = vsel %vm1505, %v1508, %v1406
  %v1537 = vsel %vm1505, %v1509, %v1407
  %v1538 = vsel %vm1506, %v1508, %v1408
  %v1539 = vsel %vm1506, %v1509, %v1409
  %v1540 = vsel %vm1507, %v1508, %v1410
  %v1541 = vsel %vm1507, %v1509, %v1411
  %vm1542 = vcmp.eq.s32.totalorder %v73, 11
  %vm1543 = vcmp.eq.s32.totalorder %v74, 11
  %vm1544 = vcmp.eq.s32.totalorder %v75, 11
  %vm1545 = vcmp.eq.s32.totalorder %v76, 11
  %vm1546 = vcmp.eq.s32.totalorder %v77, 11
  %vm1547 = vcmp.eq.s32.totalorder %v78, 11
  %vm1548 = vcmp.eq.s32.totalorder %v79, 11
  %vm1549 = vcmp.eq.s32.totalorder %v80, 11
  %vm1550 = vcmp.eq.s32.totalorder %v81, 11
  %vm1551 = vcmp.eq.s32.totalorder %v82, 11
  %vm1552 = vcmp.eq.s32.totalorder %v83, 11
  %vm1553 = vcmp.eq.s32.totalorder %v84, 11
  %vm1554 = vcmp.eq.s32.totalorder %v85, 11
  %vm1555 = vcmp.eq.s32.totalorder %v86, 11
  %vm1556 = vcmp.eq.s32.totalorder %v87, 11
  %vm1557 = vcmp.eq.s32.totalorder %v88, 11
  %v1558 = vsel %vm1542, 1, 0
  %v1559 = vsel %vm1543, 1, 0
  %v1560 = vsel %vm1544, 1, 0
  %v1561 = vsel %vm1545, 1, 0
  %v1562 = vsel %vm1546, 1, 0
  %v1563 = vsel %vm1547, 1, 0
  %v1564 = vsel %vm1548, 1, 0
  %v1565 = vsel %vm1549, 1, 0
  %v1566 = vsel %vm1550, 1, 0
  %v1567 = vsel %vm1551, 1, 0
  %v1568 = vsel %vm1552, 1, 0
  %v1569 = vsel %vm1553, 1, 0
  %v1570 = vsel %vm1554, 1, 0
  %v1571 = vsel %vm1555, 1, 0
  %v1572 = vsel %vm1556, 1, 0
  %v1573 = vsel %vm1557, 1, 0
  %1574 = vset.pattern.permute.xlu0 0
  %1575 = vperm.xlu0 %1574, %v1558
  %v1576 = vpop.permute.xlu0 %1575
  %1577 = vset.pattern.permute.xlu0 0
  %1578 = vperm.xlu0 %1577, %v1559
  %v1579 = vpop.permute.xlu0 %1578
  %1580 = vset.pattern.permute.xlu0 0
  %1581 = vperm.xlu0 %1580, %v1560
  %v1582 = vpop.permute.xlu0 %1581
  %1583 = vset.pattern.permute.xlu0 0
  %1584 = vperm.xlu0 %1583, %v1561
  %v1585 = vpop.permute.xlu0 %1584
  %1586 = vset.pattern.permute.xlu0 0
  %1587 = vperm.xlu0 %1586, %v1562
  %v1588 = vpop.permute.xlu0 %1587
  %1589 = vset.pattern.permute.xlu0 0
  %1590 = vperm.xlu0 %1589, %v1563
  %v1591 = vpop.permute.xlu0 %1590
  %1592 = vset.pattern.permute.xlu0 0
  %1593 = vperm.xlu0 %1592, %v1564
  %v1594 = vpop.permute.xlu0 %1593
  %1595 = vset.pattern.permute.xlu0 0
  %1596 = vperm.xlu0 %1595, %v1565
  %v1597 = vpop.permute.xlu0 %1596
  %1598 = vset.pattern.permute.xlu0 0
  %1599 = vperm.xlu0 %1598, %v1566
  %v1600 = vpop.permute.xlu0 %1599
  %1601 = vset.pattern.permute.xlu0 0
  %1602 = vperm.xlu0 %1601, %v1567
  %v1603 = vpop.permute.xlu0 %1602
  %1604 = vset.pattern.permute.xlu0 0
  %1605 = vperm.xlu0 %1604, %v1568
  %v1606 = vpop.permute.xlu0 %1605
  %1607 = vset.pattern.permute.xlu0 0
  %1608 = vperm.xlu0 %1607, %v1569
  %v1609 = vpop.permute.xlu0 %1608
  %1610 = vset.pattern.permute.xlu0 0
  %1611 = vperm.xlu0 %1610, %v1570
  %v1612 = vpop.permute.xlu0 %1611
  %1613 = vset.pattern.permute.xlu0 0
  %1614 = vperm.xlu0 %1613, %v1571
  %v1615 = vpop.permute.xlu0 %1614
  %1616 = vset.pattern.permute.xlu0 0
  %1617 = vperm.xlu0 %1616, %v1572
  %v1618 = vpop.permute.xlu0 %1617
  %1619 = vset.pattern.permute.xlu0 0
  %1620 = vperm.xlu0 %1619, %v1573
  %v1621 = vpop.permute.xlu0 %1620
  %vm1622 = vcmp.eq.s32.totalorder %v1576, 1
  %vm1623 = vcmp.eq.s32.totalorder %v1579, 1
  %vm1624 = vcmp.eq.s32.totalorder %v1582, 1
  %vm1625 = vcmp.eq.s32.totalorder %v1585, 1
  %vm1626 = vcmp.eq.s32.totalorder %v1588, 1
  %vm1627 = vcmp.eq.s32.totalorder %v1591, 1
  %vm1628 = vcmp.eq.s32.totalorder %v1594, 1
  %vm1629 = vcmp.eq.s32.totalorder %v1597, 1
  %vm1630 = vcmp.eq.s32.totalorder %v1600, 1
  %vm1631 = vcmp.eq.s32.totalorder %v1603, 1
  %vm1632 = vcmp.eq.s32.totalorder %v1606, 1
  %vm1633 = vcmp.eq.s32.totalorder %v1609, 1
  %vm1634 = vcmp.eq.s32.totalorder %v1612, 1
  %vm1635 = vcmp.eq.s32.totalorder %v1615, 1
  %vm1636 = vcmp.eq.s32.totalorder %v1618, 1
  %vm1637 = vcmp.eq.s32.totalorder %v1621, 1
  %v1638 = vperm.slane %v109, 3
  %v1639 = vperm.slane %v1021, 3
  %v1640 = vsel %vm1622, %v1638, %v1510
  %v1641 = vsel %vm1622, %v1639, %v1511
  %v1642 = vsel %vm1623, %v1638, %v1512
  %v1643 = vsel %vm1623, %v1639, %v1513
  %v1644 = vsel %vm1624, %v1638, %v1514
  %v1645 = vsel %vm1624, %v1639, %v1515
  %v1646 = vsel %vm1625, %v1638, %v1516
  %v1647 = vsel %vm1625, %v1639, %v1517
  %v1648 = vsel %vm1626, %v1638, %v1518
  %v1649 = vsel %vm1626, %v1639, %v1519
  %v1650 = vsel %vm1627, %v1638, %v1520
  %v1651 = vsel %vm1627, %v1639, %v1521
  %v1652 = vsel %vm1628, %v1638, %v1522
  %v1653 = vsel %vm1628, %v1639, %v1523
  %v1654 = vsel %vm1629, %v1638, %v1524
  %v1655 = vsel %vm1629, %v1639, %v1525
  %v1656 = vsel %vm1630, %v1638, %v1526
  %v1657 = vsel %vm1630, %v1639, %v1527
  %v1658 = vsel %vm1631, %v1638, %v1528
  %v1659 = vsel %vm1631, %v1639, %v1529
  %v1660 = vsel %vm1632, %v1638, %v1530
  %v1661 = vsel %vm1632, %v1639, %v1531
  %v1662 = vsel %vm1633, %v1638, %v1532
  %v1663 = vsel %vm1633, %v1639, %v1533
  %v1664 = vsel %vm1634, %v1638, %v1534
  %v1665 = vsel %vm1634, %v1639, %v1535
  %v1666 = vsel %vm1635, %v1638, %v1536
  %v1667 = vsel %vm1635, %v1639, %v1537
  %v1668 = vsel %vm1636, %v1638, %v1538
  %v1669 = vsel %vm1636, %v1639, %v1539
  %v1670 = vsel %vm1637, %v1638, %v1540
  %v1671 = vsel %vm1637, %v1639, %v1541
  %vm1672 = vcmp.eq.s32.totalorder %v73, 12
  %vm1673 = vcmp.eq.s32.totalorder %v74, 12
  %vm1674 = vcmp.eq.s32.totalorder %v75, 12
  %vm1675 = vcmp.eq.s32.totalorder %v76, 12
  %vm1676 = vcmp.eq.s32.totalorder %v77, 12
  %vm1677 = vcmp.eq.s32.totalorder %v78, 12
  %vm1678 = vcmp.eq.s32.totalorder %v79, 12
  %vm1679 = vcmp.eq.s32.totalorder %v80, 12
  %vm1680 = vcmp.eq.s32.totalorder %v81, 12
  %vm1681 = vcmp.eq.s32.totalorder %v82, 12
  %vm1682 = vcmp.eq.s32.totalorder %v83, 12
  %vm1683 = vcmp.eq.s32.totalorder %v84, 12
  %vm1684 = vcmp.eq.s32.totalorder %v85, 12
  %vm1685 = vcmp.eq.s32.totalorder %v86, 12
  %vm1686 = vcmp.eq.s32.totalorder %v87, 12
  %vm1687 = vcmp.eq.s32.totalorder %v88, 12
  %v1688 = vsel %vm1672, 1, 0
  %v1689 = vsel %vm1673, 1, 0
  %v1690 = vsel %vm1674, 1, 0
  %v1691 = vsel %vm1675, 1, 0
  %v1692 = vsel %vm1676, 1, 0
  %v1693 = vsel %vm1677, 1, 0
  %v1694 = vsel %vm1678, 1, 0
  %v1695 = vsel %vm1679, 1, 0
  %v1696 = vsel %vm1680, 1, 0
  %v1697 = vsel %vm1681, 1, 0
  %v1698 = vsel %vm1682, 1, 0
  %v1699 = vsel %vm1683, 1, 0
  %v1700 = vsel %vm1684, 1, 0
  %v1701 = vsel %vm1685, 1, 0
  %v1702 = vsel %vm1686, 1, 0
  %v1703 = vsel %vm1687, 1, 0
  %1704 = vset.pattern.permute.xlu0 0
  %1705 = vperm.xlu0 %1704, %v1688
  %v1706 = vpop.permute.xlu0 %1705
  %1707 = vset.pattern.permute.xlu0 0
  %1708 = vperm.xlu0 %1707, %v1689
  %v1709 = vpop.permute.xlu0 %1708
  %1710 = vset.pattern.permute.xlu0 0
  %1711 = vperm.xlu0 %1710, %v1690
  %v1712 = vpop.permute.xlu0 %1711
  %1713 = vset.pattern.permute.xlu0 0
  %1714 = vperm.xlu0 %1713, %v1691
  %v1715 = vpop.permute.xlu0 %1714
  %1716 = vset.pattern.permute.xlu0 0
  %1717 = vperm.xlu0 %1716, %v1692
  %v1718 = vpop.permute.xlu0 %1717
  %1719 = vset.pattern.permute.xlu0 0
  %1720 = vperm.xlu0 %1719, %v1693
  %v1721 = vpop.permute.xlu0 %1720
  %1722 = vset.pattern.permute.xlu0 0
  %1723 = vperm.xlu0 %1722, %v1694
  %v1724 = vpop.permute.xlu0 %1723
  %1725 = vset.pattern.permute.xlu0 0
  %1726 = vperm.xlu0 %1725, %v1695
  %v1727 = vpop.permute.xlu0 %1726
  %1728 = vset.pattern.permute.xlu0 0
  %1729 = vperm.xlu0 %1728, %v1696
  %v1730 = vpop.permute.xlu0 %1729
  %1731 = vset.pattern.permute.xlu0 0
  %1732 = vperm.xlu0 %1731, %v1697
  %v1733 = vpop.permute.xlu0 %1732
  %1734 = vset.pattern.permute.xlu0 0
  %1735 = vperm.xlu0 %1734, %v1698
  %v1736 = vpop.permute.xlu0 %1735
  %1737 = vset.pattern.permute.xlu0 0
  %1738 = vperm.xlu0 %1737, %v1699
  %v1739 = vpop.permute.xlu0 %1738
  %1740 = vset.pattern.permute.xlu0 0
  %1741 = vperm.xlu0 %1740, %v1700
  %v1742 = vpop.permute.xlu0 %1741
  %1743 = vset.pattern.permute.xlu0 0
  %1744 = vperm.xlu0 %1743, %v1701
  %v1745 = vpop.permute.xlu0 %1744
  %1746 = vset.pattern.permute.xlu0 0
  %1747 = vperm.xlu0 %1746, %v1702
  %v1748 = vpop.permute.xlu0 %1747
  %1749 = vset.pattern.permute.xlu0 0
  %1750 = vperm.xlu0 %1749, %v1703
  %v1751 = vpop.permute.xlu0 %1750
  %vm1752 = vcmp.eq.s32.totalorder %v1706, 1
  %vm1753 = vcmp.eq.s32.totalorder %v1709, 1
  %vm1754 = vcmp.eq.s32.totalorder %v1712, 1
  %vm1755 = vcmp.eq.s32.totalorder %v1715, 1
  %vm1756 = vcmp.eq.s32.totalorder %v1718, 1
  %vm1757 = vcmp.eq.s32.totalorder %v1721, 1
  %vm1758 = vcmp.eq.s32.totalorder %v1724, 1
  %vm1759 = vcmp.eq.s32.totalorder %v1727, 1
  %vm1760 = vcmp.eq.s32.totalorder %v1730, 1
  %vm1761 = vcmp.eq.s32.totalorder %v1733, 1
  %vm1762 = vcmp.eq.s32.totalorder %v1736, 1
  %vm1763 = vcmp.eq.s32.totalorder %v1739, 1
  %vm1764 = vcmp.eq.s32.totalorder %v1742, 1
  %vm1765 = vcmp.eq.s32.totalorder %v1745, 1
  %vm1766 = vcmp.eq.s32.totalorder %v1748, 1
  %vm1767 = vcmp.eq.s32.totalorder %v1751, 1
  %v1768 = vperm.slane %v109, 4
  %v1769 = vperm.slane %v1021, 4
  %v1770 = vsel %vm1752, %v1768, %v1640
  %v1771 = vsel %vm1752, %v1769, %v1641
  %v1772 = vsel %vm1753, %v1768, %v1642
  %v1773 = vsel %vm1753, %v1769, %v1643
  %v1774 = vsel %vm1754, %v1768, %v1644
  %v1775 = vsel %vm1754, %v1769, %v1645
  %v1776 = vsel %vm1755, %v1768, %v1646
  %v1777 = vsel %vm1755, %v1769, %v1647
  %v1778 = vsel %vm1756, %v1768, %v1648
  %v1779 = vsel %vm1756, %v1769, %v1649
  %v1780 = vsel %vm1757, %v1768, %v1650
  %v1781 = vsel %vm1757, %v1769, %v1651
  %v1782 = vsel %vm1758, %v1768, %v1652
  %v1783 = vsel %vm1758, %v1769, %v1653
  %v1784 = vsel %vm1759, %v1768, %v1654
  %v1785 = vsel %vm1759, %v1769, %v1655
  %v1786 = vsel %vm1760, %v1768, %v1656
  %v1787 = vsel %vm1760, %v1769, %v1657
  %v1788 = vsel %vm1761, %v1768, %v1658
  %v1789 = vsel %vm1761, %v1769, %v1659
  %v1790 = vsel %vm1762, %v1768, %v1660
  %v1791 = vsel %vm1762, %v1769, %v1661
  %v1792 = vsel %vm1763, %v1768, %v1662
  %v1793 = vsel %vm1763, %v1769, %v1663
  %v1794 = vsel %vm1764, %v1768, %v1664
  %v1795 = vsel %vm1764, %v1769, %v1665
  %v1796 = vsel %vm1765, %v1768, %v1666
  %v1797 = vsel %vm1765, %v1769, %v1667
  %v1798 = vsel %vm1766, %v1768, %v1668
  %v1799 = vsel %vm1766, %v1769, %v1669
  %v1800 = vsel %vm1767, %v1768, %v1670
  %v1801 = vsel %vm1767, %v1769, %v1671
  %vm1802 = vcmp.eq.s32.totalorder %v73, 13
  %vm1803 = vcmp.eq.s32.totalorder %v74, 13
  %vm1804 = vcmp.eq.s32.totalorder %v75, 13
  %vm1805 = vcmp.eq.s32.totalorder %v76, 13
  %vm1806 = vcmp.eq.s32.totalorder %v77, 13
  %vm1807 = vcmp.eq.s32.totalorder %v78, 13
  %vm1808 = vcmp.eq.s32.totalorder %v79, 13
  %vm1809 = vcmp.eq.s32.totalorder %v80, 13
  %vm1810 = vcmp.eq.s32.totalorder %v81, 13
  %vm1811 = vcmp.eq.s32.totalorder %v82, 13
  %vm1812 = vcmp.eq.s32.totalorder %v83, 13
  %vm1813 = vcmp.eq.s32.totalorder %v84, 13
  %vm1814 = vcmp.eq.s32.totalorder %v85, 13
  %vm1815 = vcmp.eq.s32.totalorder %v86, 13
  %vm1816 = vcmp.eq.s32.totalorder %v87, 13
  %vm1817 = vcmp.eq.s32.totalorder %v88, 13
  %v1818 = vsel %vm1802, 1, 0
  %v1819 = vsel %vm1803, 1, 0
  %v1820 = vsel %vm1804, 1, 0
  %v1821 = vsel %vm1805, 1, 0
  %v1822 = vsel %vm1806, 1, 0
  %v1823 = vsel %vm1807, 1, 0
  %v1824 = vsel %vm1808, 1, 0
  %v1825 = vsel %vm1809, 1, 0
  %v1826 = vsel %vm1810, 1, 0
  %v1827 = vsel %vm1811, 1, 0
  %v1828 = vsel %vm1812, 1, 0
  %v1829 = vsel %vm1813, 1, 0
  %v1830 = vsel %vm1814, 1, 0
  %v1831 = vsel %vm1815, 1, 0
  %v1832 = vsel %vm1816, 1, 0
  %v1833 = vsel %vm1817, 1, 0
  %1834 = vset.pattern.permute.xlu0 0
  %1835 = vperm.xlu0 %1834, %v1818
  %v1836 = vpop.permute.xlu0 %1835
  %1837 = vset.pattern.permute.xlu0 0
  %1838 = vperm.xlu0 %1837, %v1819
  %v1839 = vpop.permute.xlu0 %1838
  %1840 = vset.pattern.permute.xlu0 0
  %1841 = vperm.xlu0 %1840, %v1820
  %v1842 = vpop.permute.xlu0 %1841
  %1843 = vset.pattern.permute.xlu0 0
  %1844 = vperm.xlu0 %1843, %v1821
  %v1845 = vpop.permute.xlu0 %1844
  %1846 = vset.pattern.permute.xlu0 0
  %1847 = vperm.xlu0 %1846, %v1822
  %v1848 = vpop.permute.xlu0 %1847
  %1849 = vset.pattern.permute.xlu0 0
  %1850 = vperm.xlu0 %1849, %v1823
  %v1851 = vpop.permute.xlu0 %1850
  %1852 = vset.pattern.permute.xlu0 0
  %1853 = vperm.xlu0 %1852, %v1824
  %v1854 = vpop.permute.xlu0 %1853
  %1855 = vset.pattern.permute.xlu0 0
  %1856 = vperm.xlu0 %1855, %v1825
  %v1857 = vpop.permute.xlu0 %1856
  %1858 = vset.pattern.permute.xlu0 0
  %1859 = vperm.xlu0 %1858, %v1826
  %v1860 = vpop.permute.xlu0 %1859
  %1861 = vset.pattern.permute.xlu0 0
  %1862 = vperm.xlu0 %1861, %v1827
  %v1863 = vpop.permute.xlu0 %1862
  %1864 = vset.pattern.permute.xlu0 0
  %1865 = vperm.xlu0 %1864, %v1828
  %v1866 = vpop.permute.xlu0 %1865
  %1867 = vset.pattern.permute.xlu0 0
  %1868 = vperm.xlu0 %1867, %v1829
  %v1869 = vpop.permute.xlu0 %1868
  %1870 = vset.pattern.permute.xlu0 0
  %1871 = vperm.xlu0 %1870, %v1830
  %v1872 = vpop.permute.xlu0 %1871
  %1873 = vset.pattern.permute.xlu0 0
  %1874 = vperm.xlu0 %1873, %v1831
  %v1875 = vpop.permute.xlu0 %1874
  %1876 = vset.pattern.permute.xlu0 0
  %1877 = vperm.xlu0 %1876, %v1832
  %v1878 = vpop.permute.xlu0 %1877
  %1879 = vset.pattern.permute.xlu0 0
  %1880 = vperm.xlu0 %1879, %v1833
  %v1881 = vpop.permute.xlu0 %1880
  %vm1882 = vcmp.eq.s32.totalorder %v1836, 1
  %vm1883 = vcmp.eq.s32.totalorder %v1839, 1
  %vm1884 = vcmp.eq.s32.totalorder %v1842, 1
  %vm1885 = vcmp.eq.s32.totalorder %v1845, 1
  %vm1886 = vcmp.eq.s32.totalorder %v1848, 1
  %vm1887 = vcmp.eq.s32.totalorder %v1851, 1
  %vm1888 = vcmp.eq.s32.totalorder %v1854, 1
  %vm1889 = vcmp.eq.s32.totalorder %v1857, 1
  %vm1890 = vcmp.eq.s32.totalorder %v1860, 1
  %vm1891 = vcmp.eq.s32.totalorder %v1863, 1
  %vm1892 = vcmp.eq.s32.totalorder %v1866, 1
  %vm1893 = vcmp.eq.s32.totalorder %v1869, 1
  %vm1894 = vcmp.eq.s32.totalorder %v1872, 1
  %vm1895 = vcmp.eq.s32.totalorder %v1875, 1
  %vm1896 = vcmp.eq.s32.totalorder %v1878, 1
  %vm1897 = vcmp.eq.s32.totalorder %v1881, 1
  %v1898 = vperm.slane %v109, 5
  %v1899 = vperm.slane %v1021, 5
  %v1900 = vsel %vm1882, %v1898, %v1770
  %v1901 = vsel %vm1882, %v1899, %v1771
  %v1902 = vsel %vm1883, %v1898, %v1772
  %v1903 = vsel %vm1883, %v1899, %v1773
  %v1904 = vsel %vm1884, %v1898, %v1774
  %v1905 = vsel %vm1884, %v1899, %v1775
  %v1906 = vsel %vm1885, %v1898, %v1776
  %v1907 = vsel %vm1885, %v1899, %v1777
  %v1908 = vsel %vm1886, %v1898, %v1778
  %v1909 = vsel %vm1886, %v1899, %v1779
  %v1910 = vsel %vm1887, %v1898, %v1780
  %v1911 = vsel %vm1887, %v1899, %v1781
  %v1912 = vsel %vm1888, %v1898, %v1782
  %v1913 = vsel %vm1888, %v1899, %v1783
  %v1914 = vsel %vm1889, %v1898, %v1784
  %v1915 = vsel %vm1889, %v1899, %v1785
  %v1916 = vsel %vm1890, %v1898, %v1786
  %v1917 = vsel %vm1890, %v1899, %v1787
  %v1918 = vsel %vm1891, %v1898, %v1788
  %v1919 = vsel %vm1891, %v1899, %v1789
  %v1920 = vsel %vm1892, %v1898, %v1790
  %v1921 = vsel %vm1892, %v1899, %v1791
  %v1922 = vsel %vm1893, %v1898, %v1792
  %v1923 = vsel %vm1893, %v1899, %v1793
  %v1924 = vsel %vm1894, %v1898, %v1794
  %v1925 = vsel %vm1894, %v1899, %v1795
  %v1926 = vsel %vm1895, %v1898, %v1796
  %v1927 = vsel %vm1895, %v1899, %v1797
  %v1928 = vsel %vm1896, %v1898, %v1798
  %v1929 = vsel %vm1896, %v1899, %v1799
  %v1930 = vsel %vm1897, %v1898, %v1800
  %v1931 = vsel %vm1897, %v1899, %v1801
  %vm1932 = vcmp.eq.s32.totalorder %v73, 14
  %vm1933 = vcmp.eq.s32.totalorder %v74, 14
  %vm1934 = vcmp.eq.s32.totalorder %v75, 14
  %vm1935 = vcmp.eq.s32.totalorder %v76, 14
  %vm1936 = vcmp.eq.s32.totalorder %v77, 14
  %vm1937 = vcmp.eq.s32.totalorder %v78, 14
  %vm1938 = vcmp.eq.s32.totalorder %v79, 14
  %vm1939 = vcmp.eq.s32.totalorder %v80, 14
  %vm1940 = vcmp.eq.s32.totalorder %v81, 14
  %vm1941 = vcmp.eq.s32.totalorder %v82, 14
  %vm1942 = vcmp.eq.s32.totalorder %v83, 14
  %vm1943 = vcmp.eq.s32.totalorder %v84, 14
  %vm1944 = vcmp.eq.s32.totalorder %v85, 14
  %vm1945 = vcmp.eq.s32.totalorder %v86, 14
  %vm1946 = vcmp.eq.s32.totalorder %v87, 14
  %vm1947 = vcmp.eq.s32.totalorder %v88, 14
  %v1948 = vsel %vm1932, 1, 0
  %v1949 = vsel %vm1933, 1, 0
  %v1950 = vsel %vm1934, 1, 0
  %v1951 = vsel %vm1935, 1, 0
  %v1952 = vsel %vm1936, 1, 0
  %v1953 = vsel %vm1937, 1, 0
  %v1954 = vsel %vm1938, 1, 0
  %v1955 = vsel %vm1939, 1, 0
  %v1956 = vsel %vm1940, 1, 0
  %v1957 = vsel %vm1941, 1, 0
  %v1958 = vsel %vm1942, 1, 0
  %v1959 = vsel %vm1943, 1, 0
  %v1960 = vsel %vm1944, 1, 0
  %v1961 = vsel %vm1945, 1, 0
  %v1962 = vsel %vm1946, 1, 0
  %v1963 = vsel %vm1947, 1, 0
  %1964 = vset.pattern.permute.xlu0 0
  %1965 = vperm.xlu0 %1964, %v1948
  %v1966 = vpop.permute.xlu0 %1965
  %1967 = vset.pattern.permute.xlu0 0
  %1968 = vperm.xlu0 %1967, %v1949
  %v1969 = vpop.permute.xlu0 %1968
  %1970 = vset.pattern.permute.xlu0 0
  %1971 = vperm.xlu0 %1970, %v1950
  %v1972 = vpop.permute.xlu0 %1971
  %1973 = vset.pattern.permute.xlu0 0
  %1974 = vperm.xlu0 %1973, %v1951
  %v1975 = vpop.permute.xlu0 %1974
  %1976 = vset.pattern.permute.xlu0 0
  %1977 = vperm.xlu0 %1976, %v1952
  %v1978 = vpop.permute.xlu0 %1977
  %1979 = vset.pattern.permute.xlu0 0
  %1980 = vperm.xlu0 %1979, %v1953
  %v1981 = vpop.permute.xlu0 %1980
  %1982 = vset.pattern.permute.xlu0 0
  %1983 = vperm.xlu0 %1982, %v1954
  %v1984 = vpop.permute.xlu0 %1983
  %1985 = vset.pattern.permute.xlu0 0
  %1986 = vperm.xlu0 %1985, %v1955
  %v1987 = vpop.permute.xlu0 %1986
  %1988 = vset.pattern.permute.xlu0 0
  %1989 = vperm.xlu0 %1988, %v1956
  %v1990 = vpop.permute.xlu0 %1989
  %1991 = vset.pattern.permute.xlu0 0
  %1992 = vperm.xlu0 %1991, %v1957
  %v1993 = vpop.permute.xlu0 %1992
  %1994 = vset.pattern.permute.xlu0 0
  %1995 = vperm.xlu0 %1994, %v1958
  %v1996 = vpop.permute.xlu0 %1995
  %1997 = vset.pattern.permute.xlu0 0
  %1998 = vperm.xlu0 %1997, %v1959
  %v1999 = vpop.permute.xlu0 %1998
  %2000 = vset.pattern.permute.xlu0 0
  %2001 = vperm.xlu0 %2000, %v1960
  %v2002 = vpop.permute.xlu0 %2001
  %2003 = vset.pattern.permute.xlu0 0
  %2004 = vperm.xlu0 %2003, %v1961
  %v2005 = vpop.permute.xlu0 %2004
  %2006 = vset.pattern.permute.xlu0 0
  %2007 = vperm.xlu0 %2006, %v1962
  %v2008 = vpop.permute.xlu0 %2007
  %2009 = vset.pattern.permute.xlu0 0
  %2010 = vperm.xlu0 %2009, %v1963
  %v2011 = vpop.permute.xlu0 %2010
  %vm2012 = vcmp.eq.s32.totalorder %v1966, 1
  %vm2013 = vcmp.eq.s32.totalorder %v1969, 1
  %vm2014 = vcmp.eq.s32.totalorder %v1972, 1
  %vm2015 = vcmp.eq.s32.totalorder %v1975, 1
  %vm2016 = vcmp.eq.s32.totalorder %v1978, 1
  %vm2017 = vcmp.eq.s32.totalorder %v1981, 1
  %vm2018 = vcmp.eq.s32.totalorder %v1984, 1
  %vm2019 = vcmp.eq.s32.totalorder %v1987, 1
  %vm2020 = vcmp.eq.s32.totalorder %v1990, 1
  %vm2021 = vcmp.eq.s32.totalorder %v1993, 1
  %vm2022 = vcmp.eq.s32.totalorder %v1996, 1
  %vm2023 = vcmp.eq.s32.totalorder %v1999, 1
  %vm2024 = vcmp.eq.s32.totalorder %v2002, 1
  %vm2025 = vcmp.eq.s32.totalorder %v2005, 1
  %vm2026 = vcmp.eq.s32.totalorder %v2008, 1
  %vm2027 = vcmp.eq.s32.totalorder %v2011, 1
  %v2028 = vperm.slane %v109, 6
  %v2029 = vperm.slane %v1021, 6
  %v2030 = vsel %vm2012, %v2028, %v1900
  %v2031 = vsel %vm2012, %v2029, %v1901
  %v2032 = vsel %vm2013, %v2028, %v1902
  %v2033 = vsel %vm2013, %v2029, %v1903
  %v2034 = vsel %vm2014, %v2028, %v1904
  %v2035 = vsel %vm2014, %v2029, %v1905
  %v2036 = vsel %vm2015, %v2028, %v1906
  %v2037 = vsel %vm2015, %v2029, %v1907
  %v2038 = vsel %vm2016, %v2028, %v1908
  %v2039 = vsel %vm2016, %v2029, %v1909
  %v2040 = vsel %vm2017, %v2028, %v1910
  %v2041 = vsel %vm2017, %v2029, %v1911
  %v2042 = vsel %vm2018, %v2028, %v1912
  %v2043 = vsel %vm2018, %v2029, %v1913
  %v2044 = vsel %vm2019, %v2028, %v1914
  %v2045 = vsel %vm2019, %v2029, %v1915
  %v2046 = vsel %vm2020, %v2028, %v1916
  %v2047 = vsel %vm2020, %v2029, %v1917
  %v2048 = vsel %vm2021, %v2028, %v1918
  %v2049 = vsel %vm2021, %v2029, %v1919
  %v2050 = vsel %vm2022, %v2028, %v1920
  %v2051 = vsel %vm2022, %v2029, %v1921
  %v2052 = vsel %vm2023, %v2028, %v1922
  %v2053 = vsel %vm2023, %v2029, %v1923
  %v2054 = vsel %vm2024, %v2028, %v1924
  %v2055 = vsel %vm2024, %v2029, %v1925
  %v2056 = vsel %vm2025, %v2028, %v1926
  %v2057 = vsel %vm2025, %v2029, %v1927
  %v2058 = vsel %vm2026, %v2028, %v1928
  %v2059 = vsel %vm2026, %v2029, %v1929
  %v2060 = vsel %vm2027, %v2028, %v1930
  %v2061 = vsel %vm2027, %v2029, %v1931
  %2062 = vset.pattern.permute.xlu0 0
  %2063 = vperm.xlu0 %2062, %v89
  %v2064 = vpop.permute.xlu0 %2063
  %2065 = vset.pattern.permute.xlu0 0
  %2066 = vperm.xlu0 %2065, %v90
  %v2067 = vpop.permute.xlu0 %2066
  %2068 = vset.pattern.permute.xlu0 0
  %2069 = vperm.xlu0 %2068, %v91
  %v2070 = vpop.permute.xlu0 %2069
  %2071 = vset.pattern.permute.xlu0 0
  %2072 = vperm.xlu0 %2071, %v92
  %v2073 = vpop.permute.xlu0 %2072
  %2074 = vset.pattern.permute.xlu0 0
  %2075 = vperm.xlu0 %2074, %v93
  %v2076 = vpop.permute.xlu0 %2075
  %2077 = vset.pattern.permute.xlu0 0
  %2078 = vperm.xlu0 %2077, %v94
  %v2079 = vpop.permute.xlu0 %2078
  %2080 = vset.pattern.permute.xlu0 0
  %2081 = vperm.xlu0 %2080, %v95
  %v2082 = vpop.permute.xlu0 %2081
  %2083 = vset.pattern.permute.xlu0 0
  %2084 = vperm.xlu0 %2083, %v96
  %v2085 = vpop.permute.xlu0 %2084
  %2086 = vset.pattern.permute.xlu0 0
  %2087 = vperm.xlu0 %2086, %v97
  %v2088 = vpop.permute.xlu0 %2087
  %2089 = vset.pattern.permute.xlu0 0
  %2090 = vperm.xlu0 %2089, %v98
  %v2091 = vpop.permute.xlu0 %2090
  %2092 = vset.pattern.permute.xlu0 0
  %2093 = vperm.xlu0 %2092, %v99
  %v2094 = vpop.permute.xlu0 %2093
  %2095 = vset.pattern.permute.xlu0 0
  %2096 = vperm.xlu0 %2095, %v100
  %v2097 = vpop.permute.xlu0 %2096
  %2098 = vset.pattern.permute.xlu0 0
  %2099 = vperm.xlu0 %2098, %v101
  %v2100 = vpop.permute.xlu0 %2099
  %2101 = vset.pattern.permute.xlu0 0
  %2102 = vperm.xlu0 %2101, %v102
  %v2103 = vpop.permute.xlu0 %2102
  %2104 = vset.pattern.permute.xlu0 0
  %2105 = vperm.xlu0 %2104, %v103
  %v2106 = vpop.permute.xlu0 %2105
  %2107 = vset.pattern.permute.xlu0 0
  %2108 = vperm.xlu0 %2107, %v104
  %v2109 = vpop.permute.xlu0 %2108
  %vm2110 = vcmp.eq.s32.totalorder %v106, %v2064
  %vm2111 = vcmp.eq.s32.totalorder %v107, %v2064
  %vm2112 = vcmp.eq.s32.totalorder %v106, %v2067
  %vm2113 = vcmp.eq.s32.totalorder %v107, %v2067
  %vm2114 = vcmp.eq.s32.totalorder %v106, %v2070
  %vm2115 = vcmp.eq.s32.totalorder %v107, %v2070
  %vm2116 = vcmp.eq.s32.totalorder %v106, %v2073
  %vm2117 = vcmp.eq.s32.totalorder %v107, %v2073
  %vm2118 = vcmp.eq.s32.totalorder %v106, %v2076
  %vm2119 = vcmp.eq.s32.totalorder %v107, %v2076
  %vm2120 = vcmp.eq.s32.totalorder %v106, %v2079
  %vm2121 = vcmp.eq.s32.totalorder %v107, %v2079
  %vm2122 = vcmp.eq.s32.totalorder %v106, %v2082
  %vm2123 = vcmp.eq.s32.totalorder %v107, %v2082
  %vm2124 = vcmp.eq.s32.totalorder %v106, %v2085
  %vm2125 = vcmp.eq.s32.totalorder %v107, %v2085
  %vm2126 = vcmp.eq.s32.totalorder %v106, %v2088
  %vm2127 = vcmp.eq.s32.totalorder %v107, %v2088
  %vm2128 = vcmp.eq.s32.totalorder %v106, %v2091
  %vm2129 = vcmp.eq.s32.totalorder %v107, %v2091
  %vm2130 = vcmp.eq.s32.totalorder %v106, %v2094
  %vm2131 = vcmp.eq.s32.totalorder %v107, %v2094
  %vm2132 = vcmp.eq.s32.totalorder %v106, %v2097
  %vm2133 = vcmp.eq.s32.totalorder %v107, %v2097
  %vm2134 = vcmp.eq.s32.totalorder %v106, %v2100
  %vm2135 = vcmp.eq.s32.totalorder %v107, %v2100
  %vm2136 = vcmp.eq.s32.totalorder %v106, %v2103
  %vm2137 = vcmp.eq.s32.totalorder %v107, %v2103
  %vm2138 = vcmp.eq.s32.totalorder %v106, %v2106
  %vm2139 = vcmp.eq.s32.totalorder %v107, %v2106
  %vm2140 = vcmp.eq.s32.totalorder %v106, %v2109
  %vm2141 = vcmp.eq.s32.totalorder %v107, %v2109
  %v2142 = vsel %vm2110, %v2030, 0
  %v2143 = vsel %vm2111, %v2031, 0
  %v2144 = vsel %vm2112, %v2032, 0
  %v2145 = vsel %vm2113, %v2033, 0
  %v2146 = vsel %vm2114, %v2034, 0
  %v2147 = vsel %vm2115, %v2035, 0
  %v2148 = vsel %vm2116, %v2036, 0
  %v2149 = vsel %vm2117, %v2037, 0
  %v2150 = vsel %vm2118, %v2038, 0
  %v2151 = vsel %vm2119, %v2039, 0
  %v2152 = vsel %vm2120, %v2040, 0
  %v2153 = vsel %vm2121, %v2041, 0
  %v2154 = vsel %vm2122, %v2042, 0
  %v2155 = vsel %vm2123, %v2043, 0
  %v2156 = vsel %vm2124, %v2044, 0
  %v2157 = vsel %vm2125, %v2045, 0
  %v2158 = vsel %vm2126, %v2046, 0
  %v2159 = vsel %vm2127, %v2047, 0
  %v2160 = vsel %vm2128, %v2048, 0
  %v2161 = vsel %vm2129, %v2049, 0
  %v2162 = vsel %vm2130, %v2050, 0
  %v2163 = vsel %vm2131, %v2051, 0
  %v2164 = vsel %vm2132, %v2052, 0
  %v2165 = vsel %vm2133, %v2053, 0
  %v2166 = vsel %vm2134, %v2054, 0
  %v2167 = vsel %vm2135, %v2055, 0
  %v2168 = vsel %vm2136, %v2056, 0
  %v2169 = vsel %vm2137, %v2057, 0
  %v2170 = vsel %vm2138, %v2058, 0
  %v2171 = vsel %vm2139, %v2059, 0
  %v2172 = vsel %vm2140, %v2060, 0
  %v2173 = vsel %vm2141, %v2061, 0
  %v2174 = vadd.s32 %v2142, %v2143
  %v2175 = vand.u32 %v2174, 65535
  %v2176 = vshrl.u32 %v2174, 16
  %v2177 = vcvt.s32.f32 %v2175
  %v2178 = vcvt.s32.f32 %v2176
  %2179 = vadd.xlane.f32.xlu0 %v2177
  %v2180 = vpop.xlane.xlu0 %2179
  %2181 = vadd.xlane.f32.xlu0 %v2178
  %v2182 = vpop.xlane.xlu0 %2181
  %v2183 = vcvt.f32.s32 %v2180
  %v2184 = vcvt.f32.s32 %v2182
  %v2185 = vshll.u32 %v2184, 16
  %v2186 = vadd.s32 %v2185, %v2183
  %v2187 = vadd.s32 %v2144, %v2145
  %v2188 = vand.u32 %v2187, 65535
  %v2189 = vshrl.u32 %v2187, 16
  %v2190 = vcvt.s32.f32 %v2188
  %v2191 = vcvt.s32.f32 %v2189
  %2192 = vadd.xlane.f32.xlu0 %v2190
  %v2193 = vpop.xlane.xlu0 %2192
  %2194 = vadd.xlane.f32.xlu0 %v2191
  %v2195 = vpop.xlane.xlu0 %2194
  %v2196 = vcvt.f32.s32 %v2193
  %v2197 = vcvt.f32.s32 %v2195
  %v2198 = vshll.u32 %v2197, 16
  %v2199 = vadd.s32 %v2198, %v2196
  %v2200 = vadd.s32 %v2146, %v2147
  %v2201 = vand.u32 %v2200, 65535
  %v2202 = vshrl.u32 %v2200, 16
  %v2203 = vcvt.s32.f32 %v2201
  %v2204 = vcvt.s32.f32 %v2202
  %2205 = vadd.xlane.f32.xlu0 %v2203
  %v2206 = vpop.xlane.xlu0 %2205
  %2207 = vadd.xlane.f32.xlu0 %v2204
  %v2208 = vpop.xlane.xlu0 %2207
  %v2209 = vcvt.f32.s32 %v2206
  %v2210 = vcvt.f32.s32 %v2208
  %v2211 = vshll.u32 %v2210, 16
  %v2212 = vadd.s32 %v2211, %v2209
  %v2213 = vadd.s32 %v2148, %v2149
  %v2214 = vand.u32 %v2213, 65535
  %v2215 = vshrl.u32 %v2213, 16
  %v2216 = vcvt.s32.f32 %v2214
  %v2217 = vcvt.s32.f32 %v2215
  %2218 = vadd.xlane.f32.xlu0 %v2216
  %v2219 = vpop.xlane.xlu0 %2218
  %2220 = vadd.xlane.f32.xlu0 %v2217
  %v2221 = vpop.xlane.xlu0 %2220
  %v2222 = vcvt.f32.s32 %v2219
  %v2223 = vcvt.f32.s32 %v2221
  %v2224 = vshll.u32 %v2223, 16
  %v2225 = vadd.s32 %v2224, %v2222
  %v2226 = vadd.s32 %v2150, %v2151
  %v2227 = vand.u32 %v2226, 65535
  %v2228 = vshrl.u32 %v2226, 16
  %v2229 = vcvt.s32.f32 %v2227
  %v2230 = vcvt.s32.f32 %v2228
  %2231 = vadd.xlane.f32.xlu0 %v2229
  %v2232 = vpop.xlane.xlu0 %2231
  %2233 = vadd.xlane.f32.xlu0 %v2230
  %v2234 = vpop.xlane.xlu0 %2233
  %v2235 = vcvt.f32.s32 %v2232
  %v2236 = vcvt.f32.s32 %v2234
  %v2237 = vshll.u32 %v2236, 16
  %v2238 = vadd.s32 %v2237, %v2235
  %v2239 = vadd.s32 %v2152, %v2153
  %v2240 = vand.u32 %v2239, 65535
  %v2241 = vshrl.u32 %v2239, 16
  %v2242 = vcvt.s32.f32 %v2240
  %v2243 = vcvt.s32.f32 %v2241
  %2244 = vadd.xlane.f32.xlu0 %v2242
  %v2245 = vpop.xlane.xlu0 %2244
  %2246 = vadd.xlane.f32.xlu0 %v2243
  %v2247 = vpop.xlane.xlu0 %2246
  %v2248 = vcvt.f32.s32 %v2245
  %v2249 = vcvt.f32.s32 %v2247
  %v2250 = vshll.u32 %v2249, 16
  %v2251 = vadd.s32 %v2250, %v2248
  %v2252 = vadd.s32 %v2154, %v2155
  %v2253 = vand.u32 %v2252, 65535
  %v2254 = vshrl.u32 %v2252, 16
  %v2255 = vcvt.s32.f32 %v2253
  %v2256 = vcvt.s32.f32 %v2254
  %2257 = vadd.xlane.f32.xlu0 %v2255
  %v2258 = vpop.xlane.xlu0 %2257
  %2259 = vadd.xlane.f32.xlu0 %v2256
  %v2260 = vpop.xlane.xlu0 %2259
  %v2261 = vcvt.f32.s32 %v2258
  %v2262 = vcvt.f32.s32 %v2260
  %v2263 = vshll.u32 %v2262, 16
  %v2264 = vadd.s32 %v2263, %v2261
  %v2265 = vadd.s32 %v2156, %v2157
  %v2266 = vand.u32 %v2265, 65535
  %v2267 = vshrl.u32 %v2265, 16
  %v2268 = vcvt.s32.f32 %v2266
  %v2269 = vcvt.s32.f32 %v2267
  %2270 = vadd.xlane.f32.xlu0 %v2268
  %v2271 = vpop.xlane.xlu0 %2270
  %2272 = vadd.xlane.f32.xlu0 %v2269
  %v2273 = vpop.xlane.xlu0 %2272
  %v2274 = vcvt.f32.s32 %v2271
  %v2275 = vcvt.f32.s32 %v2273
  %v2276 = vshll.u32 %v2275, 16
  %v2277 = vadd.s32 %v2276, %v2274
  %v2278 = vadd.s32 %v2158, %v2159
  %v2279 = vand.u32 %v2278, 65535
  %v2280 = vshrl.u32 %v2278, 16
  %v2281 = vcvt.s32.f32 %v2279
  %v2282 = vcvt.s32.f32 %v2280
  %2283 = vadd.xlane.f32.xlu0 %v2281
  %v2284 = vpop.xlane.xlu0 %2283
  %2285 = vadd.xlane.f32.xlu0 %v2282
  %v2286 = vpop.xlane.xlu0 %2285
  %v2287 = vcvt.f32.s32 %v2284
  %v2288 = vcvt.f32.s32 %v2286
  %v2289 = vshll.u32 %v2288, 16
  %v2290 = vadd.s32 %v2289, %v2287
  %v2291 = vadd.s32 %v2160, %v2161
  %v2292 = vand.u32 %v2291, 65535
  %v2293 = vshrl.u32 %v2291, 16
  %v2294 = vcvt.s32.f32 %v2292
  %v2295 = vcvt.s32.f32 %v2293
  %2296 = vadd.xlane.f32.xlu0 %v2294
  %v2297 = vpop.xlane.xlu0 %2296
  %2298 = vadd.xlane.f32.xlu0 %v2295
  %v2299 = vpop.xlane.xlu0 %2298
  %v2300 = vcvt.f32.s32 %v2297
  %v2301 = vcvt.f32.s32 %v2299
  %v2302 = vshll.u32 %v2301, 16
  %v2303 = vadd.s32 %v2302, %v2300
  %v2304 = vadd.s32 %v2162, %v2163
  %v2305 = vand.u32 %v2304, 65535
  %v2306 = vshrl.u32 %v2304, 16
  %v2307 = vcvt.s32.f32 %v2305
  %v2308 = vcvt.s32.f32 %v2306
  %2309 = vadd.xlane.f32.xlu0 %v2307
  %v2310 = vpop.xlane.xlu0 %2309
  %2311 = vadd.xlane.f32.xlu0 %v2308
  %v2312 = vpop.xlane.xlu0 %2311
  %v2313 = vcvt.f32.s32 %v2310
  %v2314 = vcvt.f32.s32 %v2312
  %v2315 = vshll.u32 %v2314, 16
  %v2316 = vadd.s32 %v2315, %v2313
  %v2317 = vadd.s32 %v2164, %v2165
  %v2318 = vand.u32 %v2317, 65535
  %v2319 = vshrl.u32 %v2317, 16
  %v2320 = vcvt.s32.f32 %v2318
  %v2321 = vcvt.s32.f32 %v2319
  %2322 = vadd.xlane.f32.xlu0 %v2320
  %v2323 = vpop.xlane.xlu0 %2322
  %2324 = vadd.xlane.f32.xlu0 %v2321
  %v2325 = vpop.xlane.xlu0 %2324
  %v2326 = vcvt.f32.s32 %v2323
  %v2327 = vcvt.f32.s32 %v2325
  %v2328 = vshll.u32 %v2327, 16
  %v2329 = vadd.s32 %v2328, %v2326
  %v2330 = vadd.s32 %v2166, %v2167
  %v2331 = vand.u32 %v2330, 65535
  %v2332 = vshrl.u32 %v2330, 16
  %v2333 = vcvt.s32.f32 %v2331
  %v2334 = vcvt.s32.f32 %v2332
  %2335 = vadd.xlane.f32.xlu0 %v2333
  %v2336 = vpop.xlane.xlu0 %2335
  %2337 = vadd.xlane.f32.xlu0 %v2334
  %v2338 = vpop.xlane.xlu0 %2337
  %v2339 = vcvt.f32.s32 %v2336
  %v2340 = vcvt.f32.s32 %v2338
  %v2341 = vshll.u32 %v2340, 16
  %v2342 = vadd.s32 %v2341, %v2339
  %v2343 = vadd.s32 %v2168, %v2169
  %v2344 = vand.u32 %v2343, 65535
  %v2345 = vshrl.u32 %v2343, 16
  %v2346 = vcvt.s32.f32 %v2344
  %v2347 = vcvt.s32.f32 %v2345
  %2348 = vadd.xlane.f32.xlu0 %v2346
  %v2349 = vpop.xlane.xlu0 %2348
  %2350 = vadd.xlane.f32.xlu0 %v2347
  %v2351 = vpop.xlane.xlu0 %2350
  %v2352 = vcvt.f32.s32 %v2349
  %v2353 = vcvt.f32.s32 %v2351
  %v2354 = vshll.u32 %v2353, 16
  %v2355 = vadd.s32 %v2354, %v2352
  %v2356 = vadd.s32 %v2170, %v2171
  %v2357 = vand.u32 %v2356, 65535
  %v2358 = vshrl.u32 %v2356, 16
  %v2359 = vcvt.s32.f32 %v2357
  %v2360 = vcvt.s32.f32 %v2358
  %2361 = vadd.xlane.f32.xlu0 %v2359
  %v2362 = vpop.xlane.xlu0 %2361
  %2363 = vadd.xlane.f32.xlu0 %v2360
  %v2364 = vpop.xlane.xlu0 %2363
  %v2365 = vcvt.f32.s32 %v2362
  %v2366 = vcvt.f32.s32 %v2364
  %v2367 = vshll.u32 %v2366, 16
  %v2368 = vadd.s32 %v2367, %v2365
  %v2369 = vadd.s32 %v2172, %v2173
  %v2370 = vand.u32 %v2369, 65535
  %v2371 = vshrl.u32 %v2369, 16
  %v2372 = vcvt.s32.f32 %v2370
  %v2373 = vcvt.s32.f32 %v2371
  %2374 = vadd.xlane.f32.xlu0 %v2372
  %v2375 = vpop.xlane.xlu0 %2374
  %2376 = vadd.xlane.f32.xlu0 %v2373
  %v2377 = vpop.xlane.xlu0 %2376
  %v2378 = vcvt.f32.s32 %v2375
  %v2379 = vcvt.f32.s32 %v2377
  %v2380 = vshll.u32 %v2379, 16
  %v2381 = vadd.s32 %v2380, %v2378
  %vm2382 = vcmp.eq.s32.totalorder %v106, 0
  %v2383 = vsel %vm2382, %v2186, 0
  %v2384 = vsel %vm2382, %v2199, 0
  %v2385 = vsel %vm2382, %v2212, 0
  %v2386 = vsel %vm2382, %v2225, 0
  %v2387 = vsel %vm2382, %v2238, 0
  %v2388 = vsel %vm2382, %v2251, 0
  %v2389 = vsel %vm2382, %v2264, 0
  %v2390 = vsel %vm2382, %v2277, 0
  %v2391 = vsel %vm2382, %v2290, 0
  %v2392 = vsel %vm2382, %v2303, 0
  %v2393 = vsel %vm2382, %v2316, 0
  %v2394 = vsel %vm2382, %v2329, 0
  %v2395 = vsel %vm2382, %v2342, 0
  %v2396 = vsel %vm2382, %v2355, 0
  %v2397 = vsel %vm2382, %v2368, 0
  %v2398 = vsel %vm2382, %v2381, 0
  %v2399 = vadd.s32 %v89, 1
  %v2400 = vadd.s32 %v90, 1
  %v2401 = vadd.s32 %v91, 1
  %v2402 = vadd.s32 %v92, 1
  %v2403 = vadd.s32 %v93, 1
  %v2404 = vadd.s32 %v94, 1
  %v2405 = vadd.s32 %v95, 1
  %v2406 = vadd.s32 %v96, 1
  %v2407 = vadd.s32 %v97, 1
  %v2408 = vadd.s32 %v98, 1
  %v2409 = vadd.s32 %v99, 1
  %v2410 = vadd.s32 %v100, 1
  %v2411 = vadd.s32 %v101, 1
  %v2412 = vadd.s32 %v102, 1
  %v2413 = vadd.s32 %v103, 1
  %v2414 = vadd.s32 %v104, 1
  %2415 = vset.pattern.permute.xlu0 0
  %2416 = vperm.xlu0 %2415, %v2399
  %v2417 = vpop.permute.xlu0 %2416
  %2418 = vset.pattern.permute.xlu0 0
  %2419 = vperm.xlu0 %2418, %v2400
  %v2420 = vpop.permute.xlu0 %2419
  %2421 = vset.pattern.permute.xlu0 0
  %2422 = vperm.xlu0 %2421, %v2401
  %v2423 = vpop.permute.xlu0 %2422
  %2424 = vset.pattern.permute.xlu0 0
  %2425 = vperm.xlu0 %2424, %v2402
  %v2426 = vpop.permute.xlu0 %2425
  %2427 = vset.pattern.permute.xlu0 0
  %2428 = vperm.xlu0 %2427, %v2403
  %v2429 = vpop.permute.xlu0 %2428
  %2430 = vset.pattern.permute.xlu0 0
  %2431 = vperm.xlu0 %2430, %v2404
  %v2432 = vpop.permute.xlu0 %2431
  %2433 = vset.pattern.permute.xlu0 0
  %2434 = vperm.xlu0 %2433, %v2405
  %v2435 = vpop.permute.xlu0 %2434
  %2436 = vset.pattern.permute.xlu0 0
  %2437 = vperm.xlu0 %2436, %v2406
  %v2438 = vpop.permute.xlu0 %2437
  %2439 = vset.pattern.permute.xlu0 0
  %2440 = vperm.xlu0 %2439, %v2407
  %v2441 = vpop.permute.xlu0 %2440
  %2442 = vset.pattern.permute.xlu0 0
  %2443 = vperm.xlu0 %2442, %v2408
  %v2444 = vpop.permute.xlu0 %2443
  %2445 = vset.pattern.permute.xlu0 0
  %2446 = vperm.xlu0 %2445, %v2409
  %v2447 = vpop.permute.xlu0 %2446
  %2448 = vset.pattern.permute.xlu0 0
  %2449 = vperm.xlu0 %2448, %v2410
  %v2450 = vpop.permute.xlu0 %2449
  %2451 = vset.pattern.permute.xlu0 0
  %2452 = vperm.xlu0 %2451, %v2411
  %v2453 = vpop.permute.xlu0 %2452
  %2454 = vset.pattern.permute.xlu0 0
  %2455 = vperm.xlu0 %2454, %v2412
  %v2456 = vpop.permute.xlu0 %2455
  %2457 = vset.pattern.permute.xlu0 0
  %2458 = vperm.xlu0 %2457, %v2413
  %v2459 = vpop.permute.xlu0 %2458
  %2460 = vset.pattern.permute.xlu0 0
  %2461 = vperm.xlu0 %2460, %v2414
  %v2462 = vpop.permute.xlu0 %2461
  %vm2463 = vcmp.eq.s32.totalorder %v106, %v2417
  %vm2464 = vcmp.eq.s32.totalorder %v107, %v2417
  %vm2465 = vcmp.eq.s32.totalorder %v106, %v2420
  %vm2466 = vcmp.eq.s32.totalorder %v107, %v2420
  %vm2467 = vcmp.eq.s32.totalorder %v106, %v2423
  %vm2468 = vcmp.eq.s32.totalorder %v107, %v2423
  %vm2469 = vcmp.eq.s32.totalorder %v106, %v2426
  %vm2470 = vcmp.eq.s32.totalorder %v107, %v2426
  %vm2471 = vcmp.eq.s32.totalorder %v106, %v2429
  %vm2472 = vcmp.eq.s32.totalorder %v107, %v2429
  %vm2473 = vcmp.eq.s32.totalorder %v106, %v2432
  %vm2474 = vcmp.eq.s32.totalorder %v107, %v2432
  %vm2475 = vcmp.eq.s32.totalorder %v106, %v2435
  %vm2476 = vcmp.eq.s32.totalorder %v107, %v2435
  %vm2477 = vcmp.eq.s32.totalorder %v106, %v2438
  %vm2478 = vcmp.eq.s32.totalorder %v107, %v2438
  %vm2479 = vcmp.eq.s32.totalorder %v106, %v2441
  %vm2480 = vcmp.eq.s32.totalorder %v107, %v2441
  %vm2481 = vcmp.eq.s32.totalorder %v106, %v2444
  %vm2482 = vcmp.eq.s32.totalorder %v107, %v2444
  %vm2483 = vcmp.eq.s32.totalorder %v106, %v2447
  %vm2484 = vcmp.eq.s32.totalorder %v107, %v2447
  %vm2485 = vcmp.eq.s32.totalorder %v106, %v2450
  %vm2486 = vcmp.eq.s32.totalorder %v107, %v2450
  %vm2487 = vcmp.eq.s32.totalorder %v106, %v2453
  %vm2488 = vcmp.eq.s32.totalorder %v107, %v2453
  %vm2489 = vcmp.eq.s32.totalorder %v106, %v2456
  %vm2490 = vcmp.eq.s32.totalorder %v107, %v2456
  %vm2491 = vcmp.eq.s32.totalorder %v106, %v2459
  %vm2492 = vcmp.eq.s32.totalorder %v107, %v2459
  %vm2493 = vcmp.eq.s32.totalorder %v106, %v2462
  %vm2494 = vcmp.eq.s32.totalorder %v107, %v2462
  %v2495 = vsel %vm2463, %v2030, 0
  %v2496 = vsel %vm2464, %v2031, 0
  %v2497 = vsel %vm2465, %v2032, 0
  %v2498 = vsel %vm2466, %v2033, 0
  %v2499 = vsel %vm2467, %v2034, 0
  %v2500 = vsel %vm2468, %v2035, 0
  %v2501 = vsel %vm2469, %v2036, 0
  %v2502 = vsel %vm2470, %v2037, 0
  %v2503 = vsel %vm2471, %v2038, 0
  %v2504 = vsel %vm2472, %v2039, 0
  %v2505 = vsel %vm2473, %v2040, 0
  %v2506 = vsel %vm2474, %v2041, 0
  %v2507 = vsel %vm2475, %v2042, 0
  %v2508 = vsel %vm2476, %v2043, 0
  %v2509 = vsel %vm2477, %v2044, 0
  %v2510 = vsel %vm2478, %v2045, 0
  %v2511 = vsel %vm2479, %v2046, 0
  %v2512 = vsel %vm2480, %v2047, 0
  %v2513 = vsel %vm2481, %v2048, 0
  %v2514 = vsel %vm2482, %v2049, 0
  %v2515 = vsel %vm2483, %v2050, 0
  %v2516 = vsel %vm2484, %v2051, 0
  %v2517 = vsel %vm2485, %v2052, 0
  %v2518 = vsel %vm2486, %v2053, 0
  %v2519 = vsel %vm2487, %v2054, 0
  %v2520 = vsel %vm2488, %v2055, 0
  %v2521 = vsel %vm2489, %v2056, 0
  %v2522 = vsel %vm2490, %v2057, 0
  %v2523 = vsel %vm2491, %v2058, 0
  %v2524 = vsel %vm2492, %v2059, 0
  %v2525 = vsel %vm2493, %v2060, 0
  %v2526 = vsel %vm2494, %v2061, 0
  %v2527 = vadd.s32 %v2495, %v2496
  %v2528 = vand.u32 %v2527, 65535
  %v2529 = vshrl.u32 %v2527, 16
  %v2530 = vcvt.s32.f32 %v2528
  %v2531 = vcvt.s32.f32 %v2529
  %2532 = vadd.xlane.f32.xlu0 %v2530
  %v2533 = vpop.xlane.xlu0 %2532
  %2534 = vadd.xlane.f32.xlu0 %v2531
  %v2535 = vpop.xlane.xlu0 %2534
  %v2536 = vcvt.f32.s32 %v2533
  %v2537 = vcvt.f32.s32 %v2535
  %v2538 = vshll.u32 %v2537, 16
  %v2539 = vadd.s32 %v2538, %v2536
  %v2540 = vadd.s32 %v2497, %v2498
  %v2541 = vand.u32 %v2540, 65535
  %v2542 = vshrl.u32 %v2540, 16
  %v2543 = vcvt.s32.f32 %v2541
  %v2544 = vcvt.s32.f32 %v2542
  %2545 = vadd.xlane.f32.xlu0 %v2543
  %v2546 = vpop.xlane.xlu0 %2545
  %2547 = vadd.xlane.f32.xlu0 %v2544
  %v2548 = vpop.xlane.xlu0 %2547
  %v2549 = vcvt.f32.s32 %v2546
  %v2550 = vcvt.f32.s32 %v2548
  %v2551 = vshll.u32 %v2550, 16
  %v2552 = vadd.s32 %v2551, %v2549
  %v2553 = vadd.s32 %v2499, %v2500
  %v2554 = vand.u32 %v2553, 65535
  %v2555 = vshrl.u32 %v2553, 16
  %v2556 = vcvt.s32.f32 %v2554
  %v2557 = vcvt.s32.f32 %v2555
  %2558 = vadd.xlane.f32.xlu0 %v2556
  %v2559 = vpop.xlane.xlu0 %2558
  %2560 = vadd.xlane.f32.xlu0 %v2557
  %v2561 = vpop.xlane.xlu0 %2560
  %v2562 = vcvt.f32.s32 %v2559
  %v2563 = vcvt.f32.s32 %v2561
  %v2564 = vshll.u32 %v2563, 16
  %v2565 = vadd.s32 %v2564, %v2562
  %v2566 = vadd.s32 %v2501, %v2502
  %v2567 = vand.u32 %v2566, 65535
  %v2568 = vshrl.u32 %v2566, 16
  %v2569 = vcvt.s32.f32 %v2567
  %v2570 = vcvt.s32.f32 %v2568
  %2571 = vadd.xlane.f32.xlu0 %v2569
  %v2572 = vpop.xlane.xlu0 %2571
  %2573 = vadd.xlane.f32.xlu0 %v2570
  %v2574 = vpop.xlane.xlu0 %2573
  %v2575 = vcvt.f32.s32 %v2572
  %v2576 = vcvt.f32.s32 %v2574
  %v2577 = vshll.u32 %v2576, 16
  %v2578 = vadd.s32 %v2577, %v2575
  %v2579 = vadd.s32 %v2503, %v2504
  %v2580 = vand.u32 %v2579, 65535
  %v2581 = vshrl.u32 %v2579, 16
  %v2582 = vcvt.s32.f32 %v2580
  %v2583 = vcvt.s32.f32 %v2581
  %2584 = vadd.xlane.f32.xlu0 %v2582
  %v2585 = vpop.xlane.xlu0 %2584
  %2586 = vadd.xlane.f32.xlu0 %v2583
  %v2587 = vpop.xlane.xlu0 %2586
  %v2588 = vcvt.f32.s32 %v2585
  %v2589 = vcvt.f32.s32 %v2587
  %v2590 = vshll.u32 %v2589, 16
  %v2591 = vadd.s32 %v2590, %v2588
  %v2592 = vadd.s32 %v2505, %v2506
  %v2593 = vand.u32 %v2592, 65535
  %v2594 = vshrl.u32 %v2592, 16
  %v2595 = vcvt.s32.f32 %v2593
  %v2596 = vcvt.s32.f32 %v2594
  %2597 = vadd.xlane.f32.xlu0 %v2595
  %v2598 = vpop.xlane.xlu0 %2597
  %2599 = vadd.xlane.f32.xlu0 %v2596
  %v2600 = vpop.xlane.xlu0 %2599
  %v2601 = vcvt.f32.s32 %v2598
  %v2602 = vcvt.f32.s32 %v2600
  %v2603 = vshll.u32 %v2602, 16
  %v2604 = vadd.s32 %v2603, %v2601
  %v2605 = vadd.s32 %v2507, %v2508
  %v2606 = vand.u32 %v2605, 65535
  %v2607 = vshrl.u32 %v2605, 16
  %v2608 = vcvt.s32.f32 %v2606
  %v2609 = vcvt.s32.f32 %v2607
  %2610 = vadd.xlane.f32.xlu0 %v2608
  %v2611 = vpop.xlane.xlu0 %2610
  %2612 = vadd.xlane.f32.xlu0 %v2609
  %v2613 = vpop.xlane.xlu0 %2612
  %v2614 = vcvt.f32.s32 %v2611
  %v2615 = vcvt.f32.s32 %v2613
  %v2616 = vshll.u32 %v2615, 16
  %v2617 = vadd.s32 %v2616, %v2614
  %v2618 = vadd.s32 %v2509, %v2510
  %v2619 = vand.u32 %v2618, 65535
  %v2620 = vshrl.u32 %v2618, 16
  %v2621 = vcvt.s32.f32 %v2619
  %v2622 = vcvt.s32.f32 %v2620
  %2623 = vadd.xlane.f32.xlu0 %v2621
  %v2624 = vpop.xlane.xlu0 %2623
  %2625 = vadd.xlane.f32.xlu0 %v2622
  %v2626 = vpop.xlane.xlu0 %2625
  %v2627 = vcvt.f32.s32 %v2624
  %v2628 = vcvt.f32.s32 %v2626
  %v2629 = vshll.u32 %v2628, 16
  %v2630 = vadd.s32 %v2629, %v2627
  %v2631 = vadd.s32 %v2511, %v2512
  %v2632 = vand.u32 %v2631, 65535
  %v2633 = vshrl.u32 %v2631, 16
  %v2634 = vcvt.s32.f32 %v2632
  %v2635 = vcvt.s32.f32 %v2633
  %2636 = vadd.xlane.f32.xlu0 %v2634
  %v2637 = vpop.xlane.xlu0 %2636
  %2638 = vadd.xlane.f32.xlu0 %v2635
  %v2639 = vpop.xlane.xlu0 %2638
  %v2640 = vcvt.f32.s32 %v2637
  %v2641 = vcvt.f32.s32 %v2639
  %v2642 = vshll.u32 %v2641, 16
  %v2643 = vadd.s32 %v2642, %v2640
  %v2644 = vadd.s32 %v2513, %v2514
  %v2645 = vand.u32 %v2644, 65535
  %v2646 = vshrl.u32 %v2644, 16
  %v2647 = vcvt.s32.f32 %v2645
  %v2648 = vcvt.s32.f32 %v2646
  %2649 = vadd.xlane.f32.xlu0 %v2647
  %v2650 = vpop.xlane.xlu0 %2649
  %2651 = vadd.xlane.f32.xlu0 %v2648
  %v2652 = vpop.xlane.xlu0 %2651
  %v2653 = vcvt.f32.s32 %v2650
  %v2654 = vcvt.f32.s32 %v2652
  %v2655 = vshll.u32 %v2654, 16
  %v2656 = vadd.s32 %v2655, %v2653
  %v2657 = vadd.s32 %v2515, %v2516
  %v2658 = vand.u32 %v2657, 65535
  %v2659 = vshrl.u32 %v2657, 16
  %v2660 = vcvt.s32.f32 %v2658
  %v2661 = vcvt.s32.f32 %v2659
  %2662 = vadd.xlane.f32.xlu0 %v2660
  %v2663 = vpop.xlane.xlu0 %2662
  %2664 = vadd.xlane.f32.xlu0 %v2661
  %v2665 = vpop.xlane.xlu0 %2664
  %v2666 = vcvt.f32.s32 %v2663
  %v2667 = vcvt.f32.s32 %v2665
  %v2668 = vshll.u32 %v2667, 16
  %v2669 = vadd.s32 %v2668, %v2666
  %v2670 = vadd.s32 %v2517, %v2518
  %v2671 = vand.u32 %v2670, 65535
  %v2672 = vshrl.u32 %v2670, 16
  %v2673 = vcvt.s32.f32 %v2671
  %v2674 = vcvt.s32.f32 %v2672
  %2675 = vadd.xlane.f32.xlu0 %v2673
  %v2676 = vpop.xlane.xlu0 %2675
  %2677 = vadd.xlane.f32.xlu0 %v2674
  %v2678 = vpop.xlane.xlu0 %2677
  %v2679 = vcvt.f32.s32 %v2676
  %v2680 = vcvt.f32.s32 %v2678
  %v2681 = vshll.u32 %v2680, 16
  %v2682 = vadd.s32 %v2681, %v2679
  %v2683 = vadd.s32 %v2519, %v2520
  %v2684 = vand.u32 %v2683, 65535
  %v2685 = vshrl.u32 %v2683, 16
  %v2686 = vcvt.s32.f32 %v2684
  %v2687 = vcvt.s32.f32 %v2685
  %2688 = vadd.xlane.f32.xlu0 %v2686
  %v2689 = vpop.xlane.xlu0 %2688
  %2690 = vadd.xlane.f32.xlu0 %v2687
  %v2691 = vpop.xlane.xlu0 %2690
  %v2692 = vcvt.f32.s32 %v2689
  %v2693 = vcvt.f32.s32 %v2691
  %v2694 = vshll.u32 %v2693, 16
  %v2695 = vadd.s32 %v2694, %v2692
  %v2696 = vadd.s32 %v2521, %v2522
  %v2697 = vand.u32 %v2696, 65535
  %v2698 = vshrl.u32 %v2696, 16
  %v2699 = vcvt.s32.f32 %v2697
  %v2700 = vcvt.s32.f32 %v2698
  %2701 = vadd.xlane.f32.xlu0 %v2699
  %v2702 = vpop.xlane.xlu0 %2701
  %2703 = vadd.xlane.f32.xlu0 %v2700
  %v2704 = vpop.xlane.xlu0 %2703
  %v2705 = vcvt.f32.s32 %v2702
  %v2706 = vcvt.f32.s32 %v2704
  %v2707 = vshll.u32 %v2706, 16
  %v2708 = vadd.s32 %v2707, %v2705
  %v2709 = vadd.s32 %v2523, %v2524
  %v2710 = vand.u32 %v2709, 65535
  %v2711 = vshrl.u32 %v2709, 16
  %v2712 = vcvt.s32.f32 %v2710
  %v2713 = vcvt.s32.f32 %v2711
  %2714 = vadd.xlane.f32.xlu0 %v2712
  %v2715 = vpop.xlane.xlu0 %2714
  %2716 = vadd.xlane.f32.xlu0 %v2713
  %v2717 = vpop.xlane.xlu0 %2716
  %v2718 = vcvt.f32.s32 %v2715
  %v2719 = vcvt.f32.s32 %v2717
  %v2720 = vshll.u32 %v2719, 16
  %v2721 = vadd.s32 %v2720, %v2718
  %v2722 = vadd.s32 %v2525, %v2526
  %v2723 = vand.u32 %v2722, 65535
  %v2724 = vshrl.u32 %v2722, 16
  %v2725 = vcvt.s32.f32 %v2723
  %v2726 = vcvt.s32.f32 %v2724
  %2727 = vadd.xlane.f32.xlu0 %v2725
  %v2728 = vpop.xlane.xlu0 %2727
  %2729 = vadd.xlane.f32.xlu0 %v2726
  %v2730 = vpop.xlane.xlu0 %2729
  %v2731 = vcvt.f32.s32 %v2728
  %v2732 = vcvt.f32.s32 %v2730
  %v2733 = vshll.u32 %v2732, 16
  %v2734 = vadd.s32 %v2733, %v2731
  %vm2735 = vcmp.eq.s32.totalorder %v106, 1
  %v2736 = vsel %vm2735, %v2539, %v2383
  %v2737 = vsel %vm2735, %v2552, %v2384
  %v2738 = vsel %vm2735, %v2565, %v2385
  %v2739 = vsel %vm2735, %v2578, %v2386
  %v2740 = vsel %vm2735, %v2591, %v2387
  %v2741 = vsel %vm2735, %v2604, %v2388
  %v2742 = vsel %vm2735, %v2617, %v2389
  %v2743 = vsel %vm2735, %v2630, %v2390
  %v2744 = vsel %vm2735, %v2643, %v2391
  %v2745 = vsel %vm2735, %v2656, %v2392
  %v2746 = vsel %vm2735, %v2669, %v2393
  %v2747 = vsel %vm2735, %v2682, %v2394
  %v2748 = vsel %vm2735, %v2695, %v2395
  %v2749 = vsel %vm2735, %v2708, %v2396
  %v2750 = vsel %vm2735, %v2721, %v2397
  %v2751 = vsel %vm2735, %v2734, %v2398
  %v2752 = vadd.s32 %v89, 2
  %v2753 = vadd.s32 %v90, 2
  %v2754 = vadd.s32 %v91, 2
  %v2755 = vadd.s32 %v92, 2
  %v2756 = vadd.s32 %v93, 2
  %v2757 = vadd.s32 %v94, 2
  %v2758 = vadd.s32 %v95, 2
  %v2759 = vadd.s32 %v96, 2
  %v2760 = vadd.s32 %v97, 2
  %v2761 = vadd.s32 %v98, 2
  %v2762 = vadd.s32 %v99, 2
  %v2763 = vadd.s32 %v100, 2
  %v2764 = vadd.s32 %v101, 2
  %v2765 = vadd.s32 %v102, 2
  %v2766 = vadd.s32 %v103, 2
  %v2767 = vadd.s32 %v104, 2
  %2768 = vset.pattern.permute.xlu0 0
  %2769 = vperm.xlu0 %2768, %v2752
  %v2770 = vpop.permute.xlu0 %2769
  %2771 = vset.pattern.permute.xlu0 0
  %2772 = vperm.xlu0 %2771, %v2753
  %v2773 = vpop.permute.xlu0 %2772
  %2774 = vset.pattern.permute.xlu0 0
  %2775 = vperm.xlu0 %2774, %v2754
  %v2776 = vpop.permute.xlu0 %2775
  %2777 = vset.pattern.permute.xlu0 0
  %2778 = vperm.xlu0 %2777, %v2755
  %v2779 = vpop.permute.xlu0 %2778
  %2780 = vset.pattern.permute.xlu0 0
  %2781 = vperm.xlu0 %2780, %v2756
  %v2782 = vpop.permute.xlu0 %2781
  %2783 = vset.pattern.permute.xlu0 0
  %2784 = vperm.xlu0 %2783, %v2757
  %v2785 = vpop.permute.xlu0 %2784
  %2786 = vset.pattern.permute.xlu0 0
  %2787 = vperm.xlu0 %2786, %v2758
  %v2788 = vpop.permute.xlu0 %2787
  %2789 = vset.pattern.permute.xlu0 0
  %2790 = vperm.xlu0 %2789, %v2759
  %v2791 = vpop.permute.xlu0 %2790
  %2792 = vset.pattern.permute.xlu0 0
  %2793 = vperm.xlu0 %2792, %v2760
  %v2794 = vpop.permute.xlu0 %2793
  %2795 = vset.pattern.permute.xlu0 0
  %2796 = vperm.xlu0 %2795, %v2761
  %v2797 = vpop.permute.xlu0 %2796
  %2798 = vset.pattern.permute.xlu0 0
  %2799 = vperm.xlu0 %2798, %v2762
  %v2800 = vpop.permute.xlu0 %2799
  %2801 = vset.pattern.permute.xlu0 0
  %2802 = vperm.xlu0 %2801, %v2763
  %v2803 = vpop.permute.xlu0 %2802
  %2804 = vset.pattern.permute.xlu0 0
  %2805 = vperm.xlu0 %2804, %v2764
  %v2806 = vpop.permute.xlu0 %2805
  %2807 = vset.pattern.permute.xlu0 0
  %2808 = vperm.xlu0 %2807, %v2765
  %v2809 = vpop.permute.xlu0 %2808
  %2810 = vset.pattern.permute.xlu0 0
  %2811 = vperm.xlu0 %2810, %v2766
  %v2812 = vpop.permute.xlu0 %2811
  %2813 = vset.pattern.permute.xlu0 0
  %2814 = vperm.xlu0 %2813, %v2767
  %v2815 = vpop.permute.xlu0 %2814
  %vm2816 = vcmp.eq.s32.totalorder %v106, %v2770
  %vm2817 = vcmp.eq.s32.totalorder %v107, %v2770
  %vm2818 = vcmp.eq.s32.totalorder %v106, %v2773
  %vm2819 = vcmp.eq.s32.totalorder %v107, %v2773
  %vm2820 = vcmp.eq.s32.totalorder %v106, %v2776
  %vm2821 = vcmp.eq.s32.totalorder %v107, %v2776
  %vm2822 = vcmp.eq.s32.totalorder %v106, %v2779
  %vm2823 = vcmp.eq.s32.totalorder %v107, %v2779
  %vm2824 = vcmp.eq.s32.totalorder %v106, %v2782
  %vm2825 = vcmp.eq.s32.totalorder %v107, %v2782
  %vm2826 = vcmp.eq.s32.totalorder %v106, %v2785
  %vm2827 = vcmp.eq.s32.totalorder %v107, %v2785
  %vm2828 = vcmp.eq.s32.totalorder %v106, %v2788
  %vm2829 = vcmp.eq.s32.totalorder %v107, %v2788
  %vm2830 = vcmp.eq.s32.totalorder %v106, %v2791
  %vm2831 = vcmp.eq.s32.totalorder %v107, %v2791
  %vm2832 = vcmp.eq.s32.totalorder %v106, %v2794
  %vm2833 = vcmp.eq.s32.totalorder %v107, %v2794
  %vm2834 = vcmp.eq.s32.totalorder %v106, %v2797
  %vm2835 = vcmp.eq.s32.totalorder %v107, %v2797
  %vm2836 = vcmp.eq.s32.totalorder %v106, %v2800
  %vm2837 = vcmp.eq.s32.totalorder %v107, %v2800
  %vm2838 = vcmp.eq.s32.totalorder %v106, %v2803
  %vm2839 = vcmp.eq.s32.totalorder %v107, %v2803
  %vm2840 = vcmp.eq.s32.totalorder %v106, %v2806
  %vm2841 = vcmp.eq.s32.totalorder %v107, %v2806
  %vm2842 = vcmp.eq.s32.totalorder %v106, %v2809
  %vm2843 = vcmp.eq.s32.totalorder %v107, %v2809
  %vm2844 = vcmp.eq.s32.totalorder %v106, %v2812
  %vm2845 = vcmp.eq.s32.totalorder %v107, %v2812
  %vm2846 = vcmp.eq.s32.totalorder %v106, %v2815
  %vm2847 = vcmp.eq.s32.totalorder %v107, %v2815
  %v2848 = vsel %vm2816, %v2030, 0
  %v2849 = vsel %vm2817, %v2031, 0
  %v2850 = vsel %vm2818, %v2032, 0
  %v2851 = vsel %vm2819, %v2033, 0
  %v2852 = vsel %vm2820, %v2034, 0
  %v2853 = vsel %vm2821, %v2035, 0
  %v2854 = vsel %vm2822, %v2036, 0
  %v2855 = vsel %vm2823, %v2037, 0
  %v2856 = vsel %vm2824, %v2038, 0
  %v2857 = vsel %vm2825, %v2039, 0
  %v2858 = vsel %vm2826, %v2040, 0
  %v2859 = vsel %vm2827, %v2041, 0
  %v2860 = vsel %vm2828, %v2042, 0
  %v2861 = vsel %vm2829, %v2043, 0
  %v2862 = vsel %vm2830, %v2044, 0
  %v2863 = vsel %vm2831, %v2045, 0
  %v2864 = vsel %vm2832, %v2046, 0
  %v2865 = vsel %vm2833, %v2047, 0
  %v2866 = vsel %vm2834, %v2048, 0
  %v2867 = vsel %vm2835, %v2049, 0
  %v2868 = vsel %vm2836, %v2050, 0
  %v2869 = vsel %vm2837, %v2051, 0
  %v2870 = vsel %vm2838, %v2052, 0
  %v2871 = vsel %vm2839, %v2053, 0
  %v2872 = vsel %vm2840, %v2054, 0
  %v2873 = vsel %vm2841, %v2055, 0
  %v2874 = vsel %vm2842, %v2056, 0
  %v2875 = vsel %vm2843, %v2057, 0
  %v2876 = vsel %vm2844, %v2058, 0
  %v2877 = vsel %vm2845, %v2059, 0
  %v2878 = vsel %vm2846, %v2060, 0
  %v2879 = vsel %vm2847, %v2061, 0
  %v2880 = vadd.s32 %v2848, %v2849
  %v2881 = vand.u32 %v2880, 65535
  %v2882 = vshrl.u32 %v2880, 16
  %v2883 = vcvt.s32.f32 %v2881
  %v2884 = vcvt.s32.f32 %v2882
  %2885 = vadd.xlane.f32.xlu0 %v2883
  %v2886 = vpop.xlane.xlu0 %2885
  %2887 = vadd.xlane.f32.xlu0 %v2884
  %v2888 = vpop.xlane.xlu0 %2887
  %v2889 = vcvt.f32.s32 %v2886
  %v2890 = vcvt.f32.s32 %v2888
  %v2891 = vshll.u32 %v2890, 16
  %v2892 = vadd.s32 %v2891, %v2889
  %v2893 = vadd.s32 %v2850, %v2851
  %v2894 = vand.u32 %v2893, 65535
  %v2895 = vshrl.u32 %v2893, 16
  %v2896 = vcvt.s32.f32 %v2894
  %v2897 = vcvt.s32.f32 %v2895
  %2898 = vadd.xlane.f32.xlu0 %v2896
  %v2899 = vpop.xlane.xlu0 %2898
  %2900 = vadd.xlane.f32.xlu0 %v2897
  %v2901 = vpop.xlane.xlu0 %2900
  %v2902 = vcvt.f32.s32 %v2899
  %v2903 = vcvt.f32.s32 %v2901
  %v2904 = vshll.u32 %v2903, 16
  %v2905 = vadd.s32 %v2904, %v2902
  %v2906 = vadd.s32 %v2852, %v2853
  %v2907 = vand.u32 %v2906, 65535
  %v2908 = vshrl.u32 %v2906, 16
  %v2909 = vcvt.s32.f32 %v2907
  %v2910 = vcvt.s32.f32 %v2908
  %2911 = vadd.xlane.f32.xlu0 %v2909
  %v2912 = vpop.xlane.xlu0 %2911
  %2913 = vadd.xlane.f32.xlu0 %v2910
  %v2914 = vpop.xlane.xlu0 %2913
  %v2915 = vcvt.f32.s32 %v2912
  %v2916 = vcvt.f32.s32 %v2914
  %v2917 = vshll.u32 %v2916, 16
  %v2918 = vadd.s32 %v2917, %v2915
  %v2919 = vadd.s32 %v2854, %v2855
  %v2920 = vand.u32 %v2919, 65535
  %v2921 = vshrl.u32 %v2919, 16
  %v2922 = vcvt.s32.f32 %v2920
  %v2923 = vcvt.s32.f32 %v2921
  %2924 = vadd.xlane.f32.xlu0 %v2922
  %v2925 = vpop.xlane.xlu0 %2924
  %2926 = vadd.xlane.f32.xlu0 %v2923
  %v2927 = vpop.xlane.xlu0 %2926
  %v2928 = vcvt.f32.s32 %v2925
  %v2929 = vcvt.f32.s32 %v2927
  %v2930 = vshll.u32 %v2929, 16
  %v2931 = vadd.s32 %v2930, %v2928
  %v2932 = vadd.s32 %v2856, %v2857
  %v2933 = vand.u32 %v2932, 65535
  %v2934 = vshrl.u32 %v2932, 16
  %v2935 = vcvt.s32.f32 %v2933
  %v2936 = vcvt.s32.f32 %v2934
  %2937 = vadd.xlane.f32.xlu0 %v2935
  %v2938 = vpop.xlane.xlu0 %2937
  %2939 = vadd.xlane.f32.xlu0 %v2936
  %v2940 = vpop.xlane.xlu0 %2939
  %v2941 = vcvt.f32.s32 %v2938
  %v2942 = vcvt.f32.s32 %v2940
  %v2943 = vshll.u32 %v2942, 16
  %v2944 = vadd.s32 %v2943, %v2941
  %v2945 = vadd.s32 %v2858, %v2859
  %v2946 = vand.u32 %v2945, 65535
  %v2947 = vshrl.u32 %v2945, 16
  %v2948 = vcvt.s32.f32 %v2946
  %v2949 = vcvt.s32.f32 %v2947
  %2950 = vadd.xlane.f32.xlu0 %v2948
  %v2951 = vpop.xlane.xlu0 %2950
  %2952 = vadd.xlane.f32.xlu0 %v2949
  %v2953 = vpop.xlane.xlu0 %2952
  %v2954 = vcvt.f32.s32 %v2951
  %v2955 = vcvt.f32.s32 %v2953
  %v2956 = vshll.u32 %v2955, 16
  %v2957 = vadd.s32 %v2956, %v2954
  %v2958 = vadd.s32 %v2860, %v2861
  %v2959 = vand.u32 %v2958, 65535
  %v2960 = vshrl.u32 %v2958, 16
  %v2961 = vcvt.s32.f32 %v2959
  %v2962 = vcvt.s32.f32 %v2960
  %2963 = vadd.xlane.f32.xlu0 %v2961
  %v2964 = vpop.xlane.xlu0 %2963
  %2965 = vadd.xlane.f32.xlu0 %v2962
  %v2966 = vpop.xlane.xlu0 %2965
  %v2967 = vcvt.f32.s32 %v2964
  %v2968 = vcvt.f32.s32 %v2966
  %v2969 = vshll.u32 %v2968, 16
  %v2970 = vadd.s32 %v2969, %v2967
  %v2971 = vadd.s32 %v2862, %v2863
  %v2972 = vand.u32 %v2971, 65535
  %v2973 = vshrl.u32 %v2971, 16
  %v2974 = vcvt.s32.f32 %v2972
  %v2975 = vcvt.s32.f32 %v2973
  %2976 = vadd.xlane.f32.xlu0 %v2974
  %v2977 = vpop.xlane.xlu0 %2976
  %2978 = vadd.xlane.f32.xlu0 %v2975
  %v2979 = vpop.xlane.xlu0 %2978
  %v2980 = vcvt.f32.s32 %v2977
  %v2981 = vcvt.f32.s32 %v2979
  %v2982 = vshll.u32 %v2981, 16
  %v2983 = vadd.s32 %v2982, %v2980
  %v2984 = vadd.s32 %v2864, %v2865
  %v2985 = vand.u32 %v2984, 65535
  %v2986 = vshrl.u32 %v2984, 16
  %v2987 = vcvt.s32.f32 %v2985
  %v2988 = vcvt.s32.f32 %v2986
  %2989 = vadd.xlane.f32.xlu0 %v2987
  %v2990 = vpop.xlane.xlu0 %2989
  %2991 = vadd.xlane.f32.xlu0 %v2988
  %v2992 = vpop.xlane.xlu0 %2991
  %v2993 = vcvt.f32.s32 %v2990
  %v2994 = vcvt.f32.s32 %v2992
  %v2995 = vshll.u32 %v2994, 16
  %v2996 = vadd.s32 %v2995, %v2993
  %v2997 = vadd.s32 %v2866, %v2867
  %v2998 = vand.u32 %v2997, 65535
  %v2999 = vshrl.u32 %v2997, 16
  %v3000 = vcvt.s32.f32 %v2998
  %v3001 = vcvt.s32.f32 %v2999
  %3002 = vadd.xlane.f32.xlu0 %v3000
  %v3003 = vpop.xlane.xlu0 %3002
  %3004 = vadd.xlane.f32.xlu0 %v3001
  %v3005 = vpop.xlane.xlu0 %3004
  %v3006 = vcvt.f32.s32 %v3003
  %v3007 = vcvt.f32.s32 %v3005
  %v3008 = vshll.u32 %v3007, 16
  %v3009 = vadd.s32 %v3008, %v3006
  %v3010 = vadd.s32 %v2868, %v2869
  %v3011 = vand.u32 %v3010, 65535
  %v3012 = vshrl.u32 %v3010, 16
  %v3013 = vcvt.s32.f32 %v3011
  %v3014 = vcvt.s32.f32 %v3012
  %3015 = vadd.xlane.f32.xlu0 %v3013
  %v3016 = vpop.xlane.xlu0 %3015
  %3017 = vadd.xlane.f32.xlu0 %v3014
  %v3018 = vpop.xlane.xlu0 %3017
  %v3019 = vcvt.f32.s32 %v3016
  %v3020 = vcvt.f32.s32 %v3018
  %v3021 = vshll.u32 %v3020, 16
  %v3022 = vadd.s32 %v3021, %v3019
  %v3023 = vadd.s32 %v2870, %v2871
  %v3024 = vand.u32 %v3023, 65535
  %v3025 = vshrl.u32 %v3023, 16
  %v3026 = vcvt.s32.f32 %v3024
  %v3027 = vcvt.s32.f32 %v3025
  %3028 = vadd.xlane.f32.xlu0 %v3026
  %v3029 = vpop.xlane.xlu0 %3028
  %3030 = vadd.xlane.f32.xlu0 %v3027
  %v3031 = vpop.xlane.xlu0 %3030
  %v3032 = vcvt.f32.s32 %v3029
  %v3033 = vcvt.f32.s32 %v3031
  %v3034 = vshll.u32 %v3033, 16
  %v3035 = vadd.s32 %v3034, %v3032
  %v3036 = vadd.s32 %v2872, %v2873
  %v3037 = vand.u32 %v3036, 65535
  %v3038 = vshrl.u32 %v3036, 16
  %v3039 = vcvt.s32.f32 %v3037
  %v3040 = vcvt.s32.f32 %v3038
  %3041 = vadd.xlane.f32.xlu0 %v3039
  %v3042 = vpop.xlane.xlu0 %3041
  %3043 = vadd.xlane.f32.xlu0 %v3040
  %v3044 = vpop.xlane.xlu0 %3043
  %v3045 = vcvt.f32.s32 %v3042
  %v3046 = vcvt.f32.s32 %v3044
  %v3047 = vshll.u32 %v3046, 16
  %v3048 = vadd.s32 %v3047, %v3045
  %v3049 = vadd.s32 %v2874, %v2875
  %v3050 = vand.u32 %v3049, 65535
  %v3051 = vshrl.u32 %v3049, 16
  %v3052 = vcvt.s32.f32 %v3050
  %v3053 = vcvt.s32.f32 %v3051
  %3054 = vadd.xlane.f32.xlu0 %v3052
  %v3055 = vpop.xlane.xlu0 %3054
  %3056 = vadd.xlane.f32.xlu0 %v3053
  %v3057 = vpop.xlane.xlu0 %3056
  %v3058 = vcvt.f32.s32 %v3055
  %v3059 = vcvt.f32.s32 %v3057
  %v3060 = vshll.u32 %v3059, 16
  %v3061 = vadd.s32 %v3060, %v3058
  %v3062 = vadd.s32 %v2876, %v2877
  %v3063 = vand.u32 %v3062, 65535
  %v3064 = vshrl.u32 %v3062, 16
  %v3065 = vcvt.s32.f32 %v3063
  %v3066 = vcvt.s32.f32 %v3064
  %3067 = vadd.xlane.f32.xlu0 %v3065
  %v3068 = vpop.xlane.xlu0 %3067
  %3069 = vadd.xlane.f32.xlu0 %v3066
  %v3070 = vpop.xlane.xlu0 %3069
  %v3071 = vcvt.f32.s32 %v3068
  %v3072 = vcvt.f32.s32 %v3070
  %v3073 = vshll.u32 %v3072, 16
  %v3074 = vadd.s32 %v3073, %v3071
  %v3075 = vadd.s32 %v2878, %v2879
  %v3076 = vand.u32 %v3075, 65535
  %v3077 = vshrl.u32 %v3075, 16
  %v3078 = vcvt.s32.f32 %v3076
  %v3079 = vcvt.s32.f32 %v3077
  %3080 = vadd.xlane.f32.xlu0 %v3078
  %v3081 = vpop.xlane.xlu0 %3080
  %3082 = vadd.xlane.f32.xlu0 %v3079
  %v3083 = vpop.xlane.xlu0 %3082
  %v3084 = vcvt.f32.s32 %v3081
  %v3085 = vcvt.f32.s32 %v3083
  %v3086 = vshll.u32 %v3085, 16
  %v3087 = vadd.s32 %v3086, %v3084
  %vm3088 = vcmp.eq.s32.totalorder %v106, 2
  %v3089 = vsel %vm3088, %v2892, %v2736
  %v3090 = vsel %vm3088, %v2905, %v2737
  %v3091 = vsel %vm3088, %v2918, %v2738
  %v3092 = vsel %vm3088, %v2931, %v2739
  %v3093 = vsel %vm3088, %v2944, %v2740
  %v3094 = vsel %vm3088, %v2957, %v2741
  %v3095 = vsel %vm3088, %v2970, %v2742
  %v3096 = vsel %vm3088, %v2983, %v2743
  %v3097 = vsel %vm3088, %v2996, %v2744
  %v3098 = vsel %vm3088, %v3009, %v2745
  %v3099 = vsel %vm3088, %v3022, %v2746
  %v3100 = vsel %vm3088, %v3035, %v2747
  %v3101 = vsel %vm3088, %v3048, %v2748
  %v3102 = vsel %vm3088, %v3061, %v2749
  %v3103 = vsel %vm3088, %v3074, %v2750
  %v3104 = vsel %vm3088, %v3087, %v2751
  %v3105 = vadd.s32 %v89, 3
  %v3106 = vadd.s32 %v90, 3
  %v3107 = vadd.s32 %v91, 3
  %v3108 = vadd.s32 %v92, 3
  %v3109 = vadd.s32 %v93, 3
  %v3110 = vadd.s32 %v94, 3
  %v3111 = vadd.s32 %v95, 3
  %v3112 = vadd.s32 %v96, 3
  %v3113 = vadd.s32 %v97, 3
  %v3114 = vadd.s32 %v98, 3
  %v3115 = vadd.s32 %v99, 3
  %v3116 = vadd.s32 %v100, 3
  %v3117 = vadd.s32 %v101, 3
  %v3118 = vadd.s32 %v102, 3
  %v3119 = vadd.s32 %v103, 3
  %v3120 = vadd.s32 %v104, 3
  %3121 = vset.pattern.permute.xlu0 0
  %3122 = vperm.xlu0 %3121, %v3105
  %v3123 = vpop.permute.xlu0 %3122
  %3124 = vset.pattern.permute.xlu0 0
  %3125 = vperm.xlu0 %3124, %v3106
  %v3126 = vpop.permute.xlu0 %3125
  %3127 = vset.pattern.permute.xlu0 0
  %3128 = vperm.xlu0 %3127, %v3107
  %v3129 = vpop.permute.xlu0 %3128
  %3130 = vset.pattern.permute.xlu0 0
  %3131 = vperm.xlu0 %3130, %v3108
  %v3132 = vpop.permute.xlu0 %3131
  %3133 = vset.pattern.permute.xlu0 0
  %3134 = vperm.xlu0 %3133, %v3109
  %v3135 = vpop.permute.xlu0 %3134
  %3136 = vset.pattern.permute.xlu0 0
  %3137 = vperm.xlu0 %3136, %v3110
  %v3138 = vpop.permute.xlu0 %3137
  %3139 = vset.pattern.permute.xlu0 0
  %3140 = vperm.xlu0 %3139, %v3111
  %v3141 = vpop.permute.xlu0 %3140
  %3142 = vset.pattern.permute.xlu0 0
  %3143 = vperm.xlu0 %3142, %v3112
  %v3144 = vpop.permute.xlu0 %3143
  %3145 = vset.pattern.permute.xlu0 0
  %3146 = vperm.xlu0 %3145, %v3113
  %v3147 = vpop.permute.xlu0 %3146
  %3148 = vset.pattern.permute.xlu0 0
  %3149 = vperm.xlu0 %3148, %v3114
  %v3150 = vpop.permute.xlu0 %3149
  %3151 = vset.pattern.permute.xlu0 0
  %3152 = vperm.xlu0 %3151, %v3115
  %v3153 = vpop.permute.xlu0 %3152
  %3154 = vset.pattern.permute.xlu0 0
  %3155 = vperm.xlu0 %3154, %v3116
  %v3156 = vpop.permute.xlu0 %3155
  %3157 = vset.pattern.permute.xlu0 0
  %3158 = vperm.xlu0 %3157, %v3117
  %v3159 = vpop.permute.xlu0 %3158
  %3160 = vset.pattern.permute.xlu0 0
  %3161 = vperm.xlu0 %3160, %v3118
  %v3162 = vpop.permute.xlu0 %3161
  %3163 = vset.pattern.permute.xlu0 0
  %3164 = vperm.xlu0 %3163, %v3119
  %v3165 = vpop.permute.xlu0 %3164
  %3166 = vset.pattern.permute.xlu0 0
  %3167 = vperm.xlu0 %3166, %v3120
  %v3168 = vpop.permute.xlu0 %3167
  %vm3169 = vcmp.eq.s32.totalorder %v106, %v3123
  %vm3170 = vcmp.eq.s32.totalorder %v107, %v3123
  %vm3171 = vcmp.eq.s32.totalorder %v106, %v3126
  %vm3172 = vcmp.eq.s32.totalorder %v107, %v3126
  %vm3173 = vcmp.eq.s32.totalorder %v106, %v3129
  %vm3174 = vcmp.eq.s32.totalorder %v107, %v3129
  %vm3175 = vcmp.eq.s32.totalorder %v106, %v3132
  %vm3176 = vcmp.eq.s32.totalorder %v107, %v3132
  %vm3177 = vcmp.eq.s32.totalorder %v106, %v3135
  %vm3178 = vcmp.eq.s32.totalorder %v107, %v3135
  %vm3179 = vcmp.eq.s32.totalorder %v106, %v3138
  %vm3180 = vcmp.eq.s32.totalorder %v107, %v3138
  %vm3181 = vcmp.eq.s32.totalorder %v106, %v3141
  %vm3182 = vcmp.eq.s32.totalorder %v107, %v3141
  %vm3183 = vcmp.eq.s32.totalorder %v106, %v3144
  %vm3184 = vcmp.eq.s32.totalorder %v107, %v3144
  %vm3185 = vcmp.eq.s32.totalorder %v106, %v3147
  %vm3186 = vcmp.eq.s32.totalorder %v107, %v3147
  %vm3187 = vcmp.eq.s32.totalorder %v106, %v3150
  %vm3188 = vcmp.eq.s32.totalorder %v107, %v3150
  %vm3189 = vcmp.eq.s32.totalorder %v106, %v3153
  %vm3190 = vcmp.eq.s32.totalorder %v107, %v3153
  %vm3191 = vcmp.eq.s32.totalorder %v106, %v3156
  %vm3192 = vcmp.eq.s32.totalorder %v107, %v3156
  %vm3193 = vcmp.eq.s32.totalorder %v106, %v3159
  %vm3194 = vcmp.eq.s32.totalorder %v107, %v3159
  %vm3195 = vcmp.eq.s32.totalorder %v106, %v3162
  %vm3196 = vcmp.eq.s32.totalorder %v107, %v3162
  %vm3197 = vcmp.eq.s32.totalorder %v106, %v3165
  %vm3198 = vcmp.eq.s32.totalorder %v107, %v3165
  %vm3199 = vcmp.eq.s32.totalorder %v106, %v3168
  %vm3200 = vcmp.eq.s32.totalorder %v107, %v3168
  %v3201 = vsel %vm3169, %v2030, 0
  %v3202 = vsel %vm3170, %v2031, 0
  %v3203 = vsel %vm3171, %v2032, 0
  %v3204 = vsel %vm3172, %v2033, 0
  %v3205 = vsel %vm3173, %v2034, 0
  %v3206 = vsel %vm3174, %v2035, 0
  %v3207 = vsel %vm3175, %v2036, 0
  %v3208 = vsel %vm3176, %v2037, 0
  %v3209 = vsel %vm3177, %v2038, 0
  %v3210 = vsel %vm3178, %v2039, 0
  %v3211 = vsel %vm3179, %v2040, 0
  %v3212 = vsel %vm3180, %v2041, 0
  %v3213 = vsel %vm3181, %v2042, 0
  %v3214 = vsel %vm3182, %v2043, 0
  %v3215 = vsel %vm3183, %v2044, 0
  %v3216 = vsel %vm3184, %v2045, 0
  %v3217 = vsel %vm3185, %v2046, 0
  %v3218 = vsel %vm3186, %v2047, 0
  %v3219 = vsel %vm3187, %v2048, 0
  %v3220 = vsel %vm3188, %v2049, 0
  %v3221 = vsel %vm3189, %v2050, 0
  %v3222 = vsel %vm3190, %v2051, 0
  %v3223 = vsel %vm3191, %v2052, 0
  %v3224 = vsel %vm3192, %v2053, 0
  %v3225 = vsel %vm3193, %v2054, 0
  %v3226 = vsel %vm3194, %v2055, 0
  %v3227 = vsel %vm3195, %v2056, 0
  %v3228 = vsel %vm3196, %v2057, 0
  %v3229 = vsel %vm3197, %v2058, 0
  %v3230 = vsel %vm3198, %v2059, 0
  %v3231 = vsel %vm3199, %v2060, 0
  %v3232 = vsel %vm3200, %v2061, 0
  %v3233 = vadd.s32 %v3201, %v3202
  %v3234 = vand.u32 %v3233, 65535
  %v3235 = vshrl.u32 %v3233, 16
  %v3236 = vcvt.s32.f32 %v3234
  %v3237 = vcvt.s32.f32 %v3235
  %3238 = vadd.xlane.f32.xlu0 %v3236
  %v3239 = vpop.xlane.xlu0 %3238
  %3240 = vadd.xlane.f32.xlu0 %v3237
  %v3241 = vpop.xlane.xlu0 %3240
  %v3242 = vcvt.f32.s32 %v3239
  %v3243 = vcvt.f32.s32 %v3241
  %v3244 = vshll.u32 %v3243, 16
  %v3245 = vadd.s32 %v3244, %v3242
  %v3246 = vadd.s32 %v3203, %v3204
  %v3247 = vand.u32 %v3246, 65535
  %v3248 = vshrl.u32 %v3246, 16
  %v3249 = vcvt.s32.f32 %v3247
  %v3250 = vcvt.s32.f32 %v3248
  %3251 = vadd.xlane.f32.xlu0 %v3249
  %v3252 = vpop.xlane.xlu0 %3251
  %3253 = vadd.xlane.f32.xlu0 %v3250
  %v3254 = vpop.xlane.xlu0 %3253
  %v3255 = vcvt.f32.s32 %v3252
  %v3256 = vcvt.f32.s32 %v3254
  %v3257 = vshll.u32 %v3256, 16
  %v3258 = vadd.s32 %v3257, %v3255
  %v3259 = vadd.s32 %v3205, %v3206
  %v3260 = vand.u32 %v3259, 65535
  %v3261 = vshrl.u32 %v3259, 16
  %v3262 = vcvt.s32.f32 %v3260
  %v3263 = vcvt.s32.f32 %v3261
  %3264 = vadd.xlane.f32.xlu0 %v3262
  %v3265 = vpop.xlane.xlu0 %3264
  %3266 = vadd.xlane.f32.xlu0 %v3263
  %v3267 = vpop.xlane.xlu0 %3266
  %v3268 = vcvt.f32.s32 %v3265
  %v3269 = vcvt.f32.s32 %v3267
  %v3270 = vshll.u32 %v3269, 16
  %v3271 = vadd.s32 %v3270, %v3268
  %v3272 = vadd.s32 %v3207, %v3208
  %v3273 = vand.u32 %v3272, 65535
  %v3274 = vshrl.u32 %v3272, 16
  %v3275 = vcvt.s32.f32 %v3273
  %v3276 = vcvt.s32.f32 %v3274
  %3277 = vadd.xlane.f32.xlu0 %v3275
  %v3278 = vpop.xlane.xlu0 %3277
  %3279 = vadd.xlane.f32.xlu0 %v3276
  %v3280 = vpop.xlane.xlu0 %3279
  %v3281 = vcvt.f32.s32 %v3278
  %v3282 = vcvt.f32.s32 %v3280
  %v3283 = vshll.u32 %v3282, 16
  %v3284 = vadd.s32 %v3283, %v3281
  %v3285 = vadd.s32 %v3209, %v3210
  %v3286 = vand.u32 %v3285, 65535
  %v3287 = vshrl.u32 %v3285, 16
  %v3288 = vcvt.s32.f32 %v3286
  %v3289 = vcvt.s32.f32 %v3287
  %3290 = vadd.xlane.f32.xlu0 %v3288
  %v3291 = vpop.xlane.xlu0 %3290
  %3292 = vadd.xlane.f32.xlu0 %v3289
  %v3293 = vpop.xlane.xlu0 %3292
  %v3294 = vcvt.f32.s32 %v3291
  %v3295 = vcvt.f32.s32 %v3293
  %v3296 = vshll.u32 %v3295, 16
  %v3297 = vadd.s32 %v3296, %v3294
  %v3298 = vadd.s32 %v3211, %v3212
  %v3299 = vand.u32 %v3298, 65535
  %v3300 = vshrl.u32 %v3298, 16
  %v3301 = vcvt.s32.f32 %v3299
  %v3302 = vcvt.s32.f32 %v3300
  %3303 = vadd.xlane.f32.xlu0 %v3301
  %v3304 = vpop.xlane.xlu0 %3303
  %3305 = vadd.xlane.f32.xlu0 %v3302
  %v3306 = vpop.xlane.xlu0 %3305
  %v3307 = vcvt.f32.s32 %v3304
  %v3308 = vcvt.f32.s32 %v3306
  %v3309 = vshll.u32 %v3308, 16
  %v3310 = vadd.s32 %v3309, %v3307
  %v3311 = vadd.s32 %v3213, %v3214
  %v3312 = vand.u32 %v3311, 65535
  %v3313 = vshrl.u32 %v3311, 16
  %v3314 = vcvt.s32.f32 %v3312
  %v3315 = vcvt.s32.f32 %v3313
  %3316 = vadd.xlane.f32.xlu0 %v3314
  %v3317 = vpop.xlane.xlu0 %3316
  %3318 = vadd.xlane.f32.xlu0 %v3315
  %v3319 = vpop.xlane.xlu0 %3318
  %v3320 = vcvt.f32.s32 %v3317
  %v3321 = vcvt.f32.s32 %v3319
  %v3322 = vshll.u32 %v3321, 16
  %v3323 = vadd.s32 %v3322, %v3320
  %v3324 = vadd.s32 %v3215, %v3216
  %v3325 = vand.u32 %v3324, 65535
  %v3326 = vshrl.u32 %v3324, 16
  %v3327 = vcvt.s32.f32 %v3325
  %v3328 = vcvt.s32.f32 %v3326
  %3329 = vadd.xlane.f32.xlu0 %v3327
  %v3330 = vpop.xlane.xlu0 %3329
  %3331 = vadd.xlane.f32.xlu0 %v3328
  %v3332 = vpop.xlane.xlu0 %3331
  %v3333 = vcvt.f32.s32 %v3330
  %v3334 = vcvt.f32.s32 %v3332
  %v3335 = vshll.u32 %v3334, 16
  %v3336 = vadd.s32 %v3335, %v3333
  %v3337 = vadd.s32 %v3217, %v3218
  %v3338 = vand.u32 %v3337, 65535
  %v3339 = vshrl.u32 %v3337, 16
  %v3340 = vcvt.s32.f32 %v3338
  %v3341 = vcvt.s32.f32 %v3339
  %3342 = vadd.xlane.f32.xlu0 %v3340
  %v3343 = vpop.xlane.xlu0 %3342
  %3344 = vadd.xlane.f32.xlu0 %v3341
  %v3345 = vpop.xlane.xlu0 %3344
  %v3346 = vcvt.f32.s32 %v3343
  %v3347 = vcvt.f32.s32 %v3345
  %v3348 = vshll.u32 %v3347, 16
  %v3349 = vadd.s32 %v3348, %v3346
  %v3350 = vadd.s32 %v3219, %v3220
  %v3351 = vand.u32 %v3350, 65535
  %v3352 = vshrl.u32 %v3350, 16
  %v3353 = vcvt.s32.f32 %v3351
  %v3354 = vcvt.s32.f32 %v3352
  %3355 = vadd.xlane.f32.xlu0 %v3353
  %v3356 = vpop.xlane.xlu0 %3355
  %3357 = vadd.xlane.f32.xlu0 %v3354
  %v3358 = vpop.xlane.xlu0 %3357
  %v3359 = vcvt.f32.s32 %v3356
  %v3360 = vcvt.f32.s32 %v3358
  %v3361 = vshll.u32 %v3360, 16
  %v3362 = vadd.s32 %v3361, %v3359
  %v3363 = vadd.s32 %v3221, %v3222
  %v3364 = vand.u32 %v3363, 65535
  %v3365 = vshrl.u32 %v3363, 16
  %v3366 = vcvt.s32.f32 %v3364
  %v3367 = vcvt.s32.f32 %v3365
  %3368 = vadd.xlane.f32.xlu0 %v3366
  %v3369 = vpop.xlane.xlu0 %3368
  %3370 = vadd.xlane.f32.xlu0 %v3367
  %v3371 = vpop.xlane.xlu0 %3370
  %v3372 = vcvt.f32.s32 %v3369
  %v3373 = vcvt.f32.s32 %v3371
  %v3374 = vshll.u32 %v3373, 16
  %v3375 = vadd.s32 %v3374, %v3372
  %v3376 = vadd.s32 %v3223, %v3224
  %v3377 = vand.u32 %v3376, 65535
  %v3378 = vshrl.u32 %v3376, 16
  %v3379 = vcvt.s32.f32 %v3377
  %v3380 = vcvt.s32.f32 %v3378
  %3381 = vadd.xlane.f32.xlu0 %v3379
  %v3382 = vpop.xlane.xlu0 %3381
  %3383 = vadd.xlane.f32.xlu0 %v3380
  %v3384 = vpop.xlane.xlu0 %3383
  %v3385 = vcvt.f32.s32 %v3382
  %v3386 = vcvt.f32.s32 %v3384
  %v3387 = vshll.u32 %v3386, 16
  %v3388 = vadd.s32 %v3387, %v3385
  %v3389 = vadd.s32 %v3225, %v3226
  %v3390 = vand.u32 %v3389, 65535
  %v3391 = vshrl.u32 %v3389, 16
  %v3392 = vcvt.s32.f32 %v3390
  %v3393 = vcvt.s32.f32 %v3391
  %3394 = vadd.xlane.f32.xlu0 %v3392
  %v3395 = vpop.xlane.xlu0 %3394
  %3396 = vadd.xlane.f32.xlu0 %v3393
  %v3397 = vpop.xlane.xlu0 %3396
  %v3398 = vcvt.f32.s32 %v3395
  %v3399 = vcvt.f32.s32 %v3397
  %v3400 = vshll.u32 %v3399, 16
  %v3401 = vadd.s32 %v3400, %v3398
  %v3402 = vadd.s32 %v3227, %v3228
  %v3403 = vand.u32 %v3402, 65535
  %v3404 = vshrl.u32 %v3402, 16
  %v3405 = vcvt.s32.f32 %v3403
  %v3406 = vcvt.s32.f32 %v3404
  %3407 = vadd.xlane.f32.xlu0 %v3405
  %v3408 = vpop.xlane.xlu0 %3407
  %3409 = vadd.xlane.f32.xlu0 %v3406
  %v3410 = vpop.xlane.xlu0 %3409
  %v3411 = vcvt.f32.s32 %v3408
  %v3412 = vcvt.f32.s32 %v3410
  %v3413 = vshll.u32 %v3412, 16
  %v3414 = vadd.s32 %v3413, %v3411
  %v3415 = vadd.s32 %v3229, %v3230
  %v3416 = vand.u32 %v3415, 65535
  %v3417 = vshrl.u32 %v3415, 16
  %v3418 = vcvt.s32.f32 %v3416
  %v3419 = vcvt.s32.f32 %v3417
  %3420 = vadd.xlane.f32.xlu0 %v3418
  %v3421 = vpop.xlane.xlu0 %3420
  %3422 = vadd.xlane.f32.xlu0 %v3419
  %v3423 = vpop.xlane.xlu0 %3422
  %v3424 = vcvt.f32.s32 %v3421
  %v3425 = vcvt.f32.s32 %v3423
  %v3426 = vshll.u32 %v3425, 16
  %v3427 = vadd.s32 %v3426, %v3424
  %v3428 = vadd.s32 %v3231, %v3232
  %v3429 = vand.u32 %v3428, 65535
  %v3430 = vshrl.u32 %v3428, 16
  %v3431 = vcvt.s32.f32 %v3429
  %v3432 = vcvt.s32.f32 %v3430
  %3433 = vadd.xlane.f32.xlu0 %v3431
  %v3434 = vpop.xlane.xlu0 %3433
  %3435 = vadd.xlane.f32.xlu0 %v3432
  %v3436 = vpop.xlane.xlu0 %3435
  %v3437 = vcvt.f32.s32 %v3434
  %v3438 = vcvt.f32.s32 %v3436
  %v3439 = vshll.u32 %v3438, 16
  %v3440 = vadd.s32 %v3439, %v3437
  %vm3441 = vcmp.eq.s32.totalorder %v106, 3
  %v3442 = vsel %vm3441, %v3245, %v3089
  %v3443 = vsel %vm3441, %v3258, %v3090
  %v3444 = vsel %vm3441, %v3271, %v3091
  %v3445 = vsel %vm3441, %v3284, %v3092
  %v3446 = vsel %vm3441, %v3297, %v3093
  %v3447 = vsel %vm3441, %v3310, %v3094
  %v3448 = vsel %vm3441, %v3323, %v3095
  %v3449 = vsel %vm3441, %v3336, %v3096
  %v3450 = vsel %vm3441, %v3349, %v3097
  %v3451 = vsel %vm3441, %v3362, %v3098
  %v3452 = vsel %vm3441, %v3375, %v3099
  %v3453 = vsel %vm3441, %v3388, %v3100
  %v3454 = vsel %vm3441, %v3401, %v3101
  %v3455 = vsel %vm3441, %v3414, %v3102
  %v3456 = vsel %vm3441, %v3427, %v3103
  %v3457 = vsel %vm3441, %v3440, %v3104
  %3458 = vset.pattern.permute.xlu0 1
  %3459 = vperm.xlu0 %3458, %v57
  %v3460 = vpop.permute.xlu0 %3459
  %3461 = vset.pattern.permute.xlu0 1
  %3462 = vperm.xlu0 %3461, %v58
  %v3463 = vpop.permute.xlu0 %3462
  %3464 = vset.pattern.permute.xlu0 1
  %3465 = vperm.xlu0 %3464, %v59
  %v3466 = vpop.permute.xlu0 %3465
  %3467 = vset.pattern.permute.xlu0 1
  %3468 = vperm.xlu0 %3467, %v60
  %v3469 = vpop.permute.xlu0 %3468
  %3470 = vset.pattern.permute.xlu0 1
  %3471 = vperm.xlu0 %3470, %v61
  %v3472 = vpop.permute.xlu0 %3471
  %3473 = vset.pattern.permute.xlu0 1
  %3474 = vperm.xlu0 %3473, %v62
  %v3475 = vpop.permute.xlu0 %3474
  %3476 = vset.pattern.permute.xlu0 1
  %3477 = vperm.xlu0 %3476, %v63
  %v3478 = vpop.permute.xlu0 %3477
  %3479 = vset.pattern.permute.xlu0 1
  %3480 = vperm.xlu0 %3479, %v64
  %v3481 = vpop.permute.xlu0 %3480
  %3482 = vset.pattern.permute.xlu0 1
  %3483 = vperm.xlu0 %3482, %v65
  %v3484 = vpop.permute.xlu0 %3483
  %3485 = vset.pattern.permute.xlu0 1
  %3486 = vperm.xlu0 %3485, %v66
  %v3487 = vpop.permute.xlu0 %3486
  %3488 = vset.pattern.permute.xlu0 1
  %3489 = vperm.xlu0 %3488, %v67
  %v3490 = vpop.permute.xlu0 %3489
  %3491 = vset.pattern.permute.xlu0 1
  %3492 = vperm.xlu0 %3491, %v68
  %v3493 = vpop.permute.xlu0 %3492
  %3494 = vset.pattern.permute.xlu0 1
  %3495 = vperm.xlu0 %3494, %v69
  %v3496 = vpop.permute.xlu0 %3495
  %3497 = vset.pattern.permute.xlu0 1
  %3498 = vperm.xlu0 %3497, %v70
  %v3499 = vpop.permute.xlu0 %3498
  %3500 = vset.pattern.permute.xlu0 1
  %3501 = vperm.xlu0 %3500, %v71
  %v3502 = vpop.permute.xlu0 %3501
  %3503 = vset.pattern.permute.xlu0 1
  %3504 = vperm.xlu0 %3503, %v72
  %v3505 = vpop.permute.xlu0 %3504
  %vm3506 = vcmp.lt.s32.totalorder %v106, %v3460
  %vm3507 = vcmp.lt.s32.totalorder %v106, %v3463
  %vm3508 = vcmp.lt.s32.totalorder %v106, %v3466
  %vm3509 = vcmp.lt.s32.totalorder %v106, %v3469
  %vm3510 = vcmp.lt.s32.totalorder %v106, %v3472
  %vm3511 = vcmp.lt.s32.totalorder %v106, %v3475
  %vm3512 = vcmp.lt.s32.totalorder %v106, %v3478
  %vm3513 = vcmp.lt.s32.totalorder %v106, %v3481
  %vm3514 = vcmp.lt.s32.totalorder %v106, %v3484
  %vm3515 = vcmp.lt.s32.totalorder %v106, %v3487
  %vm3516 = vcmp.lt.s32.totalorder %v106, %v3490
  %vm3517 = vcmp.lt.s32.totalorder %v106, %v3493
  %vm3518 = vcmp.lt.s32.totalorder %v106, %v3496
  %vm3519 = vcmp.lt.s32.totalorder %v106, %v3499
  %vm3520 = vcmp.lt.s32.totalorder %v106, %v3502
  %vm3521 = vcmp.lt.s32.totalorder %v106, %v3505
  %v3522 = vsel %vm3506, %v3442, 0
  %v3523 = vsel %vm3507, %v3443, 0
  %v3524 = vsel %vm3508, %v3444, 0
  %v3525 = vsel %vm3509, %v3445, 0
  %v3526 = vsel %vm3510, %v3446, 0
  %v3527 = vsel %vm3511, %v3447, 0
  %v3528 = vsel %vm3512, %v3448, 0
  %v3529 = vsel %vm3513, %v3449, 0
  %v3530 = vsel %vm3514, %v3450, 0
  %v3531 = vsel %vm3515, %v3451, 0
  %v3532 = vsel %vm3516, %v3452, 0
  %v3533 = vsel %vm3517, %v3453, 0
  %v3534 = vsel %vm3518, %v3454, 0
  %v3535 = vsel %vm3519, %v3455, 0
  %v3536 = vsel %vm3520, %v3456, 0
  %v3537 = vsel %vm3521, %v3457, 0
  %3538 = vset.pattern.permute.xlu0 2
  %3539 = vperm.xlu0 %3538, %v57
  %v3540 = vpop.permute.xlu0 %3539
  %3541 = vset.pattern.permute.xlu0 2
  %3542 = vperm.xlu0 %3541, %v58
  %v3543 = vpop.permute.xlu0 %3542
  %3544 = vset.pattern.permute.xlu0 2
  %3545 = vperm.xlu0 %3544, %v59
  %v3546 = vpop.permute.xlu0 %3545
  %3547 = vset.pattern.permute.xlu0 2
  %3548 = vperm.xlu0 %3547, %v60
  %v3549 = vpop.permute.xlu0 %3548
  %3550 = vset.pattern.permute.xlu0 2
  %3551 = vperm.xlu0 %3550, %v61
  %v3552 = vpop.permute.xlu0 %3551
  %3553 = vset.pattern.permute.xlu0 2
  %3554 = vperm.xlu0 %3553, %v62
  %v3555 = vpop.permute.xlu0 %3554
  %3556 = vset.pattern.permute.xlu0 2
  %3557 = vperm.xlu0 %3556, %v63
  %v3558 = vpop.permute.xlu0 %3557
  %3559 = vset.pattern.permute.xlu0 2
  %3560 = vperm.xlu0 %3559, %v64
  %v3561 = vpop.permute.xlu0 %3560
  %3562 = vset.pattern.permute.xlu0 2
  %3563 = vperm.xlu0 %3562, %v65
  %v3564 = vpop.permute.xlu0 %3563
  %3565 = vset.pattern.permute.xlu0 2
  %3566 = vperm.xlu0 %3565, %v66
  %v3567 = vpop.permute.xlu0 %3566
  %3568 = vset.pattern.permute.xlu0 2
  %3569 = vperm.xlu0 %3568, %v67
  %v3570 = vpop.permute.xlu0 %3569
  %3571 = vset.pattern.permute.xlu0 2
  %3572 = vperm.xlu0 %3571, %v68
  %v3573 = vpop.permute.xlu0 %3572
  %3574 = vset.pattern.permute.xlu0 2
  %3575 = vperm.xlu0 %3574, %v69
  %v3576 = vpop.permute.xlu0 %3575
  %3577 = vset.pattern.permute.xlu0 2
  %3578 = vperm.xlu0 %3577, %v70
  %v3579 = vpop.permute.xlu0 %3578
  %3580 = vset.pattern.permute.xlu0 2
  %3581 = vperm.xlu0 %3580, %v71
  %v3582 = vpop.permute.xlu0 %3581
  %3583 = vset.pattern.permute.xlu0 2
  %3584 = vperm.xlu0 %3583, %v72
  %v3585 = vpop.permute.xlu0 %3584
  %v3586 = vadd.s32 %v3522, %v3540
  %v3587 = vadd.s32 %v3523, %v3543
  %v3588 = vadd.s32 %v3524, %v3546
  %v3589 = vadd.s32 %v3525, %v3549
  %v3590 = vadd.s32 %v3526, %v3552
  %v3591 = vadd.s32 %v3527, %v3555
  %v3592 = vadd.s32 %v3528, %v3558
  %v3593 = vadd.s32 %v3529, %v3561
  %v3594 = vadd.s32 %v3530, %v3564
  %v3595 = vadd.s32 %v3531, %v3567
  %v3596 = vadd.s32 %v3532, %v3570
  %v3597 = vadd.s32 %v3533, %v3573
  %v3598 = vadd.s32 %v3534, %v3576
  %v3599 = vadd.s32 %v3535, %v3579
  %v3600 = vadd.s32 %v3536, %v3582
  %v3601 = vadd.s32 %v3537, %v3585
  %vm3602 = vcmask 31744
  %3603 = vst.msk [vmem:[%s4] sm:$0xff] %vm3602, %v3586
  %3604 = vst.msk [vmem:[%s4 + $0x8] sm:$0xff] %vm3602, %v3587
  %3605 = vst.msk [vmem:[%s4 + $0x10] sm:$0xff] %vm3602, %v3588
  %3606 = vst.msk [vmem:[%s4 + $0x18] sm:$0xff] %vm3602, %v3589
  %3607 = vst.msk [vmem:[%s4 + $0x20] sm:$0xff] %vm3602, %v3590
  %3608 = vst.msk [vmem:[%s4 + $0x28] sm:$0xff] %vm3602, %v3591
  %3609 = vst.msk [vmem:[%s4 + $0x30] sm:$0xff] %vm3602, %v3592
  %3610 = vst.msk [vmem:[%s4 + $0x38] sm:$0xff] %vm3602, %v3593
  %3611 = vst.msk [vmem:[%s4 + $0x40] sm:$0xff] %vm3602, %v3594
  %3612 = vst.msk [vmem:[%s4 + $0x48] sm:$0xff] %vm3602, %v3595
  %3613 = vst.msk [vmem:[%s4 + $0x50] sm:$0xff] %vm3602, %v3596
  %3614 = vst.msk [vmem:[%s4 + $0x58] sm:$0xff] %vm3602, %v3597
  %3615 = vst.msk [vmem:[%s4 + $0x60] sm:$0xff] %vm3602, %v3598
  %3616 = vst.msk [vmem:[%s4 + $0x68] sm:$0xff] %vm3602, %v3599
  %3617 = vst.msk [vmem:[%s4 + $0x70] sm:$0xff] %vm3602, %v3600
  %3618 = vst.msk [vmem:[%s4 + $0x78] sm:$0xff] %vm3602, %v3601
  %v3619 = vsel %vm3506, 1, 0
  %v3620 = vsel %vm3507, 1, 0
  %v3621 = vsel %vm3508, 1, 0
  %v3622 = vsel %vm3509, 1, 0
  %v3623 = vsel %vm3510, 1, 0
  %v3624 = vsel %vm3511, 1, 0
  %v3625 = vsel %vm3512, 1, 0
  %v3626 = vsel %vm3513, 1, 0
  %v3627 = vsel %vm3514, 1, 0
  %v3628 = vsel %vm3515, 1, 0
  %v3629 = vsel %vm3516, 1, 0
  %v3630 = vsel %vm3517, 1, 0
  %v3631 = vsel %vm3518, 1, 0
  %v3632 = vsel %vm3519, 1, 0
  %v3633 = vsel %vm3520, 1, 0
  %v3634 = vsel %vm3521, 1, 0
  %3635 = vst.msk [vmem:[%s5] sm:$0xff] %vm3602, %v3619
  %3636 = vst.msk [vmem:[%s5 + $0x8] sm:$0xff] %vm3602, %v3620
  %3637 = vst.msk [vmem:[%s5 + $0x10] sm:$0xff] %vm3602, %v3621
  %3638 = vst.msk [vmem:[%s5 + $0x18] sm:$0xff] %vm3602, %v3622
  %3639 = vst.msk [vmem:[%s5 + $0x20] sm:$0xff] %vm3602, %v3623
  %3640 = vst.msk [vmem:[%s5 + $0x28] sm:$0xff] %vm3602, %v3624
  %3641 = vst.msk [vmem:[%s5 + $0x30] sm:$0xff] %vm3602, %v3625
  %3642 = vst.msk [vmem:[%s5 + $0x38] sm:$0xff] %vm3602, %v3626
  %3643 = vst.msk [vmem:[%s5 + $0x40] sm:$0xff] %vm3602, %v3627
  %3644 = vst.msk [vmem:[%s5 + $0x48] sm:$0xff] %vm3602, %v3628
  %3645 = vst.msk [vmem:[%s5 + $0x50] sm:$0xff] %vm3602, %v3629
  %3646 = vst.msk [vmem:[%s5 + $0x58] sm:$0xff] %vm3602, %v3630
  %3647 = vst.msk [vmem:[%s5 + $0x60] sm:$0xff] %vm3602, %v3631
  %3648 = vst.msk [vmem:[%s5 + $0x68] sm:$0xff] %vm3602, %v3632
  %3649 = vst.msk [vmem:[%s5 + $0x70] sm:$0xff] %vm3602, %v3633
  %3650 = vst.msk [vmem:[%s5 + $0x78] sm:$0xff] %vm3602, %v3634
  // Predicated region
  $region14: #{tpu_custom_call.1} parent=0 // pred_check
    _
  $region15: #{tpu_custom_call.1} parent=0 // pred_check_branch
    %3652 = sbr.rel (0) target = $region17
  $region16: #{tpu_custom_call.1} parent=0 // pred_region
    _
  $region17: #{tpu_custom_call.1} parent=0 // pred_fallthru
    _
  // Predicated region
  $region18: #{tpu_custom_call.1} parent=0 // pred_check
    _
  $region19: #{tpu_custom_call.1} parent=0 // pred_check_branch
    %3654 = sbr.rel (0) target = $region21
  $region20: #{tpu_custom_call.1} parent=0 // pred_region
    _
  $region21: #{tpu_custom_call.1} parent=0 // pred_fallthru
    _
  // Predicated region
  $region22: #{tpu_custom_call.1} parent=0 // pred_check
    _
  $region23: #{tpu_custom_call.1} parent=0 // pred_check_branch
    %3656 = sbr.rel (0) target = $region25
  $region24: #{tpu_custom_call.1} parent=0 // pred_region
    _
  $region25: #{tpu_custom_call.1} parent=0 // pred_fallthru
    _
  // Predicated region
  $region26: #{tpu_custom_call.1} parent=0 // pred_check
    _
  $region27: #{tpu_custom_call.1} parent=0 // pred_check_branch
    %3658 = sbr.rel (0) target = $region29
  $region28: #{tpu_custom_call.1} parent=0 // pred_region
    _
  $region29: #{tpu_custom_call.1} parent=0 // pred_fallthru
    _

</llo_original>
